<compile_context>
chip_gen: v6e
topology: v6e:2x2x1
jax: 0.10.0
libtpu: 0.0.40
codegen_flags: <defaults>
</compile_context>

<pallas_src>
import math
from functools import partial

import jax
import jax.numpy as jnp
import numpy as np
from jax.experimental import pallas as pl
from jax.experimental.pallas import tpu as pltpu

NUM_HEADS = 8
BN_EPS = 1e-5


# ----------------------------------------------------------------------------
# Fused kernel: token attention (mean-first) + attention map + elementwise apply
# ----------------------------------------------------------------------------
def _rein_fused_kernel(tok_ref, wqkv_ref, bqkv_ref, wo_ref, bo_ref,
                       e3_ref, cfull_ref, b1_ref, w2_ref, b2_ref,
                       feat_ref, o_ref):
    T, E = tok_ref.shape
    nh = NUM_HEADS
    d = E // nh
    scale = 1.0 / math.sqrt(d)

    # ---- token self-attention, mean-first (all in vregs, no scratch) -------
    qkv = jnp.dot(tok_ref[...], wqkv_ref[...],
                  preferred_element_type=jnp.float32) + bqkv_ref[...]      # (T, 3E)
    q = qkv[:, :E]          # hoist the three E-wide slabs once
    k = qkv[:, E:2 * E]
    v = qkv[:, 2 * E:]

    head_outs = []
    for h in range(nh):                                  # static unroll (nh=8)
        qh = q[:, h * d:(h + 1) * d]
        kh = k[:, h * d:(h + 1) * d]
        vh = v[:, h * d:(h + 1) * d]
        s = jax.lax.dot_general(qh, kh, (((1,), (1,)), ((), ())),
                                preferred_element_type=jnp.float32) * scale  # (T, T)
        p = jax.nn.softmax(s, axis=-1)
        pbar = jnp.mean(p, axis=0, keepdims=True)                           # (1, T)
        head_outs.append(jnp.dot(pbar, vh,
                                 preferred_element_type=jnp.float32))       # (1, d)
    ctx_mean = jnp.concatenate(head_outs, axis=-1)                          # (1, E)
    # mean_t(out) = mean_t(ctx) @ Wo + bo
    m = jnp.dot(ctx_mean, wo_ref[...],
                preferred_element_type=jnp.float32) + bo_ref[...]           # (1, E==H)

    # ---- attention map (batch & channel invariant), rebuilt each step ------
    # conv3x3 on the rank-1 token map, separable:
    #   hidden[o, h*W+w] = b1[o] + sum_dy (m @ E3[dy])[h*W+w] * cfull[dy, o, h*W+w]
    r0 = jnp.dot(m, e3_ref[0], preferred_element_type=jnp.float32)          # (1, HW)
    r1 = jnp.dot(m, e3_ref[1], preferred_element_type=jnp.float32)
    r2 = jnp.dot(m, e3_ref[2], preferred_element_type=jnp.float32)
    hidden = (cfull_ref[0] * r0 + cfull_ref[1] * r1 + cfull_ref[2] * r2
              + b1_ref[...])                                                # (C, HW)
    hidden = jnp.maximum(hidden, 0.0)
    pre = jnp.dot(w2_ref[...], hidden,
                  preferred_element_type=jnp.float32) + b2_ref[...]         # (C, HW)
    att = jax.nn.sigmoid(pre) + 1.0          # residual folded: out = feat*(sig+1)

    # ---- per-batch-block elementwise apply (single multiply) ---------------
    o_ref[...] = (feat_ref[...] * att[None, :, :]).astype(o_ref.dtype)


# ----------------------------------------------------------------------------
# Parameter init (deterministic, mirrors the nn.Module __init__ shapes).
# ----------------------------------------------------------------------------
def init_params(key, rein_dim=32, num_tokens=8):
    E, T = rein_dim, num_tokens
    ks = jax.random.split(key, 12)
    p = {}
    p["token_generator"] = jax.random.normal(ks[0], (1, T, E), jnp.float32)
    p["in_proj_weight"] = jax.random.normal(ks[1], (3 * E, E), jnp.float32) / math.sqrt(E)
    p["in_proj_bias"] = 0.02 * jax.random.normal(ks[2], (3 * E,), jnp.float32)
    p["out_proj_weight"] = jax.random.normal(ks[3], (E, E), jnp.float32) / math.sqrt(E)
    p["out_proj_bias"] = 0.02 * jax.random.normal(ks[4], (E,), jnp.float32)
    p["conv1_weight"] = jax.random.normal(ks[5], (E, E, 3, 3), jnp.float32) / math.sqrt(9 * E)
    p["conv1_bias"] = 0.02 * jax.random.normal(ks[6], (E,), jnp.float32)
    p["bn_gamma"] = 1.0 + 0.1 * jax.random.normal(ks[7], (E,), jnp.float32)
    p["bn_beta"] = 0.1 * jax.random.normal(ks[8], (E,), jnp.float32)
    p["bn_mean"] = 0.1 * jax.random.normal(ks[9], (E,), jnp.float32)
    p["bn_var"] = 0.5 + jax.random.uniform(ks[10], (E,), jnp.float32)
    p["conv2_weight"] = jax.random.normal(ks[11], (E, E, 1, 1), jnp.float32) / math.sqrt(E)
    p["conv2_bias"] = jnp.zeros((E,), jnp.float32)
    return p


# ----------------------------------------------------------------------------
# Wrapper-side, parameter-only precompute (no data dependence on kernel output,
# so there is no XLA glue between kernel dispatches — there is only one).
# ----------------------------------------------------------------------------
def _prepare_constants(params, C, H, W):
    # eval-mode BatchNorm folded into channel-summed 3x3 weights
    bn_scale = params["bn_gamma"] * jax.lax.rsqrt(params["bn_var"] + BN_EPS)      # (C,)
    wsum = params["conv1_weight"].sum(axis=1) * bn_scale[:, None, None]           # (C,3,3)
    b1f = ((params["conv1_bias"] - params["bn_mean"]) * bn_scale
           + params["bn_beta"]).reshape(C, 1)
    # column factors c[dy, o, w] = sum_dx wsum[o,dy,dx] * 1{1 <= w+dx <= W}
    w_idx = jnp.arange(W)
    colmask = jnp.stack([(w_idx >= 1).astype(jnp.float32),
                         jnp.ones((W,), jnp.float32),
                         (w_idx <= W - 2).astype(jnp.float32)], axis=0)           # (3,W)
    c = jnp.einsum("odk,kw->dow", wsum, colmask)                                  # (3,C,W)
    cfull = jnp.tile(c, (1, 1, H))                                                # (3,C,HW)
    # row-expansion matrices: e3[dy][j, h*W+w] = 1 iff j == h+dy-1 (zero-pad rows)
    j = jnp.arange(H)[:, None]
    hcol = jnp.arange(H)[None, :]
    e3 = jnp.stack([jnp.repeat((j == hcol + dy - 1).astype(jnp.float32), W, axis=1)
                    for dy in range(3)], axis=0)                                  # (3,H,HW)
    w2 = params["conv2_weight"][:, :, 0, 0]                                       # (C,C)
    b2 = params["conv2_bias"].reshape(C, 1)
    return e3, cfull, b1f, w2, b2


def _pick_batch_block(B, per_batch_bytes, target_bytes=512 << 10):
    # Big enough blocks for HBM roofline, but keep >=2 grid steps when B >= 2
    # so the "parallel" batch axis can shard across v7x's two TensorCores.
    # (feat + out, double-buffered ~ 6x block bytes; stays far below v7x's
    #  64 MiB VMEM at this target — no vmem_limit_bytes override needed.)
    bt = max(1, min(B, int(target_bytes // max(1, per_batch_bytes))))
    if B >= 2:
        bt = min(bt, B // 2)
    while B % bt:
        bt -= 1
    return bt


@jax.jit
def _rein_forward_core(features_nchw, params):
    B, C, H, W = features_nchw.shape
    E = params["token_generator"].shape[-1]
    T = params["token_generator"].shape[1]
    assert E == C and E == H, "module's .expand() requires rein_dim == C == H"
    HW = H * W

    tok = params["token_generator"][0]                   # (T, E)
    wqkv = params["in_proj_weight"].T                    # (E, 3E): [Wq|Wk|Wv]
    bqkv = params["in_proj_bias"].reshape(1, 3 * E)
    wo = params["out_proj_weight"].T                     # (E, E)
    bo = params["out_proj_bias"].reshape(1, E)
    e3, cfull, b1f, w2, b2 = _prepare_constants(params, C, H, W)

    feat3 = features_nchw.reshape(B, C, HW)              # NCHW-flat, lane-dense HW
    bt = _pick_batch_block(B, C * HW * features_nchw.dtype.itemsize)
    nb = B // bt

    def const_spec(shape):
        return pl.BlockSpec(shape, lambda b: (0,) * len(shape))

    out3 = pl.pallas_call(
        _rein_fused_kernel,
        out_shape=jax.ShapeDtypeStruct((B, C, HW), features_nchw.dtype),
        grid=(nb,),
        in_specs=[
            const_spec((T, E)),          # tok        (resident across steps)
            const_spec((E, 3 * E)),      # wqkv
            const_spec((1, 3 * E)),      # bqkv
            const_spec((E, E)),          # wo
            const_spec((1, E)),          # bo
            const_spec((3, H, HW)),      # row-expansion matrices
            const_spec((3, C, HW)),      # column factors (BN folded)
            const_spec((C, 1)),          # b1f
            const_spec((C, C)),          # w2
            const_spec((C, 1)),          # b2
            pl.BlockSpec((bt, C, HW), lambda b: (b, 0, 0)),   # features (per step)
        ],
        out_specs=pl.BlockSpec((bt, C, HW), lambda b: (b, 0, 0)),
        input_output_aliases={10: 0},    # features buffer reused for the output
        compiler_params=pltpu.CompilerParams(
            dimension_semantics=("parallel",)),               # megacore batch split
    )(tok, wqkv, bqkv, wo, bo, e3, cfull, b1f, w2, b2, feat3)

    return out3.reshape(B, C, H, W)


def rein_forward(features_nchw, params, insertion_points, merge_ratio=0.5):
    if not insertion_points:
        return features_nchw
    del merge_ratio   # only used by the inconsistent rein_dim != C branch
    return _rein_forward_core(features_nchw, params)


# ----------------------------------------------------------------------------
# Pure-JAX reference (same math, NCHW, full per-channel conv) for verification.
# ----------------------------------------------------------------------------
def rein_forward_reference(features_nchw, params):
    P = jax.lax.Precision.HIGHEST
    B, C, H, W = features_nchw.shape
    E = C
    T = params["token_generator"].shape[1]
    nh, d = NUM_HEADS, E // NUM_HEADS

    tok = params["token_generator"][0]
    ipw, ipb = params["in_proj_weight"], params["in_proj_bias"]
    q = tok @ ipw[0:E].T + ipb[0:E]
    k = tok @ ipw[E:2 * E].T + ipb[E:2 * E]
    v = tok @ ipw[2 * E:].T + ipb[2 * E:]
    qh = q.reshape(T, nh, d).transpose(1, 0, 2)
    kh = k.reshape(T, nh, d).transpose(1, 0, 2)
    vh = v.reshape(T, nh, d).transpose(1, 0, 2)
    s = jnp.einsum("htd,hsd->hts", qh, kh, precision=P) / math.sqrt(d)
    p = jax.nn.softmax(s, axis=-1)
    ctx = jnp.einsum("hts,hsd->htd", p, vh, precision=P).transpose(1, 0, 2).reshape(T, E)
    out_t = ctx @ params["out_proj_weight"].T + params["out_proj_bias"]
    m = out_t.mean(axis=0)                                          # (E,)

    ts = jnp.broadcast_to(m[None, None, :, None], (B, C, H, W))     # value = m[h]
    tsp = jnp.pad(ts, ((0, 0), (0, 0), (1, 1), (1, 1)))
    w1 = params["conv1_weight"]
    conv = jnp.zeros((B, C, H, W), jnp.float32)
    for dy in range(3):
        for dx in range(3):
            conv = conv + jnp.einsum("bchw,oc->bohw",
                                     tsp[:, :, dy:dy + H, dx:dx + W],
                                     w1[:, :, dy, dx], precision=P)
    conv = conv + params["conv1_bias"][None, :, None, None]
    scale = params["bn_gamma"] / jnp.sqrt(params["bn_var"] + BN_EPS)
    bn = (conv - params["bn_mean"][None, :, None, None]) * scale[None, :, None, None] \
         + params["bn_beta"][None, :, None, None]
    relu = jnp.maximum(bn, 0.0)
    out2 = jnp.einsum("bchw,oc->bohw", relu, params["conv2_weight"][:, :, 0, 0],
                      precision=P) + params["conv2_bias"][None, :, None, None]
    att = jax.nn.sigmoid(out2)
    return features_nchw * att + features_nchw


if __name__ == "__main__":
    key = jax.random.PRNGKey(0)
    kp, kf = jax.random.split(key)

    # rein_dim == C == H is required by the module's .expand(); num_heads=8 divides 32.
    B, C, H, W = 2, 32, 32, 16
    params = init_params(kp, rein_dim=C, num_tokens=8)
    features = jax.random.normal(kf, (B, C, H, W), jnp.float32)     # NCHW like PyTorch

    # Reference first (the kernel aliases the feature buffer for its output).
    ref = rein_forward_reference(features, params)
    ref = jax.block_until_ready(ref)

    out = rein_forward(features, params, insertion_points=[0])
    out = jax.block_until_ready(out)

    assert out.shape == (B, C, H, W) and out.dtype == jnp.float32
    np.testing.assert_allclose(np.asarray(out), np.asarray(ref), rtol=2e-3, atol=2e-3)

    print("KERNEL_OK")
</pallas_src>

<mosaic_0001>
module attributes {stable_mosaic.version = 11 : i64} {
  func.func @_rein_fused_kernel(%arg0: i32, %arg1: memref<8x32xf32, #tpu.memory_space<vmem>>, %arg2: memref<32x96xf32, #tpu.memory_space<vmem>>, %arg3: memref<1x96xf32, #tpu.memory_space<vmem>>, %arg4: memref<32x32xf32, #tpu.memory_space<vmem>>, %arg5: memref<1x32xf32, #tpu.memory_space<vmem>>, %arg6: memref<3x32x512xf32, #tpu.memory_space<vmem>>, %arg7: memref<3x32x512xf32, #tpu.memory_space<vmem>>, %arg8: memref<32x1xf32, #tpu.memory_space<vmem>>, %arg9: memref<32x32xf32, #tpu.memory_space<vmem>>, %arg10: memref<32x1xf32, #tpu.memory_space<vmem>>, %arg11: memref<1x32x512xf32, #tpu.memory_space<vmem>>, %arg12: memref<1x32x512xf32, #tpu.memory_space<vmem>>) attributes {dimension_semantics = [#tpu.dimension_semantics<parallel>], iteration_bounds = array<i64: 2>, scalar_prefetch = 0 : i64, scratch_operands = 0 : i64, tpu.core_type = #tpu.core_type<tc>, window_params = [{pipeline_mode = #tpu.pipeline_mode<synchronous>, transform_indices = @transform_0, window_bounds = array<i64: 8, 32>}, {pipeline_mode = #tpu.pipeline_mode<synchronous>, transform_indices = @transform_1, window_bounds = array<i64: 32, 96>}, {pipeline_mode = #tpu.pipeline_mode<synchronous>, transform_indices = @transform_2, window_bounds = array<i64: 1, 96>}, {pipeline_mode = #tpu.pipeline_mode<synchronous>, transform_indices = @transform_3, window_bounds = array<i64: 32, 32>}, {pipeline_mode = #tpu.pipeline_mode<synchronous>, transform_indices = @transform_4, window_bounds = array<i64: 1, 32>}, {pipeline_mode = #tpu.pipeline_mode<synchronous>, transform_indices = @transform_5, window_bounds = array<i64: 3, 32, 512>}, {pipeline_mode = #tpu.pipeline_mode<synchronous>, transform_indices = @transform_6, window_bounds = array<i64: 3, 32, 512>}, {pipeline_mode = #tpu.pipeline_mode<synchronous>, transform_indices = @transform_7, window_bounds = array<i64: 32, 1>}, {pipeline_mode = #tpu.pipeline_mode<synchronous>, transform_indices = @transform_8, window_bounds = array<i64: 32, 32>}, {pipeline_mode = #tpu.pipeline_mode<synchronous>, transform_indices = @transform_9, window_bounds = array<i64: 32, 1>}, {transform_indices = @transform_10, window_bounds = array<i64: 1, 32, 512>}, {transform_indices = @transform_11, window_bounds = array<i64: 1, 32, 512>}]} {
    %c0 = arith.constant 0 : index
    %c0_0 = arith.constant 0 : index
    %0 = vector.load %arg1[%c0, %c0_0] : memref<8x32xf32, #tpu.memory_space<vmem>>, vector<8x32xf32>
    %c0_1 = arith.constant 0 : index
    %c0_2 = arith.constant 0 : index
    %1 = vector.load %arg2[%c0_1, %c0_2] : memref<32x96xf32, #tpu.memory_space<vmem>>, vector<32x96xf32>
    %cst = arith.constant dense<0.000000e+00> : vector<8x96xf32>
    %2 = tpu.matmul %0, %1, %cst {dimension_numbers = #tpu.dot_dimension_numbers<[1], [0], [0], [1], [0, 0, 1, 1], [], []>} : vector<8x32xf32>, vector<32x96xf32>, vector<8x96xf32> -> vector<8x96xf32>
    %c0_3 = arith.constant 0 : index
    %c0_4 = arith.constant 0 : index
    %3 = vector.load %arg3[%c0_3, %c0_4] : memref<1x96xf32, #tpu.memory_space<vmem>>, vector<1x96xf32>
    %4 = vector.broadcast %3 : vector<1x96xf32> to vector<8x96xf32>
    %5 = arith.addf %2, %4 : vector<8x96xf32>
    %6 = vector.extract_strided_slice %5 {offsets = [0, 0], sizes = [8, 32], strides = [1, 1]} : vector<8x96xf32> to vector<8x32xf32>
    %7 = vector.extract_strided_slice %5 {offsets = [0, 32], sizes = [8, 32], strides = [1, 1]} : vector<8x96xf32> to vector<8x32xf32>
    %8 = vector.extract_strided_slice %5 {offsets = [0, 64], sizes = [8, 32], strides = [1, 1]} : vector<8x96xf32> to vector<8x32xf32>
    %9 = vector.extract_strided_slice %6 {offsets = [0, 0], sizes = [8, 4], strides = [1, 1]} : vector<8x32xf32> to vector<8x4xf32>
    %10 = vector.extract_strided_slice %7 {offsets = [0, 0], sizes = [8, 4], strides = [1, 1]} : vector<8x32xf32> to vector<8x4xf32>
    %11 = vector.extract_strided_slice %8 {offsets = [0, 0], sizes = [8, 4], strides = [1, 1]} : vector<8x32xf32> to vector<8x4xf32>
    %cst_5 = arith.constant dense<0.000000e+00> : vector<8x8xf32>
    %12 = tpu.matmul %9, %10, %cst_5 {dimension_numbers = #tpu.dot_dimension_numbers<[1], [1], [0], [0], [0, 0, 1, 0], [], []>} : vector<8x4xf32>, vector<8x4xf32>, vector<8x8xf32> -> vector<8x8xf32>
    %cst_6 = arith.constant 5.000000e-01 : f32
    %13 = vector.broadcast %cst_6 : f32 to vector<8x8xf32>
    %14 = arith.mulf %12, %13 : vector<8x8xf32>
    %cst_7 = arith.constant dense<0xFF800000> : vector<8xf32>
    %15 = vector.multi_reduction <maximumf>, %14, %cst_7 [1] : vector<8x8xf32> to vector<8xf32>
    %cst_8 = arith.constant 0xFF800000 : f32
    %16 = vector.broadcast %cst_8 : f32 to vector<8xf32>
    %17 = arith.maximumf %16, %15 : vector<8xf32>
    %18 = vector.shape_cast %17 : vector<8xf32> to vector<8x1xf32>
    %19 = vector.broadcast %18 : vector<8x1xf32> to vector<8x8xf32>
    %20 = arith.subf %14, %19 : vector<8x8xf32>
    %21 = math.exp %20 : vector<8x8xf32>
    %cst_9 = arith.constant dense<0.000000e+00> : vector<8xf32>
    %22 = vector.multi_reduction <add>, %21, %cst_9 [1] : vector<8x8xf32> to vector<8xf32>
    %23 = vector.shape_cast %22 : vector<8xf32> to vector<8x1xf32>
    %24 = vector.broadcast %23 : vector<8x1xf32> to vector<8x8xf32>
    %25 = arith.divf %21, %24 : vector<8x8xf32>
    %cst_10 = arith.constant dense<0.000000e+00> : vector<8xf32>
    %26 = vector.multi_reduction <add>, %25, %cst_10 [0] : vector<8x8xf32> to vector<8xf32>
    %27 = vector.shape_cast %26 : vector<8xf32> to vector<1x8xf32>
    %cst_11 = arith.constant 8.000000e+00 : f32
    %28 = vector.broadcast %cst_11 : f32 to vector<1x8xf32>
    %29 = arith.divf %27, %28 : vector<1x8xf32>
    %cst_12 = arith.constant dense<0.000000e+00> : vector<1x4xf32>
    %30 = tpu.matmul %29, %11, %cst_12 {dimension_numbers = #tpu.dot_dimension_numbers<[1], [0], [0], [1], [0, 0, 1, 1], [], []>} : vector<1x8xf32>, vector<8x4xf32>, vector<1x4xf32> -> vector<1x4xf32>
    %31 = vector.extract_strided_slice %6 {offsets = [0, 4], sizes = [8, 4], strides = [1, 1]} : vector<8x32xf32> to vector<8x4xf32>
    %32 = vector.extract_strided_slice %7 {offsets = [0, 4], sizes = [8, 4], strides = [1, 1]} : vector<8x32xf32> to vector<8x4xf32>
    %33 = vector.extract_strided_slice %8 {offsets = [0, 4], sizes = [8, 4], strides = [1, 1]} : vector<8x32xf32> to vector<8x4xf32>
    %cst_13 = arith.constant dense<0.000000e+00> : vector<8x8xf32>
    %34 = tpu.matmul %31, %32, %cst_13 {dimension_numbers = #tpu.dot_dimension_numbers<[1], [1], [0], [0], [0, 0, 1, 0], [], []>} : vector<8x4xf32>, vector<8x4xf32>, vector<8x8xf32> -> vector<8x8xf32>
    %cst_14 = arith.constant 5.000000e-01 : f32
    %35 = vector.broadcast %cst_14 : f32 to vector<8x8xf32>
    %36 = arith.mulf %34, %35 : vector<8x8xf32>
    %cst_15 = arith.constant dense<0xFF800000> : vector<8xf32>
    %37 = vector.multi_reduction <maximumf>, %36, %cst_15 [1] : vector<8x8xf32> to vector<8xf32>
    %cst_16 = arith.constant 0xFF800000 : f32
    %38 = vector.broadcast %cst_16 : f32 to vector<8xf32>
    %39 = arith.maximumf %38, %37 : vector<8xf32>
    %40 = vector.shape_cast %39 : vector<8xf32> to vector<8x1xf32>
    %41 = vector.broadcast %40 : vector<8x1xf32> to vector<8x8xf32>
    %42 = arith.subf %36, %41 : vector<8x8xf32>
    %43 = math.exp %42 : vector<8x8xf32>
    %cst_17 = arith.constant dense<0.000000e+00> : vector<8xf32>
    %44 = vector.multi_reduction <add>, %43, %cst_17 [1] : vector<8x8xf32> to vector<8xf32>
    %45 = vector.shape_cast %44 : vector<8xf32> to vector<8x1xf32>
    %46 = vector.broadcast %45 : vector<8x1xf32> to vector<8x8xf32>
    %47 = arith.divf %43, %46 : vector<8x8xf32>
    %cst_18 = arith.constant dense<0.000000e+00> : vector<8xf32>
    %48 = vector.multi_reduction <add>, %47, %cst_18 [0] : vector<8x8xf32> to vector<8xf32>
    %49 = vector.shape_cast %48 : vector<8xf32> to vector<1x8xf32>
    %cst_19 = arith.constant 8.000000e+00 : f32
    %50 = vector.broadcast %cst_19 : f32 to vector<1x8xf32>
    %51 = arith.divf %49, %50 : vector<1x8xf32>
    %cst_20 = arith.constant dense<0.000000e+00> : vector<1x4xf32>
    %52 = tpu.matmul %51, %33, %cst_20 {dimension_numbers = #tpu.dot_dimension_numbers<[1], [0], [0], [1], [0, 0, 1, 1], [], []>} : vector<1x8xf32>, vector<8x4xf32>, vector<1x4xf32> -> vector<1x4xf32>
    %53 = vector.extract_strided_slice %6 {offsets = [0, 8], sizes = [8, 4], strides = [1, 1]} : vector<8x32xf32> to vector<8x4xf32>
    %54 = vector.extract_strided_slice %7 {offsets = [0, 8], sizes = [8, 4], strides = [1, 1]} : vector<8x32xf32> to vector<8x4xf32>
    %55 = vector.extract_strided_slice %8 {offsets = [0, 8], sizes = [8, 4], strides = [1, 1]} : vector<8x32xf32> to vector<8x4xf32>
    %cst_21 = arith.constant dense<0.000000e+00> : vector<8x8xf32>
    %56 = tpu.matmul %53, %54, %cst_21 {dimension_numbers = #tpu.dot_dimension_numbers<[1], [1], [0], [0], [0, 0, 1, 0], [], []>} : vector<8x4xf32>, vector<8x4xf32>, vector<8x8xf32> -> vector<8x8xf32>
    %cst_22 = arith.constant 5.000000e-01 : f32
    %57 = vector.broadcast %cst_22 : f32 to vector<8x8xf32>
    %58 = arith.mulf %56, %57 : vector<8x8xf32>
    %cst_23 = arith.constant dense<0xFF800000> : vector<8xf32>
    %59 = vector.multi_reduction <maximumf>, %58, %cst_23 [1] : vector<8x8xf32> to vector<8xf32>
    %cst_24 = arith.constant 0xFF800000 : f32
    %60 = vector.broadcast %cst_24 : f32 to vector<8xf32>
    %61 = arith.maximumf %60, %59 : vector<8xf32>
    %62 = vector.shape_cast %61 : vector<8xf32> to vector<8x1xf32>
    %63 = vector.broadcast %62 : vector<8x1xf32> to vector<8x8xf32>
    %64 = arith.subf %58, %63 : vector<8x8xf32>
    %65 = math.exp %64 : vector<8x8xf32>
    %cst_25 = arith.constant dense<0.000000e+00> : vector<8xf32>
    %66 = vector.multi_reduction <add>, %65, %cst_25 [1] : vector<8x8xf32> to vector<8xf32>
    %67 = vector.shape_cast %66 : vector<8xf32> to vector<8x1xf32>
    %68 = vector.broadcast %67 : vector<8x1xf32> to vector<8x8xf32>
    %69 = arith.divf %65, %68 : vector<8x8xf32>
    %cst_26 = arith.constant dense<0.000000e+00> : vector<8xf32>
    %70 = vector.multi_reduction <add>, %69, %cst_26 [0] : vector<8x8xf32> to vector<8xf32>
    %71 = vector.shape_cast %70 : vector<8xf32> to vector<1x8xf32>
    %cst_27 = arith.constant 8.000000e+00 : f32
    %72 = vector.broadcast %cst_27 : f32 to vector<1x8xf32>
    %73 = arith.divf %71, %72 : vector<1x8xf32>
    %cst_28 = arith.constant dense<0.000000e+00> : vector<1x4xf32>
    %74 = tpu.matmul %73, %55, %cst_28 {dimension_numbers = #tpu.dot_dimension_numbers<[1], [0], [0], [1], [0, 0, 1, 1], [], []>} : vector<1x8xf32>, vector<8x4xf32>, vector<1x4xf32> -> vector<1x4xf32>
    %75 = vector.extract_strided_slice %6 {offsets = [0, 12], sizes = [8, 4], strides = [1, 1]} : vector<8x32xf32> to vector<8x4xf32>
    %76 = vector.extract_strided_slice %7 {offsets = [0, 12], sizes = [8, 4], strides = [1, 1]} : vector<8x32xf32> to vector<8x4xf32>
    %77 = vector.extract_strided_slice %8 {offsets = [0, 12], sizes = [8, 4], strides = [1, 1]} : vector<8x32xf32> to vector<8x4xf32>
    %cst_29 = arith.constant dense<0.000000e+00> : vector<8x8xf32>
    %78 = tpu.matmul %75, %76, %cst_29 {dimension_numbers = #tpu.dot_dimension_numbers<[1], [1], [0], [0], [0, 0, 1, 0], [], []>} : vector<8x4xf32>, vector<8x4xf32>, vector<8x8xf32> -> vector<8x8xf32>
    %cst_30 = arith.constant 5.000000e-01 : f32
    %79 = vector.broadcast %cst_30 : f32 to vector<8x8xf32>
    %80 = arith.mulf %78, %79 : vector<8x8xf32>
    %cst_31 = arith.constant dense<0xFF800000> : vector<8xf32>
    %81 = vector.multi_reduction <maximumf>, %80, %cst_31 [1] : vector<8x8xf32> to vector<8xf32>
    %cst_32 = arith.constant 0xFF800000 : f32
    %82 = vector.broadcast %cst_32 : f32 to vector<8xf32>
    %83 = arith.maximumf %82, %81 : vector<8xf32>
    %84 = vector.shape_cast %83 : vector<8xf32> to vector<8x1xf32>
    %85 = vector.broadcast %84 : vector<8x1xf32> to vector<8x8xf32>
    %86 = arith.subf %80, %85 : vector<8x8xf32>
    %87 = math.exp %86 : vector<8x8xf32>
    %cst_33 = arith.constant dense<0.000000e+00> : vector<8xf32>
    %88 = vector.multi_reduction <add>, %87, %cst_33 [1] : vector<8x8xf32> to vector<8xf32>
    %89 = vector.shape_cast %88 : vector<8xf32> to vector<8x1xf32>
    %90 = vector.broadcast %89 : vector<8x1xf32> to vector<8x8xf32>
    %91 = arith.divf %87, %90 : vector<8x8xf32>
    %cst_34 = arith.constant dense<0.000000e+00> : vector<8xf32>
    %92 = vector.multi_reduction <add>, %91, %cst_34 [0] : vector<8x8xf32> to vector<8xf32>
    %93 = vector.shape_cast %92 : vector<8xf32> to vector<1x8xf32>
    %cst_35 = arith.constant 8.000000e+00 : f32
    %94 = vector.broadcast %cst_35 : f32 to vector<1x8xf32>
    %95 = arith.divf %93, %94 : vector<1x8xf32>
    %cst_36 = arith.constant dense<0.000000e+00> : vector<1x4xf32>
    %96 = tpu.matmul %95, %77, %cst_36 {dimension_numbers = #tpu.dot_dimension_numbers<[1], [0], [0], [1], [0, 0, 1, 1], [], []>} : vector<1x8xf32>, vector<8x4xf32>, vector<1x4xf32> -> vector<1x4xf32>
    %97 = vector.extract_strided_slice %6 {offsets = [0, 16], sizes = [8, 4], strides = [1, 1]} : vector<8x32xf32> to vector<8x4xf32>
    %98 = vector.extract_strided_slice %7 {offsets = [0, 16], sizes = [8, 4], strides = [1, 1]} : vector<8x32xf32> to vector<8x4xf32>
    %99 = vector.extract_strided_slice %8 {offsets = [0, 16], sizes = [8, 4], strides = [1, 1]} : vector<8x32xf32> to vector<8x4xf32>
    %cst_37 = arith.constant dense<0.000000e+00> : vector<8x8xf32>
    %100 = tpu.matmul %97, %98, %cst_37 {dimension_numbers = #tpu.dot_dimension_numbers<[1], [1], [0], [0], [0, 0, 1, 0], [], []>} : vector<8x4xf32>, vector<8x4xf32>, vector<8x8xf32> -> vector<8x8xf32>
    %cst_38 = arith.constant 5.000000e-01 : f32
    %101 = vector.broadcast %cst_38 : f32 to vector<8x8xf32>
    %102 = arith.mulf %100, %101 : vector<8x8xf32>
    %cst_39 = arith.constant dense<0xFF800000> : vector<8xf32>
    %103 = vector.multi_reduction <maximumf>, %102, %cst_39 [1] : vector<8x8xf32> to vector<8xf32>
    %cst_40 = arith.constant 0xFF800000 : f32
    %104 = vector.broadcast %cst_40 : f32 to vector<8xf32>
    %105 = arith.maximumf %104, %103 : vector<8xf32>
    %106 = vector.shape_cast %105 : vector<8xf32> to vector<8x1xf32>
    %107 = vector.broadcast %106 : vector<8x1xf32> to vector<8x8xf32>
    %108 = arith.subf %102, %107 : vector<8x8xf32>
    %109 = math.exp %108 : vector<8x8xf32>
    %cst_41 = arith.constant dense<0.000000e+00> : vector<8xf32>
    %110 = vector.multi_reduction <add>, %109, %cst_41 [1] : vector<8x8xf32> to vector<8xf32>
    %111 = vector.shape_cast %110 : vector<8xf32> to vector<8x1xf32>
    %112 = vector.broadcast %111 : vector<8x1xf32> to vector<8x8xf32>
    %113 = arith.divf %109, %112 : vector<8x8xf32>
    %cst_42 = arith.constant dense<0.000000e+00> : vector<8xf32>
    %114 = vector.multi_reduction <add>, %113, %cst_42 [0] : vector<8x8xf32> to vector<8xf32>
    %115 = vector.shape_cast %114 : vector<8xf32> to vector<1x8xf32>
    %cst_43 = arith.constant 8.000000e+00 : f32
    %116 = vector.broadcast %cst_43 : f32 to vector<1x8xf32>
    %117 = arith.divf %115, %116 : vector<1x8xf32>
    %cst_44 = arith.constant dense<0.000000e+00> : vector<1x4xf32>
    %118 = tpu.matmul %117, %99, %cst_44 {dimension_numbers = #tpu.dot_dimension_numbers<[1], [0], [0], [1], [0, 0, 1, 1], [], []>} : vector<1x8xf32>, vector<8x4xf32>, vector<1x4xf32> -> vector<1x4xf32>
    %119 = vector.extract_strided_slice %6 {offsets = [0, 20], sizes = [8, 4], strides = [1, 1]} : vector<8x32xf32> to vector<8x4xf32>
    %120 = vector.extract_strided_slice %7 {offsets = [0, 20], sizes = [8, 4], strides = [1, 1]} : vector<8x32xf32> to vector<8x4xf32>
    %121 = vector.extract_strided_slice %8 {offsets = [0, 20], sizes = [8, 4], strides = [1, 1]} : vector<8x32xf32> to vector<8x4xf32>
    %cst_45 = arith.constant dense<0.000000e+00> : vector<8x8xf32>
    %122 = tpu.matmul %119, %120, %cst_45 {dimension_numbers = #tpu.dot_dimension_numbers<[1], [1], [0], [0], [0, 0, 1, 0], [], []>} : vector<8x4xf32>, vector<8x4xf32>, vector<8x8xf32> -> vector<8x8xf32>
    %cst_46 = arith.constant 5.000000e-01 : f32
    %123 = vector.broadcast %cst_46 : f32 to vector<8x8xf32>
    %124 = arith.mulf %122, %123 : vector<8x8xf32>
    %cst_47 = arith.constant dense<0xFF800000> : vector<8xf32>
    %125 = vector.multi_reduction <maximumf>, %124, %cst_47 [1] : vector<8x8xf32> to vector<8xf32>
    %cst_48 = arith.constant 0xFF800000 : f32
    %126 = vector.broadcast %cst_48 : f32 to vector<8xf32>
    %127 = arith.maximumf %126, %125 : vector<8xf32>
    %128 = vector.shape_cast %127 : vector<8xf32> to vector<8x1xf32>
    %129 = vector.broadcast %128 : vector<8x1xf32> to vector<8x8xf32>
    %130 = arith.subf %124, %129 : vector<8x8xf32>
    %131 = math.exp %130 : vector<8x8xf32>
    %cst_49 = arith.constant dense<0.000000e+00> : vector<8xf32>
    %132 = vector.multi_reduction <add>, %131, %cst_49 [1] : vector<8x8xf32> to vector<8xf32>
    %133 = vector.shape_cast %132 : vector<8xf32> to vector<8x1xf32>
    %134 = vector.broadcast %133 : vector<8x1xf32> to vector<8x8xf32>
    %135 = arith.divf %131, %134 : vector<8x8xf32>
    %cst_50 = arith.constant dense<0.000000e+00> : vector<8xf32>
    %136 = vector.multi_reduction <add>, %135, %cst_50 [0] : vector<8x8xf32> to vector<8xf32>
    %137 = vector.shape_cast %136 : vector<8xf32> to vector<1x8xf32>
    %cst_51 = arith.constant 8.000000e+00 : f32
    %138 = vector.broadcast %cst_51 : f32 to vector<1x8xf32>
    %139 = arith.divf %137, %138 : vector<1x8xf32>
    %cst_52 = arith.constant dense<0.000000e+00> : vector<1x4xf32>
    %140 = tpu.matmul %139, %121, %cst_52 {dimension_numbers = #tpu.dot_dimension_numbers<[1], [0], [0], [1], [0, 0, 1, 1], [], []>} : vector<1x8xf32>, vector<8x4xf32>, vector<1x4xf32> -> vector<1x4xf32>
    %141 = vector.extract_strided_slice %6 {offsets = [0, 24], sizes = [8, 4], strides = [1, 1]} : vector<8x32xf32> to vector<8x4xf32>
    %142 = vector.extract_strided_slice %7 {offsets = [0, 24], sizes = [8, 4], strides = [1, 1]} : vector<8x32xf32> to vector<8x4xf32>
    %143 = vector.extract_strided_slice %8 {offsets = [0, 24], sizes = [8, 4], strides = [1, 1]} : vector<8x32xf32> to vector<8x4xf32>
    %cst_53 = arith.constant dense<0.000000e+00> : vector<8x8xf32>
    %144 = tpu.matmul %141, %142, %cst_53 {dimension_numbers = #tpu.dot_dimension_numbers<[1], [1], [0], [0], [0, 0, 1, 0], [], []>} : vector<8x4xf32>, vector<8x4xf32>, vector<8x8xf32> -> vector<8x8xf32>
    %cst_54 = arith.constant 5.000000e-01 : f32
    %145 = vector.broadcast %cst_54 : f32 to vector<8x8xf32>
    %146 = arith.mulf %144, %145 : vector<8x8xf32>
    %cst_55 = arith.constant dense<0xFF800000> : vector<8xf32>
    %147 = vector.multi_reduction <maximumf>, %146, %cst_55 [1] : vector<8x8xf32> to vector<8xf32>
    %cst_56 = arith.constant 0xFF800000 : f32
    %148 = vector.broadcast %cst_56 : f32 to vector<8xf32>
    %149 = arith.maximumf %148, %147 : vector<8xf32>
    %150 = vector.shape_cast %149 : vector<8xf32> to vector<8x1xf32>
    %151 = vector.broadcast %150 : vector<8x1xf32> to vector<8x8xf32>
    %152 = arith.subf %146, %151 : vector<8x8xf32>
    %153 = math.exp %152 : vector<8x8xf32>
    %cst_57 = arith.constant dense<0.000000e+00> : vector<8xf32>
    %154 = vector.multi_reduction <add>, %153, %cst_57 [1] : vector<8x8xf32> to vector<8xf32>
    %155 = vector.shape_cast %154 : vector<8xf32> to vector<8x1xf32>
    %156 = vector.broadcast %155 : vector<8x1xf32> to vector<8x8xf32>
    %157 = arith.divf %153, %156 : vector<8x8xf32>
    %cst_58 = arith.constant dense<0.000000e+00> : vector<8xf32>
    %158 = vector.multi_reduction <add>, %157, %cst_58 [0] : vector<8x8xf32> to vector<8xf32>
    %159 = vector.shape_cast %158 : vector<8xf32> to vector<1x8xf32>
    %cst_59 = arith.constant 8.000000e+00 : f32
    %160 = vector.broadcast %cst_59 : f32 to vector<1x8xf32>
    %161 = arith.divf %159, %160 : vector<1x8xf32>
    %cst_60 = arith.constant dense<0.000000e+00> : vector<1x4xf32>
    %162 = tpu.matmul %161, %143, %cst_60 {dimension_numbers = #tpu.dot_dimension_numbers<[1], [0], [0], [1], [0, 0, 1, 1], [], []>} : vector<1x8xf32>, vector<8x4xf32>, vector<1x4xf32> -> vector<1x4xf32>
    %163 = vector.extract_strided_slice %6 {offsets = [0, 28], sizes = [8, 4], strides = [1, 1]} : vector<8x32xf32> to vector<8x4xf32>
    %164 = vector.extract_strided_slice %7 {offsets = [0, 28], sizes = [8, 4], strides = [1, 1]} : vector<8x32xf32> to vector<8x4xf32>
    %165 = vector.extract_strided_slice %8 {offsets = [0, 28], sizes = [8, 4], strides = [1, 1]} : vector<8x32xf32> to vector<8x4xf32>
    %cst_61 = arith.constant dense<0.000000e+00> : vector<8x8xf32>
    %166 = tpu.matmul %163, %164, %cst_61 {dimension_numbers = #tpu.dot_dimension_numbers<[1], [1], [0], [0], [0, 0, 1, 0], [], []>} : vector<8x4xf32>, vector<8x4xf32>, vector<8x8xf32> -> vector<8x8xf32>
    %cst_62 = arith.constant 5.000000e-01 : f32
    %167 = vector.broadcast %cst_62 : f32 to vector<8x8xf32>
    %168 = arith.mulf %166, %167 : vector<8x8xf32>
    %cst_63 = arith.constant dense<0xFF800000> : vector<8xf32>
    %169 = vector.multi_reduction <maximumf>, %168, %cst_63 [1] : vector<8x8xf32> to vector<8xf32>
    %cst_64 = arith.constant 0xFF800000 : f32
    %170 = vector.broadcast %cst_64 : f32 to vector<8xf32>
    %171 = arith.maximumf %170, %169 : vector<8xf32>
    %172 = vector.shape_cast %171 : vector<8xf32> to vector<8x1xf32>
    %173 = vector.broadcast %172 : vector<8x1xf32> to vector<8x8xf32>
    %174 = arith.subf %168, %173 : vector<8x8xf32>
    %175 = math.exp %174 : vector<8x8xf32>
    %cst_65 = arith.constant dense<0.000000e+00> : vector<8xf32>
    %176 = vector.multi_reduction <add>, %175, %cst_65 [1] : vector<8x8xf32> to vector<8xf32>
    %177 = vector.shape_cast %176 : vector<8xf32> to vector<8x1xf32>
    %178 = vector.broadcast %177 : vector<8x1xf32> to vector<8x8xf32>
    %179 = arith.divf %175, %178 : vector<8x8xf32>
    %cst_66 = arith.constant dense<0.000000e+00> : vector<8xf32>
    %180 = vector.multi_reduction <add>, %179, %cst_66 [0] : vector<8x8xf32> to vector<8xf32>
    %181 = vector.shape_cast %180 : vector<8xf32> to vector<1x8xf32>
    %cst_67 = arith.constant 8.000000e+00 : f32
    %182 = vector.broadcast %cst_67 : f32 to vector<1x8xf32>
    %183 = arith.divf %181, %182 : vector<1x8xf32>
    %cst_68 = arith.constant dense<0.000000e+00> : vector<1x4xf32>
    %184 = tpu.matmul %183, %165, %cst_68 {dimension_numbers = #tpu.dot_dimension_numbers<[1], [0], [0], [1], [0, 0, 1, 1], [], []>} : vector<1x8xf32>, vector<8x4xf32>, vector<1x4xf32> -> vector<1x4xf32>
    %185 = tpu.concatenate %30, %52, %74, %96, %118, %140, %162, %184 in 1 : vector<1x4xf32>, vector<1x4xf32>, vector<1x4xf32>, vector<1x4xf32>, vector<1x4xf32>, vector<1x4xf32>, vector<1x4xf32>, vector<1x4xf32> -> vector<1x32xf32>
    %c0_69 = arith.constant 0 : index
    %c0_70 = arith.constant 0 : index
    %186 = vector.load %arg4[%c0_69, %c0_70] : memref<32x32xf32, #tpu.memory_space<vmem>>, vector<32x32xf32>
    %cst_71 = arith.constant dense<0.000000e+00> : vector<1x32xf32>
    %187 = tpu.matmul %185, %186, %cst_71 {dimension_numbers = #tpu.dot_dimension_numbers<[1], [0], [0], [1], [0, 0, 1, 1], [], []>} : vector<1x32xf32>, vector<32x32xf32>, vector<1x32xf32> -> vector<1x32xf32>
    %c0_72 = arith.constant 0 : index
    %c0_73 = arith.constant 0 : index
    %188 = vector.load %arg5[%c0_72, %c0_73] : memref<1x32xf32, #tpu.memory_space<vmem>>, vector<1x32xf32>
    %189 = arith.addf %187, %188 : vector<1x32xf32>
    %c0_74 = arith.constant 0 : index
    %c0_75 = arith.constant 0 : index
    %c0_76 = arith.constant 0 : index
    %190 = vector.load %arg6[%c0_74, %c0_75, %c0_76] : memref<3x32x512xf32, #tpu.memory_space<vmem>>, vector<1x32x512xf32>
    %191 = vector.shape_cast %190 : vector<1x32x512xf32> to vector<32x512xf32>
    %cst_77 = arith.constant dense<0.000000e+00> : vector<1x512xf32>
    %192 = tpu.matmul %189, %191, %cst_77 {dimension_numbers = #tpu.dot_dimension_numbers<[1], [0], [0], [1], [0, 0, 1, 1], [], []>} : vector<1x32xf32>, vector<32x512xf32>, vector<1x512xf32> -> vector<1x512xf32>
    %c1 = arith.constant 1 : index
    %c0_78 = arith.constant 0 : index
    %c0_79 = arith.constant 0 : index
    %193 = vector.load %arg6[%c1, %c0_78, %c0_79] : memref<3x32x512xf32, #tpu.memory_space<vmem>>, vector<1x32x512xf32>
    %194 = vector.shape_cast %193 : vector<1x32x512xf32> to vector<32x512xf32>
    %cst_80 = arith.constant dense<0.000000e+00> : vector<1x512xf32>
    %195 = tpu.matmul %189, %194, %cst_80 {dimension_numbers = #tpu.dot_dimension_numbers<[1], [0], [0], [1], [0, 0, 1, 1], [], []>} : vector<1x32xf32>, vector<32x512xf32>, vector<1x512xf32> -> vector<1x512xf32>
    %c2 = arith.constant 2 : index
    %c0_81 = arith.constant 0 : index
    %c0_82 = arith.constant 0 : index
    %196 = vector.load %arg6[%c2, %c0_81, %c0_82] : memref<3x32x512xf32, #tpu.memory_space<vmem>>, vector<1x32x512xf32>
    %197 = vector.shape_cast %196 : vector<1x32x512xf32> to vector<32x512xf32>
    %cst_83 = arith.constant dense<0.000000e+00> : vector<1x512xf32>
    %198 = tpu.matmul %189, %197, %cst_83 {dimension_numbers = #tpu.dot_dimension_numbers<[1], [0], [0], [1], [0, 0, 1, 1], [], []>} : vector<1x32xf32>, vector<32x512xf32>, vector<1x512xf32> -> vector<1x512xf32>
    %c0_84 = arith.constant 0 : index
    %c0_85 = arith.constant 0 : index
    %c0_86 = arith.constant 0 : index
    %199 = vector.load %arg7[%c0_84, %c0_85, %c0_86] : memref<3x32x512xf32, #tpu.memory_space<vmem>>, vector<1x32x512xf32>
    %200 = vector.shape_cast %199 : vector<1x32x512xf32> to vector<32x512xf32>
    %201 = vector.broadcast %192 : vector<1x512xf32> to vector<32x512xf32>
    %202 = arith.mulf %200, %201 : vector<32x512xf32>
    %c1_87 = arith.constant 1 : index
    %c0_88 = arith.constant 0 : index
    %c0_89 = arith.constant 0 : index
    %203 = vector.load %arg7[%c1_87, %c0_88, %c0_89] : memref<3x32x512xf32, #tpu.memory_space<vmem>>, vector<1x32x512xf32>
    %204 = vector.shape_cast %203 : vector<1x32x512xf32> to vector<32x512xf32>
    %205 = vector.broadcast %195 : vector<1x512xf32> to vector<32x512xf32>
    %206 = arith.mulf %204, %205 : vector<32x512xf32>
    %207 = arith.addf %202, %206 : vector<32x512xf32>
    %c2_90 = arith.constant 2 : index
    %c0_91 = arith.constant 0 : index
    %c0_92 = arith.constant 0 : index
    %208 = vector.load %arg7[%c2_90, %c0_91, %c0_92] : memref<3x32x512xf32, #tpu.memory_space<vmem>>, vector<1x32x512xf32>
    %209 = vector.shape_cast %208 : vector<1x32x512xf32> to vector<32x512xf32>
    %210 = vector.broadcast %198 : vector<1x512xf32> to vector<32x512xf32>
    %211 = arith.mulf %209, %210 : vector<32x512xf32>
    %212 = arith.addf %207, %211 : vector<32x512xf32>
    %c0_93 = arith.constant 0 : index
    %c0_94 = arith.constant 0 : index
    %213 = vector.load %arg8[%c0_93, %c0_94] : memref<32x1xf32, #tpu.memory_space<vmem>>, vector<32x1xf32>
    %214 = vector.broadcast %213 : vector<32x1xf32> to vector<32x512xf32>
    %215 = arith.addf %212, %214 : vector<32x512xf32>
    %cst_95 = arith.constant 0.000000e+00 : f32
    %216 = vector.broadcast %cst_95 : f32 to vector<32x512xf32>
    %217 = arith.maximumf %215, %216 : vector<32x512xf32>
    %c0_96 = arith.constant 0 : index
    %c0_97 = arith.constant 0 : index
    %218 = vector.load %arg9[%c0_96, %c0_97] : memref<32x32xf32, #tpu.memory_space<vmem>>, vector<32x32xf32>
    %cst_98 = arith.constant dense<0.000000e+00> : vector<32x512xf32>
    %219 = tpu.matmul %218, %217, %cst_98 {dimension_numbers = #tpu.dot_dimension_numbers<[1], [0], [0], [1], [0, 0, 1, 1], [], []>} : vector<32x32xf32>, vector<32x512xf32>, vector<32x512xf32> -> vector<32x512xf32>
    %c0_99 = arith.constant 0 : index
    %c0_100 = arith.constant 0 : index
    %220 = vector.load %arg10[%c0_99, %c0_100] : memref<32x1xf32, #tpu.memory_space<vmem>>, vector<32x1xf32>
    %221 = vector.broadcast %220 : vector<32x1xf32> to vector<32x512xf32>
    %222 = arith.addf %219, %221 : vector<32x512xf32>
    %223 = arith.negf %222 : vector<32x512xf32>
    %224 = math.exp %223 : vector<32x512xf32>
    %cst_101 = arith.constant 1.000000e+00 : f32
    %225 = vector.broadcast %cst_101 : f32 to vector<32x512xf32>
    %226 = arith.addf %225, %224 : vector<32x512xf32>
    %227 = arith.divf %225, %226 : vector<32x512xf32>
    %cst_102 = arith.constant 1.000000e+00 : f32
    %228 = vector.broadcast %cst_102 : f32 to vector<32x512xf32>
    %229 = arith.addf %227, %228 : vector<32x512xf32>
    %c0_103 = arith.constant 0 : index
    %c0_104 = arith.constant 0 : index
    %c0_105 = arith.constant 0 : index
    %230 = vector.load %arg11[%c0_103, %c0_104, %c0_105] : memref<1x32x512xf32, #tpu.memory_space<vmem>>, vector<1x32x512xf32>
    %231 = vector.shape_cast %229 : vector<32x512xf32> to vector<1x32x512xf32>
    %232 = arith.mulf %230, %231 : vector<1x32x512xf32>
    %c0_106 = arith.constant 0 : index
    %c0_107 = arith.constant 0 : index
    %c0_108 = arith.constant 0 : index
    %233 = vector.load %arg12[%c0_106, %c0_107, %c0_108] : memref<1x32x512xf32, #tpu.memory_space<vmem>>, vector<1x32x512xf32>
    tpu.vector_store %arg12[%c0_106, %c0_107, %c0_108], %232 {strides = array<i32>} : memref<1x32x512xf32, #tpu.memory_space<vmem>>, vector<1x32x512xf32>,
    return
  }
  func.func @transform_0(%arg0: i32) -> (i32, i32) {
    %c0_i32 = arith.constant 0 : i32
    %c0_i32_0 = arith.constant 0 : i32
    %c0_i32_1 = arith.constant 0 : i32
    return %c0_i32, %c0_i32_0 : i32, i32
  }
  func.func @transform_1(%arg0: i32) -> (i32, i32) {
    %c0_i32 = arith.constant 0 : i32
    %c0_i32_0 = arith.constant 0 : i32
    %c0_i32_1 = arith.constant 0 : i32
    return %c0_i32, %c0_i32_0 : i32, i32
  }
  func.func @transform_2(%arg0: i32) -> (i32, i32) {
    %c0_i32 = arith.constant 0 : i32
    %c0_i32_0 = arith.constant 0 : i32
    %c0_i32_1 = arith.constant 0 : i32
    return %c0_i32, %c0_i32_0 : i32, i32
  }
  func.func @transform_3(%arg0: i32) -> (i32, i32) {
    %c0_i32 = arith.constant 0 : i32
    %c0_i32_0 = arith.constant 0 : i32
    %c0_i32_1 = arith.constant 0 : i32
    return %c0_i32, %c0_i32_0 : i32, i32
  }
  func.func @transform_4(%arg0: i32) -> (i32, i32) {
    %c0_i32 = arith.constant 0 : i32
    %c0_i32_0 = arith.constant 0 : i32
    %c0_i32_1 = arith.constant 0 : i32
    return %c0_i32, %c0_i32_0 : i32, i32
  }
  func.func @transform_5(%arg0: i32) -> (i32, i32, i32) {
    %c0_i32 = arith.constant 0 : i32
    %c0_i32_0 = arith.constant 0 : i32
    %c0_i32_1 = arith.constant 0 : i32
    %c0_i32_2 = arith.constant 0 : i32
    return %c0_i32, %c0_i32_0, %c0_i32_1 : i32, i32, i32
  }
  func.func @transform_6(%arg0: i32) -> (i32, i32, i32) {
    %c0_i32 = arith.constant 0 : i32
    %c0_i32_0 = arith.constant 0 : i32
    %c0_i32_1 = arith.constant 0 : i32
    %c0_i32_2 = arith.constant 0 : i32
    return %c0_i32, %c0_i32_0, %c0_i32_1 : i32, i32, i32
  }
  func.func @transform_7(%arg0: i32) -> (i32, i32) {
    %c0_i32 = arith.constant 0 : i32
    %c0_i32_0 = arith.constant 0 : i32
    %c0_i32_1 = arith.constant 0 : i32
    return %c0_i32, %c0_i32_0 : i32, i32
  }
  func.func @transform_8(%arg0: i32) -> (i32, i32) {
    %c0_i32 = arith.constant 0 : i32
    %c0_i32_0 = arith.constant 0 : i32
    %c0_i32_1 = arith.constant 0 : i32
    return %c0_i32, %c0_i32_0 : i32, i32
  }
  func.func @transform_9(%arg0: i32) -> (i32, i32) {
    %c0_i32 = arith.constant 0 : i32
    %c0_i32_0 = arith.constant 0 : i32
    %c0_i32_1 = arith.constant 0 : i32
    return %c0_i32, %c0_i32_0 : i32, i32
  }
  func.func @transform_10(%arg0: i32) -> (i32, i32, i32) {
    %c0_i32 = arith.constant 0 : i32
    %c0_i32_0 = arith.constant 0 : i32
    %c0_i32_1 = arith.constant 0 : i32
    return %arg0, %c0_i32, %c0_i32_0 : i32, i32, i32
  }
  func.func @transform_11(%arg0: i32) -> (i32, i32, i32) {
    %c0_i32 = arith.constant 0 : i32
    %c0_i32_0 = arith.constant 0 : i32
    %c0_i32_1 = arith.constant 0 : i32
    return %arg0, %c0_i32, %c0_i32_0 : i32, i32, i32
  }
}

</mosaic_0001>

<llo_original>
// kernel: _rein_forward_core.1
$region0: #{_rein_forward_core.1}
  #allocation0 [shape = 'u32[]', space=smem, size = 0x4, offset = 0x4, fixed_abs, tag = 'smem constant byte address 0x4 - core index']
  #allocation1 [shape = 'u32[144,128]{1,0:T(1,128)}', space=vmem, size = 0x12000, scoped, tag = 'internal scratch']
  %s0 = inlined_call_operand.vmem [shape: f32[8,32], index: 0, kind: input, shape index: {}]
  %s1 = inlined_call_operand.vmem [shape: f32[32,96], index: 1, kind: input, shape index: {}]
  %s2 = inlined_call_operand.vmem [shape: f32[1,96], index: 2, kind: input, shape index: {}]
  %s3 = inlined_call_operand.vmem [shape: f32[32,32], index: 3, kind: input, shape index: {}]
  %s4 = inlined_call_operand.vmem [shape: f32[1,32], index: 4, kind: input, shape index: {}]
  %s5 = inlined_call_operand.vmem [shape: f32[3,32,512], index: 5, kind: input, shape index: {}]
  %s6 = inlined_call_operand.vmem [shape: f32[3,32,512], index: 6, kind: input, shape index: {}]
  %s7 = inlined_call_operand.vmem [shape: f32[32,1], index: 7, kind: input, shape index: {}]
  %s8 = inlined_call_operand.vmem [shape: f32[32,32], index: 8, kind: input, shape index: {}]
  %s9 = inlined_call_operand.vmem [shape: f32[32,1], index: 9, kind: input, shape index: {}]
  %s10 = inlined_call_operand.vmem [shape: f32[2,32,512], index: 10, kind: input, shape index: {}, may-alias: {10,11}]
  %s11 = inlined_call_operand.vmem [shape: f32[2,32,512], index: 11, kind: output, shape index: {}, may-alias: {10,11}]
  %s12 = sld [smem:[#allocation0]]
  $region77: #{_rein_forward_core.1} parent=0
    _
  %s14 = ssub.s32 1, %s12
  %s15 = scalar_select 0, %s14, %s12
  loop: start=0, step=1, limit=4
  $region2: #{_rein_forward_core.1} parent=0 // loop_pre_header
    _
  $region3: #{_rein_forward_core.1} parent=0 // loop_header
    %s17 = sphi 0, %s21
    %p18 = scmp.ge.s32.totalorder %s17, 4
    %s25 = sphi 0, %s25
    %s27 = sphi 0, %s25
    %s28 = sphi 0, %s27
    %s42 = sphi 0, %s28
    %s46 = sphi 0, %s46
    %s48 = sphi 0, %s46
    %s49 = sphi 0, %s48
    %s63 = sphi 0, %s49
    %s67 = sphi 0, %s67
    %s69 = sphi 0, %s67
    %s70 = sphi 0, %s69
    %s84 = sphi 0, %s70
    %s88 = sphi 0, %s88
    %s90 = sphi 0, %s88
    %s91 = sphi 0, %s90
    %s105 = sphi 0, %s91
    %s109 = sphi 0, %s109
    %s111 = sphi 0, %s109
    %s112 = sphi 0, %s111
    %s126 = sphi 0, %s112
    %s130 = sphi 0, %s130
    %s132 = sphi 0, %s130
    %s133 = sphi 0, %s132
    %s147 = sphi 0, %s133
    %s151 = sphi 0, %s151
    %s153 = sphi 0, %s151
    %s154 = sphi 0, %s153
    %s168 = sphi 0, %s154
    %s172 = sphi 0, %s172
    %s174 = sphi 0, %s172
    %s175 = sphi 0, %s174
    %s189 = sphi 0, %s175
    %s193 = sphi 0, %s193
    %s195 = sphi 0, %s193
    %s196 = sphi 0, %s195
    %s210 = sphi 0, %s196
    %s214 = sphi 0, %s214
    %s216 = sphi 0, %s214
    %s217 = sphi 0, %s216
    %s231 = sphi 0, %s217
    %s237 = sphi 0, %s239
    %s240 = sphi 0, %s237
    %s241 = sphi 0, %s240
    %s257 = sphi 0, %s241
    %s263 = sphi 0, %s265
    %s266 = sphi 0, %s263
    %s267 = sphi 0, %s266
    %s283 = sphi 0, %s267
  $region4: #{_rein_forward_core.1} parent=0 // loop_header_branch
    %20 = sbr.rel (%p18) target = $region8
  $region5: #{_rein_forward_core.1} parent=0 // loop_body
    %s22 = ssub.s32 %s17, 1
    %s23 = ssub.s32 %s17, 2
    %s24 = sadd.s32 %s17, 1
    %s26 = sadd.s32 %s25, 1
    %p29 = scmp.eq.s32.totalorder %s17, 1
    %p30 = scmp.ne.s32.totalorder %s25, %s27
    %p31 = scmp.eq.s32.totalorder %s17, 0
    %p32 = por %p30, %p31
    %p33 = scmp.ne.s32.totalorder %s25, %s27
    %p34 = scmp.eq.s32.totalorder %s22, 1
    %p35 = por %p33, %p34
    %p36 = scmp.ne.s32.totalorder %s27, %s28
    %p37 = scmp.eq.s32.totalorder %s22, 0
    %p38 = por %p36, %p37
    %p39 = scmp.ne.s32.totalorder %s27, %s28
    %p40 = scmp.eq.s32.totalorder %s23, 1
    %p41 = por %p39, %p40
    %p43 = scmp.ne.s32.totalorder %s28, %s42
    %p44 = scmp.eq.s32.totalorder %s23, 0
    %p45 = por %p43, %p44
    %s47 = sadd.s32 %s46, 1
    %p50 = scmp.eq.s32.totalorder %s17, 1
    %p51 = scmp.ne.s32.totalorder %s46, %s48
    %p52 = scmp.eq.s32.totalorder %s17, 0
    %p53 = por %p51, %p52
    %p54 = scmp.ne.s32.totalorder %s46, %s48
    %p55 = scmp.eq.s32.totalorder %s22, 1
    %p56 = por %p54, %p55
    %p57 = scmp.ne.s32.totalorder %s48, %s49
    %p58 = scmp.eq.s32.totalorder %s22, 0
    %p59 = por %p57, %p58
    %p60 = scmp.ne.s32.totalorder %s48, %s49
    %p61 = scmp.eq.s32.totalorder %s23, 1
    %p62 = por %p60, %p61
    %p64 = scmp.ne.s32.totalorder %s49, %s63
    %p65 = scmp.eq.s32.totalorder %s23, 0
    %p66 = por %p64, %p65
    %s68 = sadd.s32 %s67, 1
    %p71 = scmp.eq.s32.totalorder %s17, 1
    %p72 = scmp.ne.s32.totalorder %s67, %s69
    %p73 = scmp.eq.s32.totalorder %s17, 0
    %p74 = por %p72, %p73
    %p75 = scmp.ne.s32.totalorder %s67, %s69
    %p76 = scmp.eq.s32.totalorder %s22, 1
    %p77 = por %p75, %p76
    %p78 = scmp.ne.s32.totalorder %s69, %s70
    %p79 = scmp.eq.s32.totalorder %s22, 0
    %p80 = por %p78, %p79
    %p81 = scmp.ne.s32.totalorder %s69, %s70
    %p82 = scmp.eq.s32.totalorder %s23, 1
    %p83 = por %p81, %p82
    %p85 = scmp.ne.s32.totalorder %s70, %s84
    %p86 = scmp.eq.s32.totalorder %s23, 0
    %p87 = por %p85, %p86
    %s89 = sadd.s32 %s88, 1
    %p92 = scmp.eq.s32.totalorder %s17, 1
    %p93 = scmp.ne.s32.totalorder %s88, %s90
    %p94 = scmp.eq.s32.totalorder %s17, 0
    %p95 = por %p93, %p94
    %p96 = scmp.ne.s32.totalorder %s88, %s90
    %p97 = scmp.eq.s32.totalorder %s22, 1
    %p98 = por %p96, %p97
    %p99 = scmp.ne.s32.totalorder %s90, %s91
    %p100 = scmp.eq.s32.totalorder %s22, 0
    %p101 = por %p99, %p100
    %p102 = scmp.ne.s32.totalorder %s90, %s91
    %p103 = scmp.eq.s32.totalorder %s23, 1
    %p104 = por %p102, %p103
    %p106 = scmp.ne.s32.totalorder %s91, %s105
    %p107 = scmp.eq.s32.totalorder %s23, 0
    %p108 = por %p106, %p107
    %s110 = sadd.s32 %s109, 1
    %p113 = scmp.eq.s32.totalorder %s17, 1
    %p114 = scmp.ne.s32.totalorder %s109, %s111
    %p115 = scmp.eq.s32.totalorder %s17, 0
    %p116 = por %p114, %p115
    %p117 = scmp.ne.s32.totalorder %s109, %s111
    %p118 = scmp.eq.s32.totalorder %s22, 1
    %p119 = por %p117, %p118
    %p120 = scmp.ne.s32.totalorder %s111, %s112
    %p121 = scmp.eq.s32.totalorder %s22, 0
    %p122 = por %p120, %p121
    %p123 = scmp.ne.s32.totalorder %s111, %s112
    %p124 = scmp.eq.s32.totalorder %s23, 1
    %p125 = por %p123, %p124
    %p127 = scmp.ne.s32.totalorder %s112, %s126
    %p128 = scmp.eq.s32.totalorder %s23, 0
    %p129 = por %p127, %p128
    %s131 = sadd.s32 %s130, 1
    %p134 = scmp.eq.s32.totalorder %s17, 1
    %p135 = scmp.ne.s32.totalorder %s130, %s132
    %p136 = scmp.eq.s32.totalorder %s17, 0
    %p137 = por %p135, %p136
    %p138 = scmp.ne.s32.totalorder %s130, %s132
    %p139 = scmp.eq.s32.totalorder %s22, 1
    %p140 = por %p138, %p139
    %p141 = scmp.ne.s32.totalorder %s132, %s133
    %p142 = scmp.eq.s32.totalorder %s22, 0
    %p143 = por %p141, %p142
    %p144 = scmp.ne.s32.totalorder %s132, %s133
    %p145 = scmp.eq.s32.totalorder %s23, 1
    %p146 = por %p144, %p145
    %p148 = scmp.ne.s32.totalorder %s133, %s147
    %p149 = scmp.eq.s32.totalorder %s23, 0
    %p150 = por %p148, %p149
    %s152 = sadd.s32 %s151, 1
    %p155 = scmp.eq.s32.totalorder %s17, 1
    %p156 = scmp.ne.s32.totalorder %s151, %s153
    %p157 = scmp.eq.s32.totalorder %s17, 0
    %p158 = por %p156, %p157
    %p159 = scmp.ne.s32.totalorder %s151, %s153
    %p160 = scmp.eq.s32.totalorder %s22, 1
    %p161 = por %p159, %p160
    %p162 = scmp.ne.s32.totalorder %s153, %s154
    %p163 = scmp.eq.s32.totalorder %s22, 0
    %p164 = por %p162, %p163
    %p165 = scmp.ne.s32.totalorder %s153, %s154
    %p166 = scmp.eq.s32.totalorder %s23, 1
    %p167 = por %p165, %p166
    %p169 = scmp.ne.s32.totalorder %s154, %s168
    %p170 = scmp.eq.s32.totalorder %s23, 0
    %p171 = por %p169, %p170
    %s173 = sadd.s32 %s172, 1
    %p176 = scmp.eq.s32.totalorder %s17, 1
    %p177 = scmp.ne.s32.totalorder %s172, %s174
    %p178 = scmp.eq.s32.totalorder %s17, 0
    %p179 = por %p177, %p178
    %p180 = scmp.ne.s32.totalorder %s172, %s174
    %p181 = scmp.eq.s32.totalorder %s22, 1
    %p182 = por %p180, %p181
    %p183 = scmp.ne.s32.totalorder %s174, %s175
    %p184 = scmp.eq.s32.totalorder %s22, 0
    %p185 = por %p183, %p184
    %p186 = scmp.ne.s32.totalorder %s174, %s175
    %p187 = scmp.eq.s32.totalorder %s23, 1
    %p188 = por %p186, %p187
    %p190 = scmp.ne.s32.totalorder %s175, %s189
    %p191 = scmp.eq.s32.totalorder %s23, 0
    %p192 = por %p190, %p191
    %s194 = sadd.s32 %s193, 1
    %p197 = scmp.eq.s32.totalorder %s17, 1
    %p198 = scmp.ne.s32.totalorder %s193, %s195
    %p199 = scmp.eq.s32.totalorder %s17, 0
    %p200 = por %p198, %p199
    %p201 = scmp.ne.s32.totalorder %s193, %s195
    %p202 = scmp.eq.s32.totalorder %s22, 1
    %p203 = por %p201, %p202
    %p204 = scmp.ne.s32.totalorder %s195, %s196
    %p205 = scmp.eq.s32.totalorder %s22, 0
    %p206 = por %p204, %p205
    %p207 = scmp.ne.s32.totalorder %s195, %s196
    %p208 = scmp.eq.s32.totalorder %s23, 1
    %p209 = por %p207, %p208
    %p211 = scmp.ne.s32.totalorder %s196, %s210
    %p212 = scmp.eq.s32.totalorder %s23, 0
    %p213 = por %p211, %p212
    %s215 = sadd.s32 %s214, 1
    %p218 = scmp.eq.s32.totalorder %s17, 1
    %p219 = scmp.ne.s32.totalorder %s214, %s216
    %p220 = scmp.eq.s32.totalorder %s17, 0
    %p221 = por %p219, %p220
    %p222 = scmp.ne.s32.totalorder %s214, %s216
    %p223 = scmp.eq.s32.totalorder %s22, 1
    %p224 = por %p222, %p223
    %p225 = scmp.ne.s32.totalorder %s216, %s217
    %p226 = scmp.eq.s32.totalorder %s22, 0
    %p227 = por %p225, %p226
    %p228 = scmp.ne.s32.totalorder %s216, %s217
    %p229 = scmp.eq.s32.totalorder %s23, 1
    %p230 = por %p228, %p229
    %p232 = scmp.ne.s32.totalorder %s217, %s231
    %p233 = scmp.eq.s32.totalorder %s23, 0
    %p234 = por %p232, %p233
    %s235 = ssub.s32 %s17, %s24
    %p236 = scmp.eq.s32.totalorder %s235, 0
    %s238 = sadd.s32 %s237, 1
    %s239 = scalar_select %p236, %s237, %s238
    %p242 = pneg %p236
    %p243 = scmp.eq.s32.totalorder %s17, 1
    %p244 = por %p242, %p243
    %p245 = scmp.ne.s32.totalorder %s237, %s240
    %p246 = scmp.eq.s32.totalorder %s17, 0
    %p247 = por %p245, %p246
    %p248 = scmp.ne.s32.totalorder %s237, %s240
    %p249 = scmp.eq.s32.totalorder %s22, 1
    %p250 = por %p248, %p249
    %p251 = scmp.ne.s32.totalorder %s240, %s241
    %p252 = scmp.eq.s32.totalorder %s22, 0
    %p253 = por %p251, %p252
    %p254 = scmp.ne.s32.totalorder %s240, %s241
    %p255 = scmp.eq.s32.totalorder %s23, 1
    %p256 = por %p254, %p255
    %p258 = scmp.ne.s32.totalorder %s241, %s257
    %p259 = scmp.eq.s32.totalorder %s23, 0
    %p260 = por %p258, %p259
    %s261 = ssub.s32 %s17, %s24
    %p262 = scmp.eq.s32.totalorder %s261, 0
    %s264 = sadd.s32 %s263, 1
    %s265 = scalar_select %p262, %s263, %s264
    %p268 = pneg %p262
    %p269 = scmp.eq.s32.totalorder %s17, 1
    %p270 = por %p268, %p269
    %p271 = scmp.ne.s32.totalorder %s263, %s266
    %p272 = scmp.eq.s32.totalorder %s17, 0
    %p273 = por %p271, %p272
    %p274 = scmp.ne.s32.totalorder %s263, %s266
    %p275 = scmp.eq.s32.totalorder %s22, 1
    %p276 = por %p274, %p275
    %p277 = scmp.ne.s32.totalorder %s266, %s267
    %p278 = scmp.eq.s32.totalorder %s22, 0
    %p279 = por %p277, %p278
    %p280 = scmp.ne.s32.totalorder %s266, %s267
    %p281 = scmp.eq.s32.totalorder %s23, 1
    %p282 = por %p280, %p281
    %p284 = scmp.ne.s32.totalorder %s267, %s283
    %p285 = scmp.eq.s32.totalorder %s23, 0
    %p286 = por %p284, %p285
    %p287 = scmp.le.s32.totalorder 1, %s17
    %p288 = scmp.lt.s32.totalorder %s17, 3
    %p289 = pnand %p287, %p288
    %p290 = pneg %p289
    // Predicated region
    $region9: #{_rein_forward_core.1} parent=5 // pred_check
      _
    $region10: #{_rein_forward_core.1} parent=5 // pred_check_branch
      %292 = sbr.rel (%p289) target = $region12
    $region11: #{_rein_forward_core.1} parent=5 // pred_region
      %s293 = ssub.s32 %s17, 1
      // Predicated region
      $region13: #{_rein_forward_core.1} parent=11 // pred_check
        %p294 = pneg %p38
      $region14: #{_rein_forward_core.1} parent=11 // pred_check_branch
        %296 = sbr.rel (%p294) target = $region16
      $region15: #{_rein_forward_core.1} parent=11 // pred_region
        _
      $region16: #{_rein_forward_core.1} parent=11 // pred_fallthru
        _
      // Predicated region
      $region17: #{_rein_forward_core.1} parent=11 // pred_check
        %p297 = pneg %p59
      $region18: #{_rein_forward_core.1} parent=11 // pred_check_branch
        %299 = sbr.rel (%p297) target = $region20
      $region19: #{_rein_forward_core.1} parent=11 // pred_region
        _
      $region20: #{_rein_forward_core.1} parent=11 // pred_fallthru
        _
      // Predicated region
      $region21: #{_rein_forward_core.1} parent=11 // pred_check
        %p300 = pneg %p80
      $region22: #{_rein_forward_core.1} parent=11 // pred_check_branch
        %302 = sbr.rel (%p300) target = $region24
      $region23: #{_rein_forward_core.1} parent=11 // pred_region
        _
      $region24: #{_rein_forward_core.1} parent=11 // pred_fallthru
        _
      // Predicated region
      $region25: #{_rein_forward_core.1} parent=11 // pred_check
        %p303 = pneg %p101
      $region26: #{_rein_forward_core.1} parent=11 // pred_check_branch
        %305 = sbr.rel (%p303) target = $region28
      $region27: #{_rein_forward_core.1} parent=11 // pred_region
        _
      $region28: #{_rein_forward_core.1} parent=11 // pred_fallthru
        _
      // Predicated region
      $region29: #{_rein_forward_core.1} parent=11 // pred_check
        %p306 = pneg %p122
      $region30: #{_rein_forward_core.1} parent=11 // pred_check_branch
        %308 = sbr.rel (%p306) target = $region32
      $region31: #{_rein_forward_core.1} parent=11 // pred_region
        _
      $region32: #{_rein_forward_core.1} parent=11 // pred_fallthru
        _
      // Predicated region
      $region33: #{_rein_forward_core.1} parent=11 // pred_check
        %p309 = pneg %p143
      $region34: #{_rein_forward_core.1} parent=11 // pred_check_branch
        %311 = sbr.rel (%p309) target = $region36
      $region35: #{_rein_forward_core.1} parent=11 // pred_region
        _
      $region36: #{_rein_forward_core.1} parent=11 // pred_fallthru
        _
      // Predicated region
      $region37: #{_rein_forward_core.1} parent=11 // pred_check
        %p312 = pneg %p164
      $region38: #{_rein_forward_core.1} parent=11 // pred_check_branch
        %314 = sbr.rel (%p312) target = $region40
      $region39: #{_rein_forward_core.1} parent=11 // pred_region
        _
      $region40: #{_rein_forward_core.1} parent=11 // pred_fallthru
        _
      // Predicated region
      $region41: #{_rein_forward_core.1} parent=11 // pred_check
        %p315 = pneg %p185
      $region42: #{_rein_forward_core.1} parent=11 // pred_check_branch
        %317 = sbr.rel (%p315) target = $region44
      $region43: #{_rein_forward_core.1} parent=11 // pred_region
        _
      $region44: #{_rein_forward_core.1} parent=11 // pred_fallthru
        _
      // Predicated region
      $region45: #{_rein_forward_core.1} parent=11 // pred_check
        %p318 = pneg %p206
      $region46: #{_rein_forward_core.1} parent=11 // pred_check_branch
        %320 = sbr.rel (%p318) target = $region48
      $region47: #{_rein_forward_core.1} parent=11 // pred_region
        _
      $region48: #{_rein_forward_core.1} parent=11 // pred_fallthru
        _
      // Predicated region
      $region49: #{_rein_forward_core.1} parent=11 // pred_check
        %p321 = pneg %p227
      $region50: #{_rein_forward_core.1} parent=11 // pred_check_branch
        %323 = sbr.rel (%p321) target = $region52
      $region51: #{_rein_forward_core.1} parent=11 // pred_region
        _
      $region52: #{_rein_forward_core.1} parent=11 // pred_fallthru
        _
    $region12: #{_rein_forward_core.1} parent=5 // pred_fallthru
      _
    %p324 = scmp.lt.s32.totalorder %s17, 2
    // Predicated region
    $region53: #{_rein_forward_core.1} parent=5 // pred_check
      %p325 = pneg %p324
    $region54: #{_rein_forward_core.1} parent=5 // pred_check_branch
      %327 = sbr.rel (%p325) target = $region56
    $region55: #{_rein_forward_core.1} parent=5 // pred_region
      // Predicated region
      $region57: #{_rein_forward_core.1} parent=55 // pred_check
        %p328 = pneg %p247
      $region58: #{_rein_forward_core.1} parent=55 // pred_check_branch
        %330 = sbr.rel (%p328) target = $region60
      $region59: #{_rein_forward_core.1} parent=55 // pred_region
        %p331 = scmp.lt.s32.totalorder %s17, 1
        %s332 = scalar_select %p331, %s17, 1
        %s333 = smul.addr %s332, 16
        %s334 = smul.addr %s333, 8
        %s335 = scalar_lea.vmem %s10, %s334
      $region60: #{_rein_forward_core.1} parent=55 // pred_fallthru
        _
    $region56: #{_rein_forward_core.1} parent=5 // pred_fallthru
      _
    %p336 = scmp.le.s32.totalorder 1, %s17
    %p337 = scmp.lt.s32.totalorder %s17, 3
    %p338 = pnand %p336, %p337
    %p339 = pneg %p338
    // Predicated region
    $region61: #{_rein_forward_core.1} parent=5 // pred_check
      _
    $region62: #{_rein_forward_core.1} parent=5 // pred_check_branch
      %341 = sbr.rel (%p338) target = $region64
    $region63: #{_rein_forward_core.1} parent=5 // pred_region
      %s342 = ssub.s32 %s17, 1
      %p343 = pneg %p38
      %p344 = pneg %p35
      %p345 = pneg %p59
      %p346 = pneg %p56
      %p347 = pneg %p80
      %p348 = pneg %p77
      %p349 = pneg %p101
      %p350 = pneg %p98
      %p351 = pneg %p122
      %p352 = pneg %p119
      %p353 = pneg %p143
      %p354 = pneg %p140
      %p355 = pneg %p164
      %p356 = pneg %p161
      %p357 = pneg %p185
      %p358 = pneg %p182
      %p359 = pneg %p206
      %p360 = pneg %p203
      %p361 = pneg %p227
      %p362 = pneg %p224
      %p363 = scmp.lt.s32.totalorder %s22, 1
      %s364 = scalar_select %p363, %s22, 1
      %s365 = smul.addr %s364, 16
      %s366 = smul.addr %s365, 8
      %s367 = scalar_lea.vmem %s10, %s366
      %p368 = pneg %p253
      %p369 = pneg %p250
      %p370 = pneg %p279
      %p371 = pneg %p276
      %p372 = scmp.lt.s32.totalorder %s22, 1
      %s373 = scalar_select %p372, %s22, 1
      %s374 = smul.addr %s373, 16
      %s375 = smul.addr %s374, 8
      %s376 = scalar_lea.vmem %s11, %s375
      %p377 = scmp.lt.s32.totalorder %s22, 1
      %s378 = scalar_select %p377, %s22, 1
      %s379 = smul.addr %s378, 16
      %s380 = smul.addr %s379, 8
      %s381 = scalar_lea.vmem %s10, %s380
      %p382 = scmp.lt.s32.totalorder %s22, 1
      %s383 = scalar_select %p382, %s22, 1
      %s384 = smul.addr %s383, 16
      %s385 = smul.addr %s384, 8
      %s386 = scalar_lea.vmem %s11, %s385
      %v387 = vld [vmem:[%s0] sm:$0xff]
      %v388 = vld [vmem:[%s1] sm:$0xff]
      %v389 = vld [vmem:[%s1 + $0x8] sm:$0xff]
      %v390 = vld [vmem:[%s1 + $0x10] sm:$0xff]
      %v391 = vld [vmem:[%s1 + $0x18] sm:$0xff]
      %v392 = vld [vmem:[%s2] sm:$0x1]
      %v394 = vlaneseq
      %v395 = vshrl.u32 %v394, 7
      %v396 = vsub.s32 0, %v395
      %v397 = vrot.slane %v392, %v396
      %vm399 = vcmask 261120
      %v401 = vsel %vm399, %v387, 0
      %403 = vmatprep.subr.mxu0 0.0
      %404 = vmatpush1.msra.mxu0 0.0
      %405 = vmatprep.subr.mxu0 0.0
      %406 = vmatpush1.msra.mxu0 0.0
      %407 = vmatprep.subr.mxu0 0.0
      %408 = vmatpush1.msra.mxu0 0.0
      %409 = vmatprep.subr.mxu0 0.0
      %410 = vmatpush1.msra.mxu0 0.0
      %411 = vmatprep.subr.mxu0 0.0
      %412 = vmatpush1.msra.mxu0 0.0
      %413 = vmatprep.subr.mxu0 0.0
      %414 = vmatpush1.msra.mxu0 0.0
      %415 = vmatprep.subr.mxu0 0.0
      %416 = vmatpush1.msra.mxu0 0.0
      %417 = vmatprep.subr.mxu0 0.0
      %418 = vmatpush1.msra.mxu0 0.0
      %419 = vmatprep.subr.mxu0 0.0
      %420 = vmatpush1.msra.mxu0 0.0
      %421 = vmatprep.subr.mxu0 0.0
      %422 = vmatpush1.msra.mxu0 0.0
      %423 = vmatprep.subr.mxu0 0.0
      %424 = vmatpush1.msra.mxu0 0.0
      %425 = vmatprep.subr.mxu0 0.0
      %426 = vmatpush1.msra.mxu0 0.0
      %427 = vmatprep.subr.mxu0 0.0
      %428 = vmatpush1.msra.mxu0 %v391
      %429 = vmatprep.subr.mxu0 0.0
      %430 = vmatpush1.msra.mxu0 %v390
      %431 = vmatprep.subr.mxu0 0.0
      %432 = vmatpush1.msra.mxu0 %v389
      %433 = vmatprep.subr.mxu0 0.0
      %434 = vmatpush1.msra.mxu0 %v388
      %435 = vmatprep.subr.mxu0 0.0
      %436 = vmatpush2.msra.mxu0 0.0
      %437 = vmatprep.subr.mxu0 0.0
      %438 = vmatpush2.msra.mxu0 0.0
      %439 = vmatprep.subr.mxu0 0.0
      %440 = vmatpush2.msra.mxu0 0.0
      %441 = vmatprep.subr.mxu0 0.0
      %442 = vmatpush2.msra.mxu0 0.0
      %443 = vmatprep.subr.mxu0 0.0
      %444 = vmatpush2.msra.mxu0 0.0
      %445 = vmatprep.subr.mxu0 0.0
      %446 = vmatpush2.msra.mxu0 0.0
      %447 = vmatprep.subr.mxu0 0.0
      %448 = vmatpush2.msra.mxu0 0.0
      %449 = vmatprep.subr.mxu0 0.0
      %450 = vmatpush2.msra.mxu0 0.0
      %451 = vmatprep.subr.mxu0 0.0
      %452 = vmatpush2.msra.mxu0 0.0
      %453 = vmatprep.subr.mxu0 0.0
      %454 = vmatpush2.msra.mxu0 0.0
      %455 = vmatprep.subr.mxu0 0.0
      %456 = vmatpush2.msra.mxu0 0.0
      %457 = vmatprep.subr.mxu0 0.0
      %458 = vmatpush2.msra.mxu0 0.0
      %459 = vmatprep.subr.mxu0 0.0
      %460 = vmatpush2.msra.mxu0 0.0
      %461 = vmatprep.subr.mxu0 0.0
      %462 = vmatpush2.msra.mxu0 0.0
      %463 = vmatprep.subr.mxu0 0.0
      %464 = vmatpush2.msra.mxu0 0.0
      %465 = vmatprep.subr.mxu0 0.0
      %466 = vmatpush2.msra.mxu0 0.0
      %467 = vmatprep.mubr.f32.mxu0 0.0
      %468 = vmatmul.mubr.f32.gmra.mxu0 %v401
      %v469 = vpop.f32.mrf.mxu0
      %v470 = vadd.f32 %v397, %v469
      %v471 = vpop.f32.mrf.mxu0
      %472 = vdwg.mxu0
      %474 = vrot.lane.b32.xlu0 %v470, 96
      %v475 = vpop.permute.xlu0 %474
      %vm476 = vcmask 31744
      %v477 = vsel %vm476, %v470, 0
      %v479 = vsel %vm476, %v475, 0
      %481 = vmatprep.subr.mxu0 0.0
      %482 = vmatpush1.xpose.msra.mxu0 0.0
      %483 = vmatprep.subr.mxu0 0.0
      %484 = vmatpush1.xpose.msra.mxu0 0.0
      %485 = vmatprep.subr.mxu0 0.0
      %486 = vmatpush1.xpose.msra.mxu0 0.0
      %487 = vmatprep.subr.mxu0 0.0
      %488 = vmatpush1.xpose.msra.mxu0 0.0
      %489 = vmatprep.subr.mxu0 0.0
      %490 = vmatpush1.xpose.msra.mxu0 0.0
      %491 = vmatprep.subr.mxu0 0.0
      %492 = vmatpush1.xpose.msra.mxu0 0.0
      %493 = vmatprep.subr.mxu0 0.0
      %494 = vmatpush1.xpose.msra.mxu0 0.0
      %495 = vmatprep.subr.mxu0 0.0
      %496 = vmatpush1.xpose.msra.mxu0 0.0
      %497 = vmatprep.subr.mxu0 0.0
      %498 = vmatpush1.xpose.msra.mxu0 0.0
      %499 = vmatprep.subr.mxu0 0.0
      %500 = vmatpush1.xpose.msra.mxu0 0.0
      %501 = vmatprep.subr.mxu0 0.0
      %502 = vmatpush1.xpose.msra.mxu0 0.0
      %503 = vmatprep.subr.mxu0 0.0
      %504 = vmatpush1.xpose.msra.mxu0 0.0
      %505 = vmatprep.subr.mxu0 0.0
      %506 = vmatpush1.xpose.msra.mxu0 0.0
      %507 = vmatprep.subr.mxu0 0.0
      %508 = vmatpush1.xpose.msra.mxu0 0.0
      %509 = vmatprep.subr.mxu0 0.0
      %510 = vmatpush1.xpose.msra.mxu0 0.0
      %511 = vmatprep.subr.mxu0 0.0
      %512 = vmatpush1.xpose.msra.mxu0 %v479
      %513 = vmatprep.subr.mxu0 0.0
      %514 = vmatpush2.xpose.msra.mxu0 0.0
      %515 = vmatprep.subr.mxu0 0.0
      %516 = vmatpush2.xpose.msra.mxu0 0.0
      %517 = vmatprep.subr.mxu0 0.0
      %518 = vmatpush2.xpose.msra.mxu0 0.0
      %519 = vmatprep.subr.mxu0 0.0
      %520 = vmatpush2.xpose.msra.mxu0 0.0
      %521 = vmatprep.subr.mxu0 0.0
      %522 = vmatpush2.xpose.msra.mxu0 0.0
      %523 = vmatprep.subr.mxu0 0.0
      %524 = vmatpush2.xpose.msra.mxu0 0.0
      %525 = vmatprep.subr.mxu0 0.0
      %526 = vmatpush2.xpose.msra.mxu0 0.0
      %527 = vmatprep.subr.mxu0 0.0
      %528 = vmatpush2.xpose.msra.mxu0 0.0
      %529 = vmatprep.subr.mxu0 0.0
      %530 = vmatpush2.xpose.msra.mxu0 0.0
      %531 = vmatprep.subr.mxu0 0.0
      %532 = vmatpush2.xpose.msra.mxu0 0.0
      %533 = vmatprep.subr.mxu0 0.0
      %534 = vmatpush2.xpose.msra.mxu0 0.0
      %535 = vmatprep.subr.mxu0 0.0
      %536 = vmatpush2.xpose.msra.mxu0 0.0
      %537 = vmatprep.subr.mxu0 0.0
      %538 = vmatpush2.xpose.msra.mxu0 0.0
      %539 = vmatprep.subr.mxu0 0.0
      %540 = vmatpush2.xpose.msra.mxu0 0.0
      %541 = vmatprep.subr.mxu0 0.0
      %542 = vmatpush2.xpose.msra.mxu0 0.0
      %543 = vmatprep.subr.mxu0 0.0
      %544 = vmatpush2.xpose.msra.mxu0 0.0
      %545 = vmatprep.mubr.f32.mxu0 0.0
      %546 = vmatmul.mubr.f32.gmra.mxu0 %v477
      %v547 = vpop.f32.mrf.mxu0
      %v548 = vadd.f32 0.0, %v547
      %v549 = vpop.f32.mrf.mxu0
      %550 = vdwg.mxu0
      %v551 = vmul.f32 %v548, 0.5
      %vm552 = vcmask 64512
      %v553 = vsel %vm552, %v551, -inf
      %554 = vmax.xlane.f32.xlu0 %v553
      %v555 = vpop.xlane.xlu0 %554
      %v556 = vsub.f32 %v551, %v555
      %v557 = vmul.f32 %v556, 1.442695
      %v558 = vpow.pop %v557
      %v559 = vsel %vm552, %v558, 0.0
      %560 = vadd.xlane.f32.xlu0 %v559
      %v561 = vpop.xlane.xlu0 %560
      %v562 = vrcp.pop %v561
      %v563 = vmul.f32 %v558, %v562
      %v564 = vsel %vm552, %v563, 0.0
      %v565 = vrot.slane %v564, 4
      %v566 = vadd.f32 %v564, %v565
      %v567 = vrot.slane %v566, 2
      %v568 = vadd.f32 %v566, %v567
      %v569 = vrot.slane %v568, 1
      %v570 = vadd.f32 %v568, %v569
      %v571 = vrcp.pop 8.0
      %v572 = vmul.f32 %v570, %v571
      %573 = vrot.lane.b32.xlu0 %v470, 64
      %v574 = vpop.permute.xlu0 %573
      %v577 = vsel %vm552, %v572, 0
      %579 = vmatprep.subr.mxu0 0.0
      %580 = vmatpush1.msra.mxu0 0.0
      %581 = vmatprep.subr.mxu0 0.0
      %582 = vmatpush1.msra.mxu0 0.0
      %583 = vmatprep.subr.mxu0 0.0
      %584 = vmatpush1.msra.mxu0 0.0
      %585 = vmatprep.subr.mxu0 0.0
      %586 = vmatpush1.msra.mxu0 0.0
      %587 = vmatprep.subr.mxu0 0.0
      %588 = vmatpush1.msra.mxu0 0.0
      %589 = vmatprep.subr.mxu0 0.0
      %590 = vmatpush1.msra.mxu0 0.0
      %591 = vmatprep.subr.mxu0 0.0
      %592 = vmatpush1.msra.mxu0 0.0
      %593 = vmatprep.subr.mxu0 0.0
      %594 = vmatpush1.msra.mxu0 0.0
      %595 = vmatprep.subr.mxu0 0.0
      %596 = vmatpush1.msra.mxu0 0.0
      %597 = vmatprep.subr.mxu0 0.0
      %598 = vmatpush1.msra.mxu0 0.0
      %599 = vmatprep.subr.mxu0 0.0
      %600 = vmatpush1.msra.mxu0 0.0
      %601 = vmatprep.subr.mxu0 0.0
      %602 = vmatpush1.msra.mxu0 0.0
      %603 = vmatprep.subr.mxu0 0.0
      %604 = vmatpush1.msra.mxu0 0.0
      %605 = vmatprep.subr.mxu0 0.0
      %606 = vmatpush1.msra.mxu0 0.0
      %607 = vmatprep.subr.mxu0 0.0
      %608 = vmatpush1.msra.mxu0 0.0
      %609 = vmatprep.subr.mxu0 0.0
      %610 = vmatpush1.msra.mxu0 %v574
      %611 = vmatprep.subr.mxu0 0.0
      %612 = vmatpush2.msra.mxu0 0.0
      %613 = vmatprep.subr.mxu0 0.0
      %614 = vmatpush2.msra.mxu0 0.0
      %615 = vmatprep.subr.mxu0 0.0
      %616 = vmatpush2.msra.mxu0 0.0
      %617 = vmatprep.subr.mxu0 0.0
      %618 = vmatpush2.msra.mxu0 0.0
      %619 = vmatprep.subr.mxu0 0.0
      %620 = vmatpush2.msra.mxu0 0.0
      %621 = vmatprep.subr.mxu0 0.0
      %622 = vmatpush2.msra.mxu0 0.0
      %623 = vmatprep.subr.mxu0 0.0
      %624 = vmatpush2.msra.mxu0 0.0
      %625 = vmatprep.subr.mxu0 0.0
      %626 = vmatpush2.msra.mxu0 0.0
      %627 = vmatprep.subr.mxu0 0.0
      %628 = vmatpush2.msra.mxu0 0.0
      %629 = vmatprep.subr.mxu0 0.0
      %630 = vmatpush2.msra.mxu0 0.0
      %631 = vmatprep.subr.mxu0 0.0
      %632 = vmatpush2.msra.mxu0 0.0
      %633 = vmatprep.subr.mxu0 0.0
      %634 = vmatpush2.msra.mxu0 0.0
      %635 = vmatprep.subr.mxu0 0.0
      %636 = vmatpush2.msra.mxu0 0.0
      %637 = vmatprep.subr.mxu0 0.0
      %638 = vmatpush2.msra.mxu0 0.0
      %639 = vmatprep.subr.mxu0 0.0
      %640 = vmatpush2.msra.mxu0 0.0
      %641 = vmatprep.subr.mxu0 0.0
      %642 = vmatpush2.msra.mxu0 0.0
      %643 = vmatprep.mubr.f32.mxu0 0.0
      %644 = vmatmul.mubr.f32.gmra.mxu0 %v577
      %v645 = vpop.f32.mrf.mxu0
      %v646 = vadd.f32 0.0, %v645
      %v647 = vpop.f32.mrf.mxu0
      %648 = vdwg.mxu0
      %649 = vrot.lane.b32.xlu0 %v470, 124
      %v650 = vpop.permute.xlu0 %649
      %651 = vrot.lane.b32.xlu0 %v470, 92
      %v652 = vpop.permute.xlu0 %651
      %v653 = vsel %vm476, %v650, 0
      %v655 = vsel %vm476, %v652, 0
      %657 = vmatprep.subr.mxu0 0.0
      %658 = vmatpush1.xpose.msra.mxu0 0.0
      %659 = vmatprep.subr.mxu0 0.0
      %660 = vmatpush1.xpose.msra.mxu0 0.0
      %661 = vmatprep.subr.mxu0 0.0
      %662 = vmatpush1.xpose.msra.mxu0 0.0
      %663 = vmatprep.subr.mxu0 0.0
      %664 = vmatpush1.xpose.msra.mxu0 0.0
      %665 = vmatprep.subr.mxu0 0.0
      %666 = vmatpush1.xpose.msra.mxu0 0.0
      %667 = vmatprep.subr.mxu0 0.0
      %668 = vmatpush1.xpose.msra.mxu0 0.0
      %669 = vmatprep.subr.mxu0 0.0
      %670 = vmatpush1.xpose.msra.mxu0 0.0
      %671 = vmatprep.subr.mxu0 0.0
      %672 = vmatpush1.xpose.msra.mxu0 0.0
      %673 = vmatprep.subr.mxu0 0.0
      %674 = vmatpush1.xpose.msra.mxu0 0.0
      %675 = vmatprep.subr.mxu0 0.0
      %676 = vmatpush1.xpose.msra.mxu0 0.0
      %677 = vmatprep.subr.mxu0 0.0
      %678 = vmatpush1.xpose.msra.mxu0 0.0
      %679 = vmatprep.subr.mxu0 0.0
      %680 = vmatpush1.xpose.msra.mxu0 0.0
      %681 = vmatprep.subr.mxu0 0.0
      %682 = vmatpush1.xpose.msra.mxu0 0.0
      %683 = vmatprep.subr.mxu0 0.0
      %684 = vmatpush1.xpose.msra.mxu0 0.0
      %685 = vmatprep.subr.mxu0 0.0
      %686 = vmatpush1.xpose.msra.mxu0 0.0
      %687 = vmatprep.subr.mxu0 0.0
      %688 = vmatpush1.xpose.msra.mxu0 %v655
      %689 = vmatprep.subr.mxu0 0.0
      %690 = vmatpush2.xpose.msra.mxu0 0.0
      %691 = vmatprep.subr.mxu0 0.0
      %692 = vmatpush2.xpose.msra.mxu0 0.0
      %693 = vmatprep.subr.mxu0 0.0
      %694 = vmatpush2.xpose.msra.mxu0 0.0
      %695 = vmatprep.subr.mxu0 0.0
      %696 = vmatpush2.xpose.msra.mxu0 0.0
      %697 = vmatprep.subr.mxu0 0.0
      %698 = vmatpush2.xpose.msra.mxu0 0.0
      %699 = vmatprep.subr.mxu0 0.0
      %700 = vmatpush2.xpose.msra.mxu0 0.0
      %701 = vmatprep.subr.mxu0 0.0
      %702 = vmatpush2.xpose.msra.mxu0 0.0
      %703 = vmatprep.subr.mxu0 0.0
      %704 = vmatpush2.xpose.msra.mxu0 0.0
      %705 = vmatprep.subr.mxu0 0.0
      %706 = vmatpush2.xpose.msra.mxu0 0.0
      %707 = vmatprep.subr.mxu0 0.0
      %708 = vmatpush2.xpose.msra.mxu0 0.0
      %709 = vmatprep.subr.mxu0 0.0
      %710 = vmatpush2.xpose.msra.mxu0 0.0
      %711 = vmatprep.subr.mxu0 0.0
      %712 = vmatpush2.xpose.msra.mxu0 0.0
      %713 = vmatprep.subr.mxu0 0.0
      %714 = vmatpush2.xpose.msra.mxu0 0.0
      %715 = vmatprep.subr.mxu0 0.0
      %716 = vmatpush2.xpose.msra.mxu0 0.0
      %717 = vmatprep.subr.mxu0 0.0
      %718 = vmatpush2.xpose.msra.mxu0 0.0
      %719 = vmatprep.subr.mxu0 0.0
      %720 = vmatpush2.xpose.msra.mxu0 0.0
      %721 = vmatprep.mubr.f32.mxu0 0.0
      %722 = vmatmul.mubr.f32.gmra.mxu0 %v653
      %v723 = vpop.f32.mrf.mxu0
      %v724 = vadd.f32 0.0, %v723
      %v725 = vpop.f32.mrf.mxu0
      %726 = vdwg.mxu0
      %v727 = vmul.f32 %v724, 0.5
      %v728 = vsel %vm552, %v727, -inf
      %729 = vmax.xlane.f32.xlu0 %v728
      %v730 = vpop.xlane.xlu0 %729
      %v731 = vsub.f32 %v727, %v730
      %v732 = vmul.f32 %v731, 1.442695
      %v733 = vpow.pop %v732
      %v734 = vsel %vm552, %v733, 0.0
      %735 = vadd.xlane.f32.xlu0 %v734
      %v736 = vpop.xlane.xlu0 %735
      %v737 = vrcp.pop %v736
      %v738 = vmul.f32 %v733, %v737
      %v739 = vsel %vm552, %v738, 0.0
      %v740 = vrot.slane %v739, 4
      %v741 = vadd.f32 %v739, %v740
      %v742 = vrot.slane %v741, 2
      %v743 = vadd.f32 %v741, %v742
      %v744 = vrot.slane %v743, 1
      %v745 = vadd.f32 %v743, %v744
      %v746 = vmul.f32 %v745, %v571
      %747 = vrot.lane.b32.xlu0 %v470, 60
      %v748 = vpop.permute.xlu0 %747
      %v751 = vsel %vm552, %v746, 0
      %753 = vmatprep.subr.mxu0 0.0
      %754 = vmatpush1.msra.mxu0 0.0
      %755 = vmatprep.subr.mxu0 0.0
      %756 = vmatpush1.msra.mxu0 0.0
      %757 = vmatprep.subr.mxu0 0.0
      %758 = vmatpush1.msra.mxu0 0.0
      %759 = vmatprep.subr.mxu0 0.0
      %760 = vmatpush1.msra.mxu0 0.0
      %761 = vmatprep.subr.mxu0 0.0
      %762 = vmatpush1.msra.mxu0 0.0
      %763 = vmatprep.subr.mxu0 0.0
      %764 = vmatpush1.msra.mxu0 0.0
      %765 = vmatprep.subr.mxu0 0.0
      %766 = vmatpush1.msra.mxu0 0.0
      %767 = vmatprep.subr.mxu0 0.0
      %768 = vmatpush1.msra.mxu0 0.0
      %769 = vmatprep.subr.mxu0 0.0
      %770 = vmatpush1.msra.mxu0 0.0
      %771 = vmatprep.subr.mxu0 0.0
      %772 = vmatpush1.msra.mxu0 0.0
      %773 = vmatprep.subr.mxu0 0.0
      %774 = vmatpush1.msra.mxu0 0.0
      %775 = vmatprep.subr.mxu0 0.0
      %776 = vmatpush1.msra.mxu0 0.0
      %777 = vmatprep.subr.mxu0 0.0
      %778 = vmatpush1.msra.mxu0 0.0
      %779 = vmatprep.subr.mxu0 0.0
      %780 = vmatpush1.msra.mxu0 0.0
      %781 = vmatprep.subr.mxu0 0.0
      %782 = vmatpush1.msra.mxu0 0.0
      %783 = vmatprep.subr.mxu0 0.0
      %784 = vmatpush1.msra.mxu0 %v748
      %785 = vmatprep.subr.mxu0 0.0
      %786 = vmatpush2.msra.mxu0 0.0
      %787 = vmatprep.subr.mxu0 0.0
      %788 = vmatpush2.msra.mxu0 0.0
      %789 = vmatprep.subr.mxu0 0.0
      %790 = vmatpush2.msra.mxu0 0.0
      %791 = vmatprep.subr.mxu0 0.0
      %792 = vmatpush2.msra.mxu0 0.0
      %793 = vmatprep.subr.mxu0 0.0
      %794 = vmatpush2.msra.mxu0 0.0
      %795 = vmatprep.subr.mxu0 0.0
      %796 = vmatpush2.msra.mxu0 0.0
      %797 = vmatprep.subr.mxu0 0.0
      %798 = vmatpush2.msra.mxu0 0.0
      %799 = vmatprep.subr.mxu0 0.0
      %800 = vmatpush2.msra.mxu0 0.0
      %801 = vmatprep.subr.mxu0 0.0
      %802 = vmatpush2.msra.mxu0 0.0
      %803 = vmatprep.subr.mxu0 0.0
      %804 = vmatpush2.msra.mxu0 0.0
      %805 = vmatprep.subr.mxu0 0.0
      %806 = vmatpush2.msra.mxu0 0.0
      %807 = vmatprep.subr.mxu0 0.0
      %808 = vmatpush2.msra.mxu0 0.0
      %809 = vmatprep.subr.mxu0 0.0
      %810 = vmatpush2.msra.mxu0 0.0
      %811 = vmatprep.subr.mxu0 0.0
      %812 = vmatpush2.msra.mxu0 0.0
      %813 = vmatprep.subr.mxu0 0.0
      %814 = vmatpush2.msra.mxu0 0.0
      %815 = vmatprep.subr.mxu0 0.0
      %816 = vmatpush2.msra.mxu0 0.0
      %817 = vmatprep.mubr.f32.mxu0 0.0
      %818 = vmatmul.mubr.f32.gmra.mxu0 %v751
      %v819 = vpop.f32.mrf.mxu0
      %v820 = vadd.f32 0.0, %v819
      %v821 = vpop.f32.mrf.mxu0
      %822 = vdwg.mxu0
      %823 = vrot.lane.b32.xlu0 %v470, 120
      %v824 = vpop.permute.xlu0 %823
      %825 = vrot.lane.b32.xlu0 %v470, 88
      %v826 = vpop.permute.xlu0 %825
      %v827 = vsel %vm476, %v824, 0
      %v829 = vsel %vm476, %v826, 0
      %831 = vmatprep.subr.mxu0 0.0
      %832 = vmatpush1.xpose.msra.mxu0 0.0
      %833 = vmatprep.subr.mxu0 0.0
      %834 = vmatpush1.xpose.msra.mxu0 0.0
      %835 = vmatprep.subr.mxu0 0.0
      %836 = vmatpush1.xpose.msra.mxu0 0.0
      %837 = vmatprep.subr.mxu0 0.0
      %838 = vmatpush1.xpose.msra.mxu0 0.0
      %839 = vmatprep.subr.mxu0 0.0
      %840 = vmatpush1.xpose.msra.mxu0 0.0
      %841 = vmatprep.subr.mxu0 0.0
      %842 = vmatpush1.xpose.msra.mxu0 0.0
      %843 = vmatprep.subr.mxu0 0.0
      %844 = vmatpush1.xpose.msra.mxu0 0.0
      %845 = vmatprep.subr.mxu0 0.0
      %846 = vmatpush1.xpose.msra.mxu0 0.0
      %847 = vmatprep.subr.mxu0 0.0
      %848 = vmatpush1.xpose.msra.mxu0 0.0
      %849 = vmatprep.subr.mxu0 0.0
      %850 = vmatpush1.xpose.msra.mxu0 0.0
      %851 = vmatprep.subr.mxu0 0.0
      %852 = vmatpush1.xpose.msra.mxu0 0.0
      %853 = vmatprep.subr.mxu0 0.0
      %854 = vmatpush1.xpose.msra.mxu0 0.0
      %855 = vmatprep.subr.mxu0 0.0
      %856 = vmatpush1.xpose.msra.mxu0 0.0
      %857 = vmatprep.subr.mxu0 0.0
      %858 = vmatpush1.xpose.msra.mxu0 0.0
      %859 = vmatprep.subr.mxu0 0.0
      %860 = vmatpush1.xpose.msra.mxu0 0.0
      %861 = vmatprep.subr.mxu0 0.0
      %862 = vmatpush1.xpose.msra.mxu0 %v829
      %863 = vmatprep.subr.mxu0 0.0
      %864 = vmatpush2.xpose.msra.mxu0 0.0
      %865 = vmatprep.subr.mxu0 0.0
      %866 = vmatpush2.xpose.msra.mxu0 0.0
      %867 = vmatprep.subr.mxu0 0.0
      %868 = vmatpush2.xpose.msra.mxu0 0.0
      %869 = vmatprep.subr.mxu0 0.0
      %870 = vmatpush2.xpose.msra.mxu0 0.0
      %871 = vmatprep.subr.mxu0 0.0
      %872 = vmatpush2.xpose.msra.mxu0 0.0
      %873 = vmatprep.subr.mxu0 0.0
      %874 = vmatpush2.xpose.msra.mxu0 0.0
      %875 = vmatprep.subr.mxu0 0.0
      %876 = vmatpush2.xpose.msra.mxu0 0.0
      %877 = vmatprep.subr.mxu0 0.0
      %878 = vmatpush2.xpose.msra.mxu0 0.0
      %879 = vmatprep.subr.mxu0 0.0
      %880 = vmatpush2.xpose.msra.mxu0 0.0
      %881 = vmatprep.subr.mxu0 0.0
      %882 = vmatpush2.xpose.msra.mxu0 0.0
      %883 = vmatprep.subr.mxu0 0.0
      %884 = vmatpush2.xpose.msra.mxu0 0.0
      %885 = vmatprep.subr.mxu0 0.0
      %886 = vmatpush2.xpose.msra.mxu0 0.0
      %887 = vmatprep.subr.mxu0 0.0
      %888 = vmatpush2.xpose.msra.mxu0 0.0
      %889 = vmatprep.subr.mxu0 0.0
      %890 = vmatpush2.xpose.msra.mxu0 0.0
      %891 = vmatprep.subr.mxu0 0.0
      %892 = vmatpush2.xpose.msra.mxu0 0.0
      %893 = vmatprep.subr.mxu0 0.0
      %894 = vmatpush2.xpose.msra.mxu0 0.0
      %895 = vmatprep.mubr.f32.mxu0 0.0
      %896 = vmatmul.mubr.f32.gmra.mxu0 %v827
      %v897 = vpop.f32.mrf.mxu0
      %v898 = vadd.f32 0.0, %v897
      %v899 = vpop.f32.mrf.mxu0
      %900 = vdwg.mxu0
      %v901 = vmul.f32 %v898, 0.5
      %v902 = vsel %vm552, %v901, -inf
      %903 = vmax.xlane.f32.xlu0 %v902
      %v904 = vpop.xlane.xlu0 %903
      %v905 = vsub.f32 %v901, %v904
      %v906 = vmul.f32 %v905, 1.442695
      %v907 = vpow.pop %v906
      %v908 = vsel %vm552, %v907, 0.0
      %909 = vadd.xlane.f32.xlu0 %v908
      %v910 = vpop.xlane.xlu0 %909
      %v911 = vrcp.pop %v910
      %v912 = vmul.f32 %v907, %v911
      %v913 = vsel %vm552, %v912, 0.0
      %v914 = vrot.slane %v913, 4
      %v915 = vadd.f32 %v913, %v914
      %v916 = vrot.slane %v915, 2
      %v917 = vadd.f32 %v915, %v916
      %v918 = vrot.slane %v917, 1
      %v919 = vadd.f32 %v917, %v918
      %v920 = vmul.f32 %v919, %v571
      %921 = vrot.lane.b32.xlu0 %v470, 56
      %v922 = vpop.permute.xlu0 %921
      %v925 = vsel %vm552, %v920, 0
      %927 = vmatprep.subr.mxu0 0.0
      %928 = vmatpush1.msra.mxu0 0.0
      %929 = vmatprep.subr.mxu0 0.0
      %930 = vmatpush1.msra.mxu0 0.0
      %931 = vmatprep.subr.mxu0 0.0
      %932 = vmatpush1.msra.mxu0 0.0
      %933 = vmatprep.subr.mxu0 0.0
      %934 = vmatpush1.msra.mxu0 0.0
      %935 = vmatprep.subr.mxu0 0.0
      %936 = vmatpush1.msra.mxu0 0.0
      %937 = vmatprep.subr.mxu0 0.0
      %938 = vmatpush1.msra.mxu0 0.0
      %939 = vmatprep.subr.mxu0 0.0
      %940 = vmatpush1.msra.mxu0 0.0
      %941 = vmatprep.subr.mxu0 0.0
      %942 = vmatpush1.msra.mxu0 0.0
      %943 = vmatprep.subr.mxu0 0.0
      %944 = vmatpush1.msra.mxu0 0.0
      %945 = vmatprep.subr.mxu0 0.0
      %946 = vmatpush1.msra.mxu0 0.0
      %947 = vmatprep.subr.mxu0 0.0
      %948 = vmatpush1.msra.mxu0 0.0
      %949 = vmatprep.subr.mxu0 0.0
      %950 = vmatpush1.msra.mxu0 0.0
      %951 = vmatprep.subr.mxu0 0.0
      %952 = vmatpush1.msra.mxu0 0.0
      %953 = vmatprep.subr.mxu0 0.0
      %954 = vmatpush1.msra.mxu0 0.0
      %955 = vmatprep.subr.mxu0 0.0
      %956 = vmatpush1.msra.mxu0 0.0
      %957 = vmatprep.subr.mxu0 0.0
      %958 = vmatpush1.msra.mxu0 %v922
      %959 = vmatprep.subr.mxu0 0.0
      %960 = vmatpush2.msra.mxu0 0.0
      %961 = vmatprep.subr.mxu0 0.0
      %962 = vmatpush2.msra.mxu0 0.0
      %963 = vmatprep.subr.mxu0 0.0
      %964 = vmatpush2.msra.mxu0 0.0
      %965 = vmatprep.subr.mxu0 0.0
      %966 = vmatpush2.msra.mxu0 0.0
      %967 = vmatprep.subr.mxu0 0.0
      %968 = vmatpush2.msra.mxu0 0.0
      %969 = vmatprep.subr.mxu0 0.0
      %970 = vmatpush2.msra.mxu0 0.0
      %971 = vmatprep.subr.mxu0 0.0
      %972 = vmatpush2.msra.mxu0 0.0
      %973 = vmatprep.subr.mxu0 0.0
      %974 = vmatpush2.msra.mxu0 0.0
      %975 = vmatprep.subr.mxu0 0.0
      %976 = vmatpush2.msra.mxu0 0.0
      %977 = vmatprep.subr.mxu0 0.0
      %978 = vmatpush2.msra.mxu0 0.0
      %979 = vmatprep.subr.mxu0 0.0
      %980 = vmatpush2.msra.mxu0 0.0
      %981 = vmatprep.subr.mxu0 0.0
      %982 = vmatpush2.msra.mxu0 0.0
      %983 = vmatprep.subr.mxu0 0.0
      %984 = vmatpush2.msra.mxu0 0.0
      %985 = vmatprep.subr.mxu0 0.0
      %986 = vmatpush2.msra.mxu0 0.0
      %987 = vmatprep.subr.mxu0 0.0
      %988 = vmatpush2.msra.mxu0 0.0
      %989 = vmatprep.subr.mxu0 0.0
      %990 = vmatpush2.msra.mxu0 0.0
      %991 = vmatprep.mubr.f32.mxu0 0.0
      %992 = vmatmul.mubr.f32.gmra.mxu0 %v925
      %v993 = vpop.f32.mrf.mxu0
      %v994 = vadd.f32 0.0, %v993
      %v995 = vpop.f32.mrf.mxu0
      %996 = vdwg.mxu0
      %997 = vrot.lane.b32.xlu0 %v470, 116
      %v998 = vpop.permute.xlu0 %997
      %999 = vrot.lane.b32.xlu0 %v470, 84
      %v1000 = vpop.permute.xlu0 %999
      %v1001 = vsel %vm476, %v998, 0
      %v1003 = vsel %vm476, %v1000, 0
      %1005 = vmatprep.subr.mxu0 0.0
      %1006 = vmatpush1.xpose.msra.mxu0 0.0
      %1007 = vmatprep.subr.mxu0 0.0
      %1008 = vmatpush1.xpose.msra.mxu0 0.0
      %1009 = vmatprep.subr.mxu0 0.0
      %1010 = vmatpush1.xpose.msra.mxu0 0.0
      %1011 = vmatprep.subr.mxu0 0.0
      %1012 = vmatpush1.xpose.msra.mxu0 0.0
      %1013 = vmatprep.subr.mxu0 0.0
      %1014 = vmatpush1.xpose.msra.mxu0 0.0
      %1015 = vmatprep.subr.mxu0 0.0
      %1016 = vmatpush1.xpose.msra.mxu0 0.0
      %1017 = vmatprep.subr.mxu0 0.0
      %1018 = vmatpush1.xpose.msra.mxu0 0.0
      %1019 = vmatprep.subr.mxu0 0.0
      %1020 = vmatpush1.xpose.msra.mxu0 0.0
      %1021 = vmatprep.subr.mxu0 0.0
      %1022 = vmatpush1.xpose.msra.mxu0 0.0
      %1023 = vmatprep.subr.mxu0 0.0
      %1024 = vmatpush1.xpose.msra.mxu0 0.0
      %1025 = vmatprep.subr.mxu0 0.0
      %1026 = vmatpush1.xpose.msra.mxu0 0.0
      %1027 = vmatprep.subr.mxu0 0.0
      %1028 = vmatpush1.xpose.msra.mxu0 0.0
      %1029 = vmatprep.subr.mxu0 0.0
      %1030 = vmatpush1.xpose.msra.mxu0 0.0
      %1031 = vmatprep.subr.mxu0 0.0
      %1032 = vmatpush1.xpose.msra.mxu0 0.0
      %1033 = vmatprep.subr.mxu0 0.0
      %1034 = vmatpush1.xpose.msra.mxu0 0.0
      %1035 = vmatprep.subr.mxu0 0.0
      %1036 = vmatpush1.xpose.msra.mxu0 %v1003
      %1037 = vmatprep.subr.mxu0 0.0
      %1038 = vmatpush2.xpose.msra.mxu0 0.0
      %1039 = vmatprep.subr.mxu0 0.0
      %1040 = vmatpush2.xpose.msra.mxu0 0.0
      %1041 = vmatprep.subr.mxu0 0.0
      %1042 = vmatpush2.xpose.msra.mxu0 0.0
      %1043 = vmatprep.subr.mxu0 0.0
      %1044 = vmatpush2.xpose.msra.mxu0 0.0
      %1045 = vmatprep.subr.mxu0 0.0
      %1046 = vmatpush2.xpose.msra.mxu0 0.0
      %1047 = vmatprep.subr.mxu0 0.0
      %1048 = vmatpush2.xpose.msra.mxu0 0.0
      %1049 = vmatprep.subr.mxu0 0.0
      %1050 = vmatpush2.xpose.msra.mxu0 0.0
      %1051 = vmatprep.subr.mxu0 0.0
      %1052 = vmatpush2.xpose.msra.mxu0 0.0
      %1053 = vmatprep.subr.mxu0 0.0
      %1054 = vmatpush2.xpose.msra.mxu0 0.0
      %1055 = vmatprep.subr.mxu0 0.0
      %1056 = vmatpush2.xpose.msra.mxu0 0.0
      %1057 = vmatprep.subr.mxu0 0.0
      %1058 = vmatpush2.xpose.msra.mxu0 0.0
      %1059 = vmatprep.subr.mxu0 0.0
      %1060 = vmatpush2.xpose.msra.mxu0 0.0
      %1061 = vmatprep.subr.mxu0 0.0
      %1062 = vmatpush2.xpose.msra.mxu0 0.0
      %1063 = vmatprep.subr.mxu0 0.0
      %1064 = vmatpush2.xpose.msra.mxu0 0.0
      %1065 = vmatprep.subr.mxu0 0.0
      %1066 = vmatpush2.xpose.msra.mxu0 0.0
      %1067 = vmatprep.subr.mxu0 0.0
      %1068 = vmatpush2.xpose.msra.mxu0 0.0
      %1069 = vmatprep.mubr.f32.mxu0 0.0
      %1070 = vmatmul.mubr.f32.gmra.mxu0 %v1001
      %v1071 = vpop.f32.mrf.mxu0
      %v1072 = vadd.f32 0.0, %v1071
      %v1073 = vpop.f32.mrf.mxu0
      %1074 = vdwg.mxu0
      %v1075 = vmul.f32 %v1072, 0.5
      %v1076 = vsel %vm552, %v1075, -inf
      %1077 = vmax.xlane.f32.xlu0 %v1076
      %v1078 = vpop.xlane.xlu0 %1077
      %v1079 = vsub.f32 %v1075, %v1078
      %v1080 = vmul.f32 %v1079, 1.442695
      %v1081 = vpow.pop %v1080
      %v1082 = vsel %vm552, %v1081, 0.0
      %1083 = vadd.xlane.f32.xlu0 %v1082
      %v1084 = vpop.xlane.xlu0 %1083
      %v1085 = vrcp.pop %v1084
      %v1086 = vmul.f32 %v1081, %v1085
      %v1087 = vsel %vm552, %v1086, 0.0
      %v1088 = vrot.slane %v1087, 4
      %v1089 = vadd.f32 %v1087, %v1088
      %v1090 = vrot.slane %v1089, 2
      %v1091 = vadd.f32 %v1089, %v1090
      %v1092 = vrot.slane %v1091, 1
      %v1093 = vadd.f32 %v1091, %v1092
      %v1094 = vmul.f32 %v1093, %v571
      %1095 = vrot.lane.b32.xlu0 %v470, 52
      %v1096 = vpop.permute.xlu0 %1095
      %v1099 = vsel %vm552, %v1094, 0
      %1101 = vmatprep.subr.mxu0 0.0
      %1102 = vmatpush1.msra.mxu0 0.0
      %1103 = vmatprep.subr.mxu0 0.0
      %1104 = vmatpush1.msra.mxu0 0.0
      %1105 = vmatprep.subr.mxu0 0.0
      %1106 = vmatpush1.msra.mxu0 0.0
      %1107 = vmatprep.subr.mxu0 0.0
      %1108 = vmatpush1.msra.mxu0 0.0
      %1109 = vmatprep.subr.mxu0 0.0
      %1110 = vmatpush1.msra.mxu0 0.0
      %1111 = vmatprep.subr.mxu0 0.0
      %1112 = vmatpush1.msra.mxu0 0.0
      %1113 = vmatprep.subr.mxu0 0.0
      %1114 = vmatpush1.msra.mxu0 0.0
      %1115 = vmatprep.subr.mxu0 0.0
      %1116 = vmatpush1.msra.mxu0 0.0
      %1117 = vmatprep.subr.mxu0 0.0
      %1118 = vmatpush1.msra.mxu0 0.0
      %1119 = vmatprep.subr.mxu0 0.0
      %1120 = vmatpush1.msra.mxu0 0.0
      %1121 = vmatprep.subr.mxu0 0.0
      %1122 = vmatpush1.msra.mxu0 0.0
      %1123 = vmatprep.subr.mxu0 0.0
      %1124 = vmatpush1.msra.mxu0 0.0
      %1125 = vmatprep.subr.mxu0 0.0
      %1126 = vmatpush1.msra.mxu0 0.0
      %1127 = vmatprep.subr.mxu0 0.0
      %1128 = vmatpush1.msra.mxu0 0.0
      %1129 = vmatprep.subr.mxu0 0.0
      %1130 = vmatpush1.msra.mxu0 0.0
      %1131 = vmatprep.subr.mxu0 0.0
      %1132 = vmatpush1.msra.mxu0 %v1096
      %1133 = vmatprep.subr.mxu0 0.0
      %1134 = vmatpush2.msra.mxu0 0.0
      %1135 = vmatprep.subr.mxu0 0.0
      %1136 = vmatpush2.msra.mxu0 0.0
      %1137 = vmatprep.subr.mxu0 0.0
      %1138 = vmatpush2.msra.mxu0 0.0
      %1139 = vmatprep.subr.mxu0 0.0
      %1140 = vmatpush2.msra.mxu0 0.0
      %1141 = vmatprep.subr.mxu0 0.0
      %1142 = vmatpush2.msra.mxu0 0.0
      %1143 = vmatprep.subr.mxu0 0.0
      %1144 = vmatpush2.msra.mxu0 0.0
      %1145 = vmatprep.subr.mxu0 0.0
      %1146 = vmatpush2.msra.mxu0 0.0
      %1147 = vmatprep.subr.mxu0 0.0
      %1148 = vmatpush2.msra.mxu0 0.0
      %1149 = vmatprep.subr.mxu0 0.0
      %1150 = vmatpush2.msra.mxu0 0.0
      %1151 = vmatprep.subr.mxu0 0.0
      %1152 = vmatpush2.msra.mxu0 0.0
      %1153 = vmatprep.subr.mxu0 0.0
      %1154 = vmatpush2.msra.mxu0 0.0
      %1155 = vmatprep.subr.mxu0 0.0
      %1156 = vmatpush2.msra.mxu0 0.0
      %1157 = vmatprep.subr.mxu0 0.0
      %1158 = vmatpush2.msra.mxu0 0.0
      %1159 = vmatprep.subr.mxu0 0.0
      %1160 = vmatpush2.msra.mxu0 0.0
      %1161 = vmatprep.subr.mxu0 0.0
      %1162 = vmatpush2.msra.mxu0 0.0
      %1163 = vmatprep.subr.mxu0 0.0
      %1164 = vmatpush2.msra.mxu0 0.0
      %1165 = vmatprep.mubr.f32.mxu0 0.0
      %1166 = vmatmul.mubr.f32.gmra.mxu0 %v1099
      %v1167 = vpop.f32.mrf.mxu0
      %v1168 = vadd.f32 0.0, %v1167
      %v1169 = vpop.f32.mrf.mxu0
      %1170 = vdwg.mxu0
      %1171 = vrot.lane.b32.xlu0 %v470, 112
      %v1172 = vpop.permute.xlu0 %1171
      %1173 = vrot.lane.b32.xlu0 %v470, 80
      %v1174 = vpop.permute.xlu0 %1173
      %v1175 = vsel %vm476, %v1172, 0
      %v1177 = vsel %vm476, %v1174, 0
      %1179 = vmatprep.subr.mxu0 0.0
      %1180 = vmatpush1.xpose.msra.mxu0 0.0
      %1181 = vmatprep.subr.mxu0 0.0
      %1182 = vmatpush1.xpose.msra.mxu0 0.0
      %1183 = vmatprep.subr.mxu0 0.0
      %1184 = vmatpush1.xpose.msra.mxu0 0.0
      %1185 = vmatprep.subr.mxu0 0.0
      %1186 = vmatpush1.xpose.msra.mxu0 0.0
      %1187 = vmatprep.subr.mxu0 0.0
      %1188 = vmatpush1.xpose.msra.mxu0 0.0
      %1189 = vmatprep.subr.mxu0 0.0
      %1190 = vmatpush1.xpose.msra.mxu0 0.0
      %1191 = vmatprep.subr.mxu0 0.0
      %1192 = vmatpush1.xpose.msra.mxu0 0.0
      %1193 = vmatprep.subr.mxu0 0.0
      %1194 = vmatpush1.xpose.msra.mxu0 0.0
      %1195 = vmatprep.subr.mxu0 0.0
      %1196 = vmatpush1.xpose.msra.mxu0 0.0
      %1197 = vmatprep.subr.mxu0 0.0
      %1198 = vmatpush1.xpose.msra.mxu0 0.0
      %1199 = vmatprep.subr.mxu0 0.0
      %1200 = vmatpush1.xpose.msra.mxu0 0.0
      %1201 = vmatprep.subr.mxu0 0.0
      %1202 = vmatpush1.xpose.msra.mxu0 0.0
      %1203 = vmatprep.subr.mxu0 0.0
      %1204 = vmatpush1.xpose.msra.mxu0 0.0
      %1205 = vmatprep.subr.mxu0 0.0
      %1206 = vmatpush1.xpose.msra.mxu0 0.0
      %1207 = vmatprep.subr.mxu0 0.0
      %1208 = vmatpush1.xpose.msra.mxu0 0.0
      %1209 = vmatprep.subr.mxu0 0.0
      %1210 = vmatpush1.xpose.msra.mxu0 %v1177
      %1211 = vmatprep.subr.mxu0 0.0
      %1212 = vmatpush2.xpose.msra.mxu0 0.0
      %1213 = vmatprep.subr.mxu0 0.0
      %1214 = vmatpush2.xpose.msra.mxu0 0.0
      %1215 = vmatprep.subr.mxu0 0.0
      %1216 = vmatpush2.xpose.msra.mxu0 0.0
      %1217 = vmatprep.subr.mxu0 0.0
      %1218 = vmatpush2.xpose.msra.mxu0 0.0
      %1219 = vmatprep.subr.mxu0 0.0
      %1220 = vmatpush2.xpose.msra.mxu0 0.0
      %1221 = vmatprep.subr.mxu0 0.0
      %1222 = vmatpush2.xpose.msra.mxu0 0.0
      %1223 = vmatprep.subr.mxu0 0.0
      %1224 = vmatpush2.xpose.msra.mxu0 0.0
      %1225 = vmatprep.subr.mxu0 0.0
      %1226 = vmatpush2.xpose.msra.mxu0 0.0
      %1227 = vmatprep.subr.mxu0 0.0
      %1228 = vmatpush2.xpose.msra.mxu0 0.0
      %1229 = vmatprep.subr.mxu0 0.0
      %1230 = vmatpush2.xpose.msra.mxu0 0.0
      %1231 = vmatprep.subr.mxu0 0.0
      %1232 = vmatpush2.xpose.msra.mxu0 0.0
      %1233 = vmatprep.subr.mxu0 0.0
      %1234 = vmatpush2.xpose.msra.mxu0 0.0
      %1235 = vmatprep.subr.mxu0 0.0
      %1236 = vmatpush2.xpose.msra.mxu0 0.0
      %1237 = vmatprep.subr.mxu0 0.0
      %1238 = vmatpush2.xpose.msra.mxu0 0.0
      %1239 = vmatprep.subr.mxu0 0.0
      %1240 = vmatpush2.xpose.msra.mxu0 0.0
      %1241 = vmatprep.subr.mxu0 0.0
      %1242 = vmatpush2.xpose.msra.mxu0 0.0
      %1243 = vmatprep.mubr.f32.mxu0 0.0
      %1244 = vmatmul.mubr.f32.gmra.mxu0 %v1175
      %v1245 = vpop.f32.mrf.mxu0
      %v1246 = vadd.f32 0.0, %v1245
      %v1247 = vpop.f32.mrf.mxu0
      %1248 = vdwg.mxu0
      %v1249 = vmul.f32 %v1246, 0.5
      %v1250 = vsel %vm552, %v1249, -inf
      %1251 = vmax.xlane.f32.xlu0 %v1250
      %v1252 = vpop.xlane.xlu0 %1251
      %v1253 = vsub.f32 %v1249, %v1252
      %v1254 = vmul.f32 %v1253, 1.442695
      %v1255 = vpow.pop %v1254
      %v1256 = vsel %vm552, %v1255, 0.0
      %1257 = vadd.xlane.f32.xlu0 %v1256
      %v1258 = vpop.xlane.xlu0 %1257
      %v1259 = vrcp.pop %v1258
      %v1260 = vmul.f32 %v1255, %v1259
      %v1261 = vsel %vm552, %v1260, 0.0
      %v1262 = vrot.slane %v1261, 4
      %v1263 = vadd.f32 %v1261, %v1262
      %v1264 = vrot.slane %v1263, 2
      %v1265 = vadd.f32 %v1263, %v1264
      %v1266 = vrot.slane %v1265, 1
      %v1267 = vadd.f32 %v1265, %v1266
      %v1268 = vmul.f32 %v1267, %v571
      %1269 = vrot.lane.b32.xlu0 %v470, 48
      %v1270 = vpop.permute.xlu0 %1269
      %v1273 = vsel %vm552, %v1268, 0
      %1275 = vmatprep.subr.mxu0 0.0
      %1276 = vmatpush1.msra.mxu0 0.0
      %1277 = vmatprep.subr.mxu0 0.0
      %1278 = vmatpush1.msra.mxu0 0.0
      %1279 = vmatprep.subr.mxu0 0.0
      %1280 = vmatpush1.msra.mxu0 0.0
      %1281 = vmatprep.subr.mxu0 0.0
      %1282 = vmatpush1.msra.mxu0 0.0
      %1283 = vmatprep.subr.mxu0 0.0
      %1284 = vmatpush1.msra.mxu0 0.0
      %1285 = vmatprep.subr.mxu0 0.0
      %1286 = vmatpush1.msra.mxu0 0.0
      %1287 = vmatprep.subr.mxu0 0.0
      %1288 = vmatpush1.msra.mxu0 0.0
      %1289 = vmatprep.subr.mxu0 0.0
      %1290 = vmatpush1.msra.mxu0 0.0
      %1291 = vmatprep.subr.mxu0 0.0
      %1292 = vmatpush1.msra.mxu0 0.0
      %1293 = vmatprep.subr.mxu0 0.0
      %1294 = vmatpush1.msra.mxu0 0.0
      %1295 = vmatprep.subr.mxu0 0.0
      %1296 = vmatpush1.msra.mxu0 0.0
      %1297 = vmatprep.subr.mxu0 0.0
      %1298 = vmatpush1.msra.mxu0 0.0
      %1299 = vmatprep.subr.mxu0 0.0
      %1300 = vmatpush1.msra.mxu0 0.0
      %1301 = vmatprep.subr.mxu0 0.0
      %1302 = vmatpush1.msra.mxu0 0.0
      %1303 = vmatprep.subr.mxu0 0.0
      %1304 = vmatpush1.msra.mxu0 0.0
      %1305 = vmatprep.subr.mxu0 0.0
      %1306 = vmatpush1.msra.mxu0 %v1270
      %1307 = vmatprep.subr.mxu0 0.0
      %1308 = vmatpush2.msra.mxu0 0.0
      %1309 = vmatprep.subr.mxu0 0.0
      %1310 = vmatpush2.msra.mxu0 0.0
      %1311 = vmatprep.subr.mxu0 0.0
      %1312 = vmatpush2.msra.mxu0 0.0
      %1313 = vmatprep.subr.mxu0 0.0
      %1314 = vmatpush2.msra.mxu0 0.0
      %1315 = vmatprep.subr.mxu0 0.0
      %1316 = vmatpush2.msra.mxu0 0.0
      %1317 = vmatprep.subr.mxu0 0.0
      %1318 = vmatpush2.msra.mxu0 0.0
      %1319 = vmatprep.subr.mxu0 0.0
      %1320 = vmatpush2.msra.mxu0 0.0
      %1321 = vmatprep.subr.mxu0 0.0
      %1322 = vmatpush2.msra.mxu0 0.0
      %1323 = vmatprep.subr.mxu0 0.0
      %1324 = vmatpush2.msra.mxu0 0.0
      %1325 = vmatprep.subr.mxu0 0.0
      %1326 = vmatpush2.msra.mxu0 0.0
      %1327 = vmatprep.subr.mxu0 0.0
      %1328 = vmatpush2.msra.mxu0 0.0
      %1329 = vmatprep.subr.mxu0 0.0
      %1330 = vmatpush2.msra.mxu0 0.0
      %1331 = vmatprep.subr.mxu0 0.0
      %1332 = vmatpush2.msra.mxu0 0.0
      %1333 = vmatprep.subr.mxu0 0.0
      %1334 = vmatpush2.msra.mxu0 0.0
      %1335 = vmatprep.subr.mxu0 0.0
      %1336 = vmatpush2.msra.mxu0 0.0
      %1337 = vmatprep.subr.mxu0 0.0
      %1338 = vmatpush2.msra.mxu0 0.0
      %1339 = vmatprep.mubr.f32.mxu0 0.0
      %1340 = vmatmul.mubr.f32.gmra.mxu0 %v1273
      %v1341 = vpop.f32.mrf.mxu0
      %v1342 = vadd.f32 0.0, %v1341
      %v1343 = vpop.f32.mrf.mxu0
      %1344 = vdwg.mxu0
      %1345 = vrot.lane.b32.xlu0 %v470, 108
      %v1346 = vpop.permute.xlu0 %1345
      %1347 = vrot.lane.b32.xlu0 %v470, 76
      %v1348 = vpop.permute.xlu0 %1347
      %v1349 = vsel %vm476, %v1346, 0
      %v1351 = vsel %vm476, %v1348, 0
      %1353 = vmatprep.subr.mxu0 0.0
      %1354 = vmatpush1.xpose.msra.mxu0 0.0
      %1355 = vmatprep.subr.mxu0 0.0
      %1356 = vmatpush1.xpose.msra.mxu0 0.0
      %1357 = vmatprep.subr.mxu0 0.0
      %1358 = vmatpush1.xpose.msra.mxu0 0.0
      %1359 = vmatprep.subr.mxu0 0.0
      %1360 = vmatpush1.xpose.msra.mxu0 0.0
      %1361 = vmatprep.subr.mxu0 0.0
      %1362 = vmatpush1.xpose.msra.mxu0 0.0
      %1363 = vmatprep.subr.mxu0 0.0
      %1364 = vmatpush1.xpose.msra.mxu0 0.0
      %1365 = vmatprep.subr.mxu0 0.0
      %1366 = vmatpush1.xpose.msra.mxu0 0.0
      %1367 = vmatprep.subr.mxu0 0.0
      %1368 = vmatpush1.xpose.msra.mxu0 0.0
      %1369 = vmatprep.subr.mxu0 0.0
      %1370 = vmatpush1.xpose.msra.mxu0 0.0
      %1371 = vmatprep.subr.mxu0 0.0
      %1372 = vmatpush1.xpose.msra.mxu0 0.0
      %1373 = vmatprep.subr.mxu0 0.0
      %1374 = vmatpush1.xpose.msra.mxu0 0.0
      %1375 = vmatprep.subr.mxu0 0.0
      %1376 = vmatpush1.xpose.msra.mxu0 0.0
      %1377 = vmatprep.subr.mxu0 0.0
      %1378 = vmatpush1.xpose.msra.mxu0 0.0
      %1379 = vmatprep.subr.mxu0 0.0
      %1380 = vmatpush1.xpose.msra.mxu0 0.0
      %1381 = vmatprep.subr.mxu0 0.0
      %1382 = vmatpush1.xpose.msra.mxu0 0.0
      %1383 = vmatprep.subr.mxu0 0.0
      %1384 = vmatpush1.xpose.msra.mxu0 %v1351
      %1385 = vmatprep.subr.mxu0 0.0
      %1386 = vmatpush2.xpose.msra.mxu0 0.0
      %1387 = vmatprep.subr.mxu0 0.0
      %1388 = vmatpush2.xpose.msra.mxu0 0.0
      %1389 = vmatprep.subr.mxu0 0.0
      %1390 = vmatpush2.xpose.msra.mxu0 0.0
      %1391 = vmatprep.subr.mxu0 0.0
      %1392 = vmatpush2.xpose.msra.mxu0 0.0
      %1393 = vmatprep.subr.mxu0 0.0
      %1394 = vmatpush2.xpose.msra.mxu0 0.0
      %1395 = vmatprep.subr.mxu0 0.0
      %1396 = vmatpush2.xpose.msra.mxu0 0.0
      %1397 = vmatprep.subr.mxu0 0.0
      %1398 = vmatpush2.xpose.msra.mxu0 0.0
      %1399 = vmatprep.subr.mxu0 0.0
      %1400 = vmatpush2.xpose.msra.mxu0 0.0
      %1401 = vmatprep.subr.mxu0 0.0
      %1402 = vmatpush2.xpose.msra.mxu0 0.0
      %1403 = vmatprep.subr.mxu0 0.0
      %1404 = vmatpush2.xpose.msra.mxu0 0.0
      %1405 = vmatprep.subr.mxu0 0.0
      %1406 = vmatpush2.xpose.msra.mxu0 0.0
      %1407 = vmatprep.subr.mxu0 0.0
      %1408 = vmatpush2.xpose.msra.mxu0 0.0
      %1409 = vmatprep.subr.mxu0 0.0
      %1410 = vmatpush2.xpose.msra.mxu0 0.0
      %1411 = vmatprep.subr.mxu0 0.0
      %1412 = vmatpush2.xpose.msra.mxu0 0.0
      %1413 = vmatprep.subr.mxu0 0.0
      %1414 = vmatpush2.xpose.msra.mxu0 0.0
      %1415 = vmatprep.subr.mxu0 0.0
      %1416 = vmatpush2.xpose.msra.mxu0 0.0
      %1417 = vmatprep.mubr.f32.mxu0 0.0
      %1418 = vmatmul.mubr.f32.gmra.mxu0 %v1349
      %v1419 = vpop.f32.mrf.mxu0
      %v1420 = vadd.f32 0.0, %v1419
      %v1421 = vpop.f32.mrf.mxu0
      %1422 = vdwg.mxu0
      %v1423 = vmul.f32 %v1420, 0.5
      %v1424 = vsel %vm552, %v1423, -inf
      %1425 = vmax.xlane.f32.xlu0 %v1424
      %v1426 = vpop.xlane.xlu0 %1425
      %v1427 = vsub.f32 %v1423, %v1426
      %v1428 = vmul.f32 %v1427, 1.442695
      %v1429 = vpow.pop %v1428
      %v1430 = vsel %vm552, %v1429, 0.0
      %1431 = vadd.xlane.f32.xlu0 %v1430
      %v1432 = vpop.xlane.xlu0 %1431
      %v1433 = vrcp.pop %v1432
      %v1434 = vmul.f32 %v1429, %v1433
      %v1435 = vsel %vm552, %v1434, 0.0
      %v1436 = vrot.slane %v1435, 4
      %v1437 = vadd.f32 %v1435, %v1436
      %v1438 = vrot.slane %v1437, 2
      %v1439 = vadd.f32 %v1437, %v1438
      %v1440 = vrot.slane %v1439, 1
      %v1441 = vadd.f32 %v1439, %v1440
      %v1442 = vmul.f32 %v1441, %v571
      %1443 = vrot.lane.b32.xlu0 %v470, 44
      %v1444 = vpop.permute.xlu0 %1443
      %v1447 = vsel %vm552, %v1442, 0
      %1449 = vmatprep.subr.mxu0 0.0
      %1450 = vmatpush1.msra.mxu0 0.0
      %1451 = vmatprep.subr.mxu0 0.0
      %1452 = vmatpush1.msra.mxu0 0.0
      %1453 = vmatprep.subr.mxu0 0.0
      %1454 = vmatpush1.msra.mxu0 0.0
      %1455 = vmatprep.subr.mxu0 0.0
      %1456 = vmatpush1.msra.mxu0 0.0
      %1457 = vmatprep.subr.mxu0 0.0
      %1458 = vmatpush1.msra.mxu0 0.0
      %1459 = vmatprep.subr.mxu0 0.0
      %1460 = vmatpush1.msra.mxu0 0.0
      %1461 = vmatprep.subr.mxu0 0.0
      %1462 = vmatpush1.msra.mxu0 0.0
      %1463 = vmatprep.subr.mxu0 0.0
      %1464 = vmatpush1.msra.mxu0 0.0
      %1465 = vmatprep.subr.mxu0 0.0
      %1466 = vmatpush1.msra.mxu0 0.0
      %1467 = vmatprep.subr.mxu0 0.0
      %1468 = vmatpush1.msra.mxu0 0.0
      %1469 = vmatprep.subr.mxu0 0.0
      %1470 = vmatpush1.msra.mxu0 0.0
      %1471 = vmatprep.subr.mxu0 0.0
      %1472 = vmatpush1.msra.mxu0 0.0
      %1473 = vmatprep.subr.mxu0 0.0
      %1474 = vmatpush1.msra.mxu0 0.0
      %1475 = vmatprep.subr.mxu0 0.0
      %1476 = vmatpush1.msra.mxu0 0.0
      %1477 = vmatprep.subr.mxu0 0.0
      %1478 = vmatpush1.msra.mxu0 0.0
      %1479 = vmatprep.subr.mxu0 0.0
      %1480 = vmatpush1.msra.mxu0 %v1444
      %1481 = vmatprep.subr.mxu0 0.0
      %1482 = vmatpush2.msra.mxu0 0.0
      %1483 = vmatprep.subr.mxu0 0.0
      %1484 = vmatpush2.msra.mxu0 0.0
      %1485 = vmatprep.subr.mxu0 0.0
      %1486 = vmatpush2.msra.mxu0 0.0
      %1487 = vmatprep.subr.mxu0 0.0
      %1488 = vmatpush2.msra.mxu0 0.0
      %1489 = vmatprep.subr.mxu0 0.0
      %1490 = vmatpush2.msra.mxu0 0.0
      %1491 = vmatprep.subr.mxu0 0.0
      %1492 = vmatpush2.msra.mxu0 0.0
      %1493 = vmatprep.subr.mxu0 0.0
      %1494 = vmatpush2.msra.mxu0 0.0
      %1495 = vmatprep.subr.mxu0 0.0
      %1496 = vmatpush2.msra.mxu0 0.0
      %1497 = vmatprep.subr.mxu0 0.0
      %1498 = vmatpush2.msra.mxu0 0.0
      %1499 = vmatprep.subr.mxu0 0.0
      %1500 = vmatpush2.msra.mxu0 0.0
      %1501 = vmatprep.subr.mxu0 0.0
      %1502 = vmatpush2.msra.mxu0 0.0
      %1503 = vmatprep.subr.mxu0 0.0
      %1504 = vmatpush2.msra.mxu0 0.0
      %1505 = vmatprep.subr.mxu0 0.0
      %1506 = vmatpush2.msra.mxu0 0.0
      %1507 = vmatprep.subr.mxu0 0.0
      %1508 = vmatpush2.msra.mxu0 0.0
      %1509 = vmatprep.subr.mxu0 0.0
      %1510 = vmatpush2.msra.mxu0 0.0
      %1511 = vmatprep.subr.mxu0 0.0
      %1512 = vmatpush2.msra.mxu0 0.0
      %1513 = vmatprep.mubr.f32.mxu0 0.0
      %1514 = vmatmul.mubr.f32.gmra.mxu0 %v1447
      %v1515 = vpop.f32.mrf.mxu0
      %v1516 = vadd.f32 0.0, %v1515
      %v1517 = vpop.f32.mrf.mxu0
      %1518 = vdwg.mxu0
      %1519 = vrot.lane.b32.xlu0 %v470, 104
      %v1520 = vpop.permute.xlu0 %1519
      %1521 = vrot.lane.b32.xlu0 %v470, 72
      %v1522 = vpop.permute.xlu0 %1521
      %v1523 = vsel %vm476, %v1520, 0
      %v1525 = vsel %vm476, %v1522, 0
      %1527 = vmatprep.subr.mxu0 0.0
      %1528 = vmatpush1.xpose.msra.mxu0 0.0
      %1529 = vmatprep.subr.mxu0 0.0
      %1530 = vmatpush1.xpose.msra.mxu0 0.0
      %1531 = vmatprep.subr.mxu0 0.0
      %1532 = vmatpush1.xpose.msra.mxu0 0.0
      %1533 = vmatprep.subr.mxu0 0.0
      %1534 = vmatpush1.xpose.msra.mxu0 0.0
      %1535 = vmatprep.subr.mxu0 0.0
      %1536 = vmatpush1.xpose.msra.mxu0 0.0
      %1537 = vmatprep.subr.mxu0 0.0
      %1538 = vmatpush1.xpose.msra.mxu0 0.0
      %1539 = vmatprep.subr.mxu0 0.0
      %1540 = vmatpush1.xpose.msra.mxu0 0.0
      %1541 = vmatprep.subr.mxu0 0.0
      %1542 = vmatpush1.xpose.msra.mxu0 0.0
      %1543 = vmatprep.subr.mxu0 0.0
      %1544 = vmatpush1.xpose.msra.mxu0 0.0
      %1545 = vmatprep.subr.mxu0 0.0
      %1546 = vmatpush1.xpose.msra.mxu0 0.0
      %1547 = vmatprep.subr.mxu0 0.0
      %1548 = vmatpush1.xpose.msra.mxu0 0.0
      %1549 = vmatprep.subr.mxu0 0.0
      %1550 = vmatpush1.xpose.msra.mxu0 0.0
      %1551 = vmatprep.subr.mxu0 0.0
      %1552 = vmatpush1.xpose.msra.mxu0 0.0
      %1553 = vmatprep.subr.mxu0 0.0
      %1554 = vmatpush1.xpose.msra.mxu0 0.0
      %1555 = vmatprep.subr.mxu0 0.0
      %1556 = vmatpush1.xpose.msra.mxu0 0.0
      %1557 = vmatprep.subr.mxu0 0.0
      %1558 = vmatpush1.xpose.msra.mxu0 %v1525
      %1559 = vmatprep.subr.mxu0 0.0
      %1560 = vmatpush2.xpose.msra.mxu0 0.0
      %1561 = vmatprep.subr.mxu0 0.0
      %1562 = vmatpush2.xpose.msra.mxu0 0.0
      %1563 = vmatprep.subr.mxu0 0.0
      %1564 = vmatpush2.xpose.msra.mxu0 0.0
      %1565 = vmatprep.subr.mxu0 0.0
      %1566 = vmatpush2.xpose.msra.mxu0 0.0
      %1567 = vmatprep.subr.mxu0 0.0
      %1568 = vmatpush2.xpose.msra.mxu0 0.0
      %1569 = vmatprep.subr.mxu0 0.0
      %1570 = vmatpush2.xpose.msra.mxu0 0.0
      %1571 = vmatprep.subr.mxu0 0.0
      %1572 = vmatpush2.xpose.msra.mxu0 0.0
      %1573 = vmatprep.subr.mxu0 0.0
      %1574 = vmatpush2.xpose.msra.mxu0 0.0
      %1575 = vmatprep.subr.mxu0 0.0
      %1576 = vmatpush2.xpose.msra.mxu0 0.0
      %1577 = vmatprep.subr.mxu0 0.0
      %1578 = vmatpush2.xpose.msra.mxu0 0.0
      %1579 = vmatprep.subr.mxu0 0.0
      %1580 = vmatpush2.xpose.msra.mxu0 0.0
      %1581 = vmatprep.subr.mxu0 0.0
      %1582 = vmatpush2.xpose.msra.mxu0 0.0
      %1583 = vmatprep.subr.mxu0 0.0
      %1584 = vmatpush2.xpose.msra.mxu0 0.0
      %1585 = vmatprep.subr.mxu0 0.0
      %1586 = vmatpush2.xpose.msra.mxu0 0.0
      %1587 = vmatprep.subr.mxu0 0.0
      %1588 = vmatpush2.xpose.msra.mxu0 0.0
      %1589 = vmatprep.subr.mxu0 0.0
      %1590 = vmatpush2.xpose.msra.mxu0 0.0
      %1591 = vmatprep.mubr.f32.mxu0 0.0
      %1592 = vmatmul.mubr.f32.gmra.mxu0 %v1523
      %v1593 = vpop.f32.mrf.mxu0
      %v1594 = vadd.f32 0.0, %v1593
      %v1595 = vpop.f32.mrf.mxu0
      %1596 = vdwg.mxu0
      %v1597 = vmul.f32 %v1594, 0.5
      %v1598 = vsel %vm552, %v1597, -inf
      %1599 = vmax.xlane.f32.xlu0 %v1598
      %v1600 = vpop.xlane.xlu0 %1599
      %v1601 = vsub.f32 %v1597, %v1600
      %v1602 = vmul.f32 %v1601, 1.442695
      %v1603 = vpow.pop %v1602
      %v1604 = vsel %vm552, %v1603, 0.0
      %1605 = vadd.xlane.f32.xlu0 %v1604
      %v1606 = vpop.xlane.xlu0 %1605
      %v1607 = vrcp.pop %v1606
      %v1608 = vmul.f32 %v1603, %v1607
      %v1609 = vsel %vm552, %v1608, 0.0
      %v1610 = vrot.slane %v1609, 4
      %v1611 = vadd.f32 %v1609, %v1610
      %v1612 = vrot.slane %v1611, 2
      %v1613 = vadd.f32 %v1611, %v1612
      %v1614 = vrot.slane %v1613, 1
      %v1615 = vadd.f32 %v1613, %v1614
      %v1616 = vmul.f32 %v1615, %v571
      %1617 = vrot.lane.b32.xlu0 %v470, 40
      %v1618 = vpop.permute.xlu0 %1617
      %v1621 = vsel %vm552, %v1616, 0
      %1623 = vmatprep.subr.mxu0 0.0
      %1624 = vmatpush1.msra.mxu0 0.0
      %1625 = vmatprep.subr.mxu0 0.0
      %1626 = vmatpush1.msra.mxu0 0.0
      %1627 = vmatprep.subr.mxu0 0.0
      %1628 = vmatpush1.msra.mxu0 0.0
      %1629 = vmatprep.subr.mxu0 0.0
      %1630 = vmatpush1.msra.mxu0 0.0
      %1631 = vmatprep.subr.mxu0 0.0
      %1632 = vmatpush1.msra.mxu0 0.0
      %1633 = vmatprep.subr.mxu0 0.0
      %1634 = vmatpush1.msra.mxu0 0.0
      %1635 = vmatprep.subr.mxu0 0.0
      %1636 = vmatpush1.msra.mxu0 0.0
      %1637 = vmatprep.subr.mxu0 0.0
      %1638 = vmatpush1.msra.mxu0 0.0
      %1639 = vmatprep.subr.mxu0 0.0
      %1640 = vmatpush1.msra.mxu0 0.0
      %1641 = vmatprep.subr.mxu0 0.0
      %1642 = vmatpush1.msra.mxu0 0.0
      %1643 = vmatprep.subr.mxu0 0.0
      %1644 = vmatpush1.msra.mxu0 0.0
      %1645 = vmatprep.subr.mxu0 0.0
      %1646 = vmatpush1.msra.mxu0 0.0
      %1647 = vmatprep.subr.mxu0 0.0
      %1648 = vmatpush1.msra.mxu0 0.0
      %1649 = vmatprep.subr.mxu0 0.0
      %1650 = vmatpush1.msra.mxu0 0.0
      %1651 = vmatprep.subr.mxu0 0.0
      %1652 = vmatpush1.msra.mxu0 0.0
      %1653 = vmatprep.subr.mxu0 0.0
      %1654 = vmatpush1.msra.mxu0 %v1618
      %1655 = vmatprep.subr.mxu0 0.0
      %1656 = vmatpush2.msra.mxu0 0.0
      %1657 = vmatprep.subr.mxu0 0.0
      %1658 = vmatpush2.msra.mxu0 0.0
      %1659 = vmatprep.subr.mxu0 0.0
      %1660 = vmatpush2.msra.mxu0 0.0
      %1661 = vmatprep.subr.mxu0 0.0
      %1662 = vmatpush2.msra.mxu0 0.0
      %1663 = vmatprep.subr.mxu0 0.0
      %1664 = vmatpush2.msra.mxu0 0.0
      %1665 = vmatprep.subr.mxu0 0.0
      %1666 = vmatpush2.msra.mxu0 0.0
      %1667 = vmatprep.subr.mxu0 0.0
      %1668 = vmatpush2.msra.mxu0 0.0
      %1669 = vmatprep.subr.mxu0 0.0
      %1670 = vmatpush2.msra.mxu0 0.0
      %1671 = vmatprep.subr.mxu0 0.0
      %1672 = vmatpush2.msra.mxu0 0.0
      %1673 = vmatprep.subr.mxu0 0.0
      %1674 = vmatpush2.msra.mxu0 0.0
      %1675 = vmatprep.subr.mxu0 0.0
      %1676 = vmatpush2.msra.mxu0 0.0
      %1677 = vmatprep.subr.mxu0 0.0
      %1678 = vmatpush2.msra.mxu0 0.0
      %1679 = vmatprep.subr.mxu0 0.0
      %1680 = vmatpush2.msra.mxu0 0.0
      %1681 = vmatprep.subr.mxu0 0.0
      %1682 = vmatpush2.msra.mxu0 0.0
      %1683 = vmatprep.subr.mxu0 0.0
      %1684 = vmatpush2.msra.mxu0 0.0
      %1685 = vmatprep.subr.mxu0 0.0
      %1686 = vmatpush2.msra.mxu0 0.0
      %1687 = vmatprep.mubr.f32.mxu0 0.0
      %1688 = vmatmul.mubr.f32.gmra.mxu0 %v1621
      %v1689 = vpop.f32.mrf.mxu0
      %v1690 = vadd.f32 0.0, %v1689
      %v1691 = vpop.f32.mrf.mxu0
      %1692 = vdwg.mxu0
      %1693 = vrot.lane.b32.xlu0 %v470, 100
      %v1694 = vpop.permute.xlu0 %1693
      %1695 = vrot.lane.b32.xlu0 %v470, 68
      %v1696 = vpop.permute.xlu0 %1695
      %v1697 = vsel %vm476, %v1694, 0
      %v1699 = vsel %vm476, %v1696, 0
      %1701 = vmatprep.subr.mxu0 0.0
      %1702 = vmatpush1.xpose.msra.mxu0 0.0
      %1703 = vmatprep.subr.mxu0 0.0
      %1704 = vmatpush1.xpose.msra.mxu0 0.0
      %1705 = vmatprep.subr.mxu0 0.0
      %1706 = vmatpush1.xpose.msra.mxu0 0.0
      %1707 = vmatprep.subr.mxu0 0.0
      %1708 = vmatpush1.xpose.msra.mxu0 0.0
      %1709 = vmatprep.subr.mxu0 0.0
      %1710 = vmatpush1.xpose.msra.mxu0 0.0
      %1711 = vmatprep.subr.mxu0 0.0
      %1712 = vmatpush1.xpose.msra.mxu0 0.0
      %1713 = vmatprep.subr.mxu0 0.0
      %1714 = vmatpush1.xpose.msra.mxu0 0.0
      %1715 = vmatprep.subr.mxu0 0.0
      %1716 = vmatpush1.xpose.msra.mxu0 0.0
      %1717 = vmatprep.subr.mxu0 0.0
      %1718 = vmatpush1.xpose.msra.mxu0 0.0
      %1719 = vmatprep.subr.mxu0 0.0
      %1720 = vmatpush1.xpose.msra.mxu0 0.0
      %1721 = vmatprep.subr.mxu0 0.0
      %1722 = vmatpush1.xpose.msra.mxu0 0.0
      %1723 = vmatprep.subr.mxu0 0.0
      %1724 = vmatpush1.xpose.msra.mxu0 0.0
      %1725 = vmatprep.subr.mxu0 0.0
      %1726 = vmatpush1.xpose.msra.mxu0 0.0
      %1727 = vmatprep.subr.mxu0 0.0
      %1728 = vmatpush1.xpose.msra.mxu0 0.0
      %1729 = vmatprep.subr.mxu0 0.0
      %1730 = vmatpush1.xpose.msra.mxu0 0.0
      %1731 = vmatprep.subr.mxu0 0.0
      %1732 = vmatpush1.xpose.msra.mxu0 %v1699
      %1733 = vmatprep.subr.mxu0 0.0
      %1734 = vmatpush2.xpose.msra.mxu0 0.0
      %1735 = vmatprep.subr.mxu0 0.0
      %1736 = vmatpush2.xpose.msra.mxu0 0.0
      %1737 = vmatprep.subr.mxu0 0.0
      %1738 = vmatpush2.xpose.msra.mxu0 0.0
      %1739 = vmatprep.subr.mxu0 0.0
      %1740 = vmatpush2.xpose.msra.mxu0 0.0
      %1741 = vmatprep.subr.mxu0 0.0
      %1742 = vmatpush2.xpose.msra.mxu0 0.0
      %1743 = vmatprep.subr.mxu0 0.0
      %1744 = vmatpush2.xpose.msra.mxu0 0.0
      %1745 = vmatprep.subr.mxu0 0.0
      %1746 = vmatpush2.xpose.msra.mxu0 0.0
      %1747 = vmatprep.subr.mxu0 0.0
      %1748 = vmatpush2.xpose.msra.mxu0 0.0
      %1749 = vmatprep.subr.mxu0 0.0
      %1750 = vmatpush2.xpose.msra.mxu0 0.0
      %1751 = vmatprep.subr.mxu0 0.0
      %1752 = vmatpush2.xpose.msra.mxu0 0.0
      %1753 = vmatprep.subr.mxu0 0.0
      %1754 = vmatpush2.xpose.msra.mxu0 0.0
      %1755 = vmatprep.subr.mxu0 0.0
      %1756 = vmatpush2.xpose.msra.mxu0 0.0
      %1757 = vmatprep.subr.mxu0 0.0
      %1758 = vmatpush2.xpose.msra.mxu0 0.0
      %1759 = vmatprep.subr.mxu0 0.0
      %1760 = vmatpush2.xpose.msra.mxu0 0.0
      %1761 = vmatprep.subr.mxu0 0.0
      %1762 = vmatpush2.xpose.msra.mxu0 0.0
      %1763 = vmatprep.subr.mxu0 0.0
      %1764 = vmatpush2.xpose.msra.mxu0 0.0
      %1765 = vmatprep.mubr.f32.mxu0 0.0
      %1766 = vmatmul.mubr.f32.gmra.mxu0 %v1697
      %v1767 = vpop.f32.mrf.mxu0
      %v1768 = vadd.f32 0.0, %v1767
      %v1769 = vpop.f32.mrf.mxu0
      %1770 = vdwg.mxu0
      %v1771 = vmul.f32 %v1768, 0.5
      %v1772 = vsel %vm552, %v1771, -inf
      %1773 = vmax.xlane.f32.xlu0 %v1772
      %v1774 = vpop.xlane.xlu0 %1773
      %v1775 = vsub.f32 %v1771, %v1774
      %v1776 = vmul.f32 %v1775, 1.442695
      %v1777 = vpow.pop %v1776
      %v1778 = vsel %vm552, %v1777, 0.0
      %1779 = vadd.xlane.f32.xlu0 %v1778
      %v1780 = vpop.xlane.xlu0 %1779
      %v1781 = vrcp.pop %v1780
      %v1782 = vmul.f32 %v1777, %v1781
      %v1783 = vsel %vm552, %v1782, 0.0
      %v1784 = vrot.slane %v1783, 4
      %v1785 = vadd.f32 %v1783, %v1784
      %v1786 = vrot.slane %v1785, 2
      %v1787 = vadd.f32 %v1785, %v1786
      %v1788 = vrot.slane %v1787, 1
      %v1789 = vadd.f32 %v1787, %v1788
      %v1790 = vmul.f32 %v1789, %v571
      %1791 = vrot.lane.b32.xlu0 %v470, 36
      %v1792 = vpop.permute.xlu0 %1791
      %v1795 = vsel %vm552, %v1790, 0
      %1797 = vmatprep.subr.mxu0 0.0
      %1798 = vmatpush1.msra.mxu0 0.0
      %1799 = vmatprep.subr.mxu0 0.0
      %1800 = vmatpush1.msra.mxu0 0.0
      %1801 = vmatprep.subr.mxu0 0.0
      %1802 = vmatpush1.msra.mxu0 0.0
      %1803 = vmatprep.subr.mxu0 0.0
      %1804 = vmatpush1.msra.mxu0 0.0
      %1805 = vmatprep.subr.mxu0 0.0
      %1806 = vmatpush1.msra.mxu0 0.0
      %1807 = vmatprep.subr.mxu0 0.0
      %1808 = vmatpush1.msra.mxu0 0.0
      %1809 = vmatprep.subr.mxu0 0.0
      %1810 = vmatpush1.msra.mxu0 0.0
      %1811 = vmatprep.subr.mxu0 0.0
      %1812 = vmatpush1.msra.mxu0 0.0
      %1813 = vmatprep.subr.mxu0 0.0
      %1814 = vmatpush1.msra.mxu0 0.0
      %1815 = vmatprep.subr.mxu0 0.0
      %1816 = vmatpush1.msra.mxu0 0.0
      %1817 = vmatprep.subr.mxu0 0.0
      %1818 = vmatpush1.msra.mxu0 0.0
      %1819 = vmatprep.subr.mxu0 0.0
      %1820 = vmatpush1.msra.mxu0 0.0
      %1821 = vmatprep.subr.mxu0 0.0
      %1822 = vmatpush1.msra.mxu0 0.0
      %1823 = vmatprep.subr.mxu0 0.0
      %1824 = vmatpush1.msra.mxu0 0.0
      %1825 = vmatprep.subr.mxu0 0.0
      %1826 = vmatpush1.msra.mxu0 0.0
      %1827 = vmatprep.subr.mxu0 0.0
      %1828 = vmatpush1.msra.mxu0 %v1792
      %1829 = vmatprep.subr.mxu0 0.0
      %1830 = vmatpush2.msra.mxu0 0.0
      %1831 = vmatprep.subr.mxu0 0.0
      %1832 = vmatpush2.msra.mxu0 0.0
      %1833 = vmatprep.subr.mxu0 0.0
      %1834 = vmatpush2.msra.mxu0 0.0
      %1835 = vmatprep.subr.mxu0 0.0
      %1836 = vmatpush2.msra.mxu0 0.0
      %1837 = vmatprep.subr.mxu0 0.0
      %1838 = vmatpush2.msra.mxu0 0.0
      %1839 = vmatprep.subr.mxu0 0.0
      %1840 = vmatpush2.msra.mxu0 0.0
      %1841 = vmatprep.subr.mxu0 0.0
      %1842 = vmatpush2.msra.mxu0 0.0
      %1843 = vmatprep.subr.mxu0 0.0
      %1844 = vmatpush2.msra.mxu0 0.0
      %1845 = vmatprep.subr.mxu0 0.0
      %1846 = vmatpush2.msra.mxu0 0.0
      %1847 = vmatprep.subr.mxu0 0.0
      %1848 = vmatpush2.msra.mxu0 0.0
      %1849 = vmatprep.subr.mxu0 0.0
      %1850 = vmatpush2.msra.mxu0 0.0
      %1851 = vmatprep.subr.mxu0 0.0
      %1852 = vmatpush2.msra.mxu0 0.0
      %1853 = vmatprep.subr.mxu0 0.0
      %1854 = vmatpush2.msra.mxu0 0.0
      %1855 = vmatprep.subr.mxu0 0.0
      %1856 = vmatpush2.msra.mxu0 0.0
      %1857 = vmatprep.subr.mxu0 0.0
      %1858 = vmatpush2.msra.mxu0 0.0
      %1859 = vmatprep.subr.mxu0 0.0
      %1860 = vmatpush2.msra.mxu0 0.0
      %1861 = vmatprep.mubr.f32.mxu0 0.0
      %1862 = vmatmul.mubr.f32.gmra.mxu0 %v1795
      %v1863 = vpop.f32.mrf.mxu0
      %v1864 = vadd.f32 0.0, %v1863
      %v1865 = vpop.f32.mrf.mxu0
      %1866 = vdwg.mxu0
      %1868 = vrot.lane.b32.xlu0 %v820, 4
      %v1869 = vpop.permute.xlu0 %1868
      %1872 = vrot.lane.b32.xlu0 %v994, 8
      %v1873 = vpop.permute.xlu0 %1872
      %1876 = vrot.lane.b32.xlu0 %v1168, 12
      %v1877 = vpop.permute.xlu0 %1876
      %1880 = vrot.lane.b32.xlu0 %v1342, 16
      %v1881 = vpop.permute.xlu0 %1880
      %1884 = vrot.lane.b32.xlu0 %v1516, 20
      %v1885 = vpop.permute.xlu0 %1884
      %1888 = vrot.lane.b32.xlu0 %v1690, 24
      %v1889 = vpop.permute.xlu0 %1888
      %1892 = vrot.lane.b32.xlu0 %v1864, 28
      %v1893 = vpop.permute.xlu0 %1892
      %v1895 = vsel %vm476, %v646, %v1869
      %v1896 = vsel %vm552, %v1895, %v1873
      %vm1897 = vcmask 97280
      %v1898 = vsel %vm1897, %v1896, %v1877
      %vm1899 = vcmask 130048
      %v1900 = vsel %vm1899, %v1898, %v1881
      %vm1901 = vcmask 162816
      %v1902 = vsel %vm1901, %v1900, %v1885
      %vm1903 = vcmask 195584
      %v1904 = vsel %vm1903, %v1902, %v1889
      %vm1905 = vcmask 228352
      %v1906 = vsel %vm1905, %v1904, %v1893
      %v1907 = vld [vmem:[%s3] sm:$0xff]
      %v1908 = vld [vmem:[%s3 + $0x8] sm:$0xff]
      %v1909 = vld [vmem:[%s3 + $0x10] sm:$0xff]
      %v1910 = vld [vmem:[%s3 + $0x18] sm:$0xff]
      %v1911 = vld [vmem:[%s4] sm:$0x1]
      %v1913 = vsel %vm399, %v1906, 0
      %1915 = vmatprep.subr.mxu0 0.0
      %1916 = vmatpush1.msra.mxu0 0.0
      %1917 = vmatprep.subr.mxu0 0.0
      %1918 = vmatpush1.msra.mxu0 0.0
      %1919 = vmatprep.subr.mxu0 0.0
      %1920 = vmatpush1.msra.mxu0 0.0
      %1921 = vmatprep.subr.mxu0 0.0
      %1922 = vmatpush1.msra.mxu0 0.0
      %1923 = vmatprep.subr.mxu0 0.0
      %1924 = vmatpush1.msra.mxu0 0.0
      %1925 = vmatprep.subr.mxu0 0.0
      %1926 = vmatpush1.msra.mxu0 0.0
      %1927 = vmatprep.subr.mxu0 0.0
      %1928 = vmatpush1.msra.mxu0 0.0
      %1929 = vmatprep.subr.mxu0 0.0
      %1930 = vmatpush1.msra.mxu0 0.0
      %1931 = vmatprep.subr.mxu0 0.0
      %1932 = vmatpush1.msra.mxu0 0.0
      %1933 = vmatprep.subr.mxu0 0.0
      %1934 = vmatpush1.msra.mxu0 0.0
      %1935 = vmatprep.subr.mxu0 0.0
      %1936 = vmatpush1.msra.mxu0 0.0
      %1937 = vmatprep.subr.mxu0 0.0
      %1938 = vmatpush1.msra.mxu0 0.0
      %1939 = vmatprep.subr.mxu0 0.0
      %1940 = vmatpush1.msra.mxu0 %v1910
      %1941 = vmatprep.subr.mxu0 0.0
      %1942 = vmatpush1.msra.mxu0 %v1909
      %1943 = vmatprep.subr.mxu0 0.0
      %1944 = vmatpush1.msra.mxu0 %v1908
      %1945 = vmatprep.subr.mxu0 0.0
      %1946 = vmatpush1.msra.mxu0 %v1907
      %1947 = vmatprep.subr.mxu0 0.0
      %1948 = vmatpush2.msra.mxu0 0.0
      %1949 = vmatprep.subr.mxu0 0.0
      %1950 = vmatpush2.msra.mxu0 0.0
      %1951 = vmatprep.subr.mxu0 0.0
      %1952 = vmatpush2.msra.mxu0 0.0
      %1953 = vmatprep.subr.mxu0 0.0
      %1954 = vmatpush2.msra.mxu0 0.0
      %1955 = vmatprep.subr.mxu0 0.0
      %1956 = vmatpush2.msra.mxu0 0.0
      %1957 = vmatprep.subr.mxu0 0.0
      %1958 = vmatpush2.msra.mxu0 0.0
      %1959 = vmatprep.subr.mxu0 0.0
      %1960 = vmatpush2.msra.mxu0 0.0
      %1961 = vmatprep.subr.mxu0 0.0
      %1962 = vmatpush2.msra.mxu0 0.0
      %1963 = vmatprep.subr.mxu0 0.0
      %1964 = vmatpush2.msra.mxu0 0.0
      %1965 = vmatprep.subr.mxu0 0.0
      %1966 = vmatpush2.msra.mxu0 0.0
      %1967 = vmatprep.subr.mxu0 0.0
      %1968 = vmatpush2.msra.mxu0 0.0
      %1969 = vmatprep.subr.mxu0 0.0
      %1970 = vmatpush2.msra.mxu0 0.0
      %1971 = vmatprep.subr.mxu0 0.0
      %1972 = vmatpush2.msra.mxu0 0.0
      %1973 = vmatprep.subr.mxu0 0.0
      %1974 = vmatpush2.msra.mxu0 0.0
      %1975 = vmatprep.subr.mxu0 0.0
      %1976 = vmatpush2.msra.mxu0 0.0
      %1977 = vmatprep.subr.mxu0 0.0
      %1978 = vmatpush2.msra.mxu0 0.0
      %1979 = vmatprep.mubr.f32.mxu0 0.0
      %1980 = vmatmul.mubr.f32.gmra.mxu0 %v1913
      %v1981 = vpop.f32.mrf.mxu0
      %v1982 = vadd.f32 %v1911, %v1981
      %v1983 = vpop.f32.mrf.mxu0
      %1984 = vdwg.mxu0
      %v1985 = vld [vmem:[%s5] sm:$0xff]
      %v1986 = vld [vmem:[%s5 + $0x8] sm:$0xff]
      %v1987 = vld [vmem:[%s5 + $0x10] sm:$0xff]
      %v1988 = vld [vmem:[%s5 + $0x18] sm:$0xff]
      %v1989 = vld [vmem:[%s5 + $0x20] sm:$0xff]
      %v1990 = vld [vmem:[%s5 + $0x28] sm:$0xff]
      %v1991 = vld [vmem:[%s5 + $0x30] sm:$0xff]
      %v1992 = vld [vmem:[%s5 + $0x38] sm:$0xff]
      %v1993 = vld [vmem:[%s5 + $0x40] sm:$0xff]
      %v1994 = vld [vmem:[%s5 + $0x48] sm:$0xff]
      %v1995 = vld [vmem:[%s5 + $0x50] sm:$0xff]
      %v1996 = vld [vmem:[%s5 + $0x58] sm:$0xff]
      %v1997 = vld [vmem:[%s5 + $0x60] sm:$0xff]
      %v1998 = vld [vmem:[%s5 + $0x68] sm:$0xff]
      %v1999 = vld [vmem:[%s5 + $0x70] sm:$0xff]
      %v2000 = vld [vmem:[%s5 + $0x78] sm:$0xff]
      %v2002 = vsel %vm399, %v1982, 0
      %2004 = vmatprep.subr.mxu0 0.0
      %2005 = vmatpush1.msra.mxu0 0.0
      %2006 = vmatprep.subr.mxu0 0.0
      %2007 = vmatpush1.msra.mxu0 0.0
      %2008 = vmatprep.subr.mxu0 0.0
      %2009 = vmatpush1.msra.mxu0 0.0
      %2010 = vmatprep.subr.mxu0 0.0
      %2011 = vmatpush1.msra.mxu0 0.0
      %2012 = vmatprep.subr.mxu0 0.0
      %2013 = vmatpush1.msra.mxu0 0.0
      %2014 = vmatprep.subr.mxu0 0.0
      %2015 = vmatpush1.msra.mxu0 0.0
      %2016 = vmatprep.subr.mxu0 0.0
      %2017 = vmatpush1.msra.mxu0 0.0
      %2018 = vmatprep.subr.mxu0 0.0
      %2019 = vmatpush1.msra.mxu0 0.0
      %2020 = vmatprep.subr.mxu0 0.0
      %2021 = vmatpush1.msra.mxu0 0.0
      %2022 = vmatprep.subr.mxu0 0.0
      %2023 = vmatpush1.msra.mxu0 0.0
      %2024 = vmatprep.subr.mxu0 0.0
      %2025 = vmatpush1.msra.mxu0 0.0
      %2026 = vmatprep.subr.mxu0 0.0
      %2027 = vmatpush1.msra.mxu0 0.0
      %2028 = vmatprep.subr.mxu0 %v1998
      %2029 = vmatpush1.msra.mxu0 %v1997
      %2030 = vmatprep.subr.mxu0 %v1994
      %2031 = vmatpush1.msra.mxu0 %v1993
      %2032 = vmatprep.subr.mxu0 %v1990
      %2033 = vmatpush1.msra.mxu0 %v1989
      %2034 = vmatprep.subr.mxu0 %v1986
      %2035 = vmatpush1.msra.mxu0 %v1985
      %2036 = vmatprep.subr.mxu0 0.0
      %2037 = vmatpush2.msra.mxu0 0.0
      %2038 = vmatprep.subr.mxu0 0.0
      %2039 = vmatpush2.msra.mxu0 0.0
      %2040 = vmatprep.subr.mxu0 0.0
      %2041 = vmatpush2.msra.mxu0 0.0
      %2042 = vmatprep.subr.mxu0 0.0
      %2043 = vmatpush2.msra.mxu0 0.0
      %2044 = vmatprep.subr.mxu0 0.0
      %2045 = vmatpush2.msra.mxu0 0.0
      %2046 = vmatprep.subr.mxu0 0.0
      %2047 = vmatpush2.msra.mxu0 0.0
      %2048 = vmatprep.subr.mxu0 0.0
      %2049 = vmatpush2.msra.mxu0 0.0
      %2050 = vmatprep.subr.mxu0 0.0
      %2051 = vmatpush2.msra.mxu0 0.0
      %2052 = vmatprep.subr.mxu0 0.0
      %2053 = vmatpush2.msra.mxu0 0.0
      %2054 = vmatprep.subr.mxu0 0.0
      %2055 = vmatpush2.msra.mxu0 0.0
      %2056 = vmatprep.subr.mxu0 0.0
      %2057 = vmatpush2.msra.mxu0 0.0
      %2058 = vmatprep.subr.mxu0 0.0
      %2059 = vmatpush2.msra.mxu0 0.0
      %2060 = vmatprep.subr.mxu0 0.0
      %2061 = vmatpush2.msra.mxu0 0.0
      %2062 = vmatprep.subr.mxu0 0.0
      %2063 = vmatpush2.msra.mxu0 0.0
      %2064 = vmatprep.subr.mxu0 0.0
      %2065 = vmatpush2.msra.mxu0 0.0
      %2066 = vmatprep.subr.mxu0 0.0
      %2067 = vmatpush2.msra.mxu0 0.0
      %2068 = vmatprep.mubr.f32.mxu0 0.0
      %2069 = vmatmul.mubr.f32.gmra.mxu0 %v2002
      %v2070 = vpop.f32.mrf.mxu0
      %v2071 = vadd.f32 0.0, %v2070
      %v2072 = vpop.f32.mrf.mxu0
      %v2073 = vadd.f32 0.0, %v2072
      %2074 = vdwg.mxu0
      %2075 = vmatprep.subr.mxu0 0.0
      %2076 = vmatpush1.msra.mxu0 0.0
      %2077 = vmatprep.subr.mxu0 0.0
      %2078 = vmatpush1.msra.mxu0 0.0
      %2079 = vmatprep.subr.mxu0 0.0
      %2080 = vmatpush1.msra.mxu0 0.0
      %2081 = vmatprep.subr.mxu0 0.0
      %2082 = vmatpush1.msra.mxu0 0.0
      %2083 = vmatprep.subr.mxu0 0.0
      %2084 = vmatpush1.msra.mxu0 0.0
      %2085 = vmatprep.subr.mxu0 0.0
      %2086 = vmatpush1.msra.mxu0 0.0
      %2087 = vmatprep.subr.mxu0 0.0
      %2088 = vmatpush1.msra.mxu0 0.0
      %2089 = vmatprep.subr.mxu0 0.0
      %2090 = vmatpush1.msra.mxu0 0.0
      %2091 = vmatprep.subr.mxu0 0.0
      %2092 = vmatpush1.msra.mxu0 0.0
      %2093 = vmatprep.subr.mxu0 0.0
      %2094 = vmatpush1.msra.mxu0 0.0
      %2095 = vmatprep.subr.mxu0 0.0
      %2096 = vmatpush1.msra.mxu0 0.0
      %2097 = vmatprep.subr.mxu0 0.0
      %2098 = vmatpush1.msra.mxu0 0.0
      %2099 = vmatprep.subr.mxu0 %v2000
      %2100 = vmatpush1.msra.mxu0 %v1999
      %2101 = vmatprep.subr.mxu0 %v1996
      %2102 = vmatpush1.msra.mxu0 %v1995
      %2103 = vmatprep.subr.mxu0 %v1992
      %2104 = vmatpush1.msra.mxu0 %v1991
      %2105 = vmatprep.subr.mxu0 %v1988
      %2106 = vmatpush1.msra.mxu0 %v1987
      %2107 = vmatprep.subr.mxu0 0.0
      %2108 = vmatpush2.msra.mxu0 0.0
      %2109 = vmatprep.subr.mxu0 0.0
      %2110 = vmatpush2.msra.mxu0 0.0
      %2111 = vmatprep.subr.mxu0 0.0
      %2112 = vmatpush2.msra.mxu0 0.0
      %2113 = vmatprep.subr.mxu0 0.0
      %2114 = vmatpush2.msra.mxu0 0.0
      %2115 = vmatprep.subr.mxu0 0.0
      %2116 = vmatpush2.msra.mxu0 0.0
      %2117 = vmatprep.subr.mxu0 0.0
      %2118 = vmatpush2.msra.mxu0 0.0
      %2119 = vmatprep.subr.mxu0 0.0
      %2120 = vmatpush2.msra.mxu0 0.0
      %2121 = vmatprep.subr.mxu0 0.0
      %2122 = vmatpush2.msra.mxu0 0.0
      %2123 = vmatprep.subr.mxu0 0.0
      %2124 = vmatpush2.msra.mxu0 0.0
      %2125 = vmatprep.subr.mxu0 0.0
      %2126 = vmatpush2.msra.mxu0 0.0
      %2127 = vmatprep.subr.mxu0 0.0
      %2128 = vmatpush2.msra.mxu0 0.0
      %2129 = vmatprep.subr.mxu0 0.0
      %2130 = vmatpush2.msra.mxu0 0.0
      %2131 = vmatprep.subr.mxu0 0.0
      %2132 = vmatpush2.msra.mxu0 0.0
      %2133 = vmatprep.subr.mxu0 0.0
      %2134 = vmatpush2.msra.mxu0 0.0
      %2135 = vmatprep.subr.mxu0 0.0
      %2136 = vmatpush2.msra.mxu0 0.0
      %2137 = vmatprep.subr.mxu0 0.0
      %2138 = vmatpush2.msra.mxu0 0.0
      %2139 = vmatprep.mubr.f32.mxu0 0.0
      %2140 = vmatmul.mubr.f32.gmra.mxu0 %v2002
      %v2141 = vpop.f32.mrf.mxu0
      %v2142 = vadd.f32 0.0, %v2141
      %v2143 = vpop.f32.mrf.mxu0
      %v2144 = vadd.f32 0.0, %v2143
      %2145 = vdwg.mxu0
      %s2146 = scalar_lea.vmem %s5, 128
      %v2147 = vld [vmem:[%s2146] sm:$0xff]
      %v2148 = vld [vmem:[%s2146 + $0x8] sm:$0xff]
      %v2149 = vld [vmem:[%s2146 + $0x10] sm:$0xff]
      %v2150 = vld [vmem:[%s2146 + $0x18] sm:$0xff]
      %v2151 = vld [vmem:[%s2146 + $0x20] sm:$0xff]
      %v2152 = vld [vmem:[%s2146 + $0x28] sm:$0xff]
      %v2153 = vld [vmem:[%s2146 + $0x30] sm:$0xff]
      %v2154 = vld [vmem:[%s2146 + $0x38] sm:$0xff]
      %v2155 = vld [vmem:[%s2146 + $0x40] sm:$0xff]
      %v2156 = vld [vmem:[%s2146 + $0x48] sm:$0xff]
      %v2157 = vld [vmem:[%s2146 + $0x50] sm:$0xff]
      %v2158 = vld [vmem:[%s2146 + $0x58] sm:$0xff]
      %v2159 = vld [vmem:[%s2146 + $0x60] sm:$0xff]
      %v2160 = vld [vmem:[%s2146 + $0x68] sm:$0xff]
      %v2161 = vld [vmem:[%s2146 + $0x70] sm:$0xff]
      %v2162 = vld [vmem:[%s2146 + $0x78] sm:$0xff]
      %2163 = vmatprep.subr.mxu0 0.0
      %2164 = vmatpush1.msra.mxu0 0.0
      %2165 = vmatprep.subr.mxu0 0.0
      %2166 = vmatpush1.msra.mxu0 0.0
      %2167 = vmatprep.subr.mxu0 0.0
      %2168 = vmatpush1.msra.mxu0 0.0
      %2169 = vmatprep.subr.mxu0 0.0
      %2170 = vmatpush1.msra.mxu0 0.0
      %2171 = vmatprep.subr.mxu0 0.0
      %2172 = vmatpush1.msra.mxu0 0.0
      %2173 = vmatprep.subr.mxu0 0.0
      %2174 = vmatpush1.msra.mxu0 0.0
      %2175 = vmatprep.subr.mxu0 0.0
      %2176 = vmatpush1.msra.mxu0 0.0
      %2177 = vmatprep.subr.mxu0 0.0
      %2178 = vmatpush1.msra.mxu0 0.0
      %2179 = vmatprep.subr.mxu0 0.0
      %2180 = vmatpush1.msra.mxu0 0.0
      %2181 = vmatprep.subr.mxu0 0.0
      %2182 = vmatpush1.msra.mxu0 0.0
      %2183 = vmatprep.subr.mxu0 0.0
      %2184 = vmatpush1.msra.mxu0 0.0
      %2185 = vmatprep.subr.mxu0 0.0
      %2186 = vmatpush1.msra.mxu0 0.0
      %2187 = vmatprep.subr.mxu0 %v2160
      %2188 = vmatpush1.msra.mxu0 %v2159
      %2189 = vmatprep.subr.mxu0 %v2156
      %2190 = vmatpush1.msra.mxu0 %v2155
      %2191 = vmatprep.subr.mxu0 %v2152
      %2192 = vmatpush1.msra.mxu0 %v2151
      %2193 = vmatprep.subr.mxu0 %v2148
      %2194 = vmatpush1.msra.mxu0 %v2147
      %2195 = vmatprep.subr.mxu0 0.0
      %2196 = vmatpush2.msra.mxu0 0.0
      %2197 = vmatprep.subr.mxu0 0.0
      %2198 = vmatpush2.msra.mxu0 0.0
      %2199 = vmatprep.subr.mxu0 0.0
      %2200 = vmatpush2.msra.mxu0 0.0
      %2201 = vmatprep.subr.mxu0 0.0
      %2202 = vmatpush2.msra.mxu0 0.0
      %2203 = vmatprep.subr.mxu0 0.0
      %2204 = vmatpush2.msra.mxu0 0.0
      %2205 = vmatprep.subr.mxu0 0.0
      %2206 = vmatpush2.msra.mxu0 0.0
      %2207 = vmatprep.subr.mxu0 0.0
      %2208 = vmatpush2.msra.mxu0 0.0
      %2209 = vmatprep.subr.mxu0 0.0
      %2210 = vmatpush2.msra.mxu0 0.0
      %2211 = vmatprep.subr.mxu0 0.0
      %2212 = vmatpush2.msra.mxu0 0.0
      %2213 = vmatprep.subr.mxu0 0.0
      %2214 = vmatpush2.msra.mxu0 0.0
      %2215 = vmatprep.subr.mxu0 0.0
      %2216 = vmatpush2.msra.mxu0 0.0
      %2217 = vmatprep.subr.mxu0 0.0
      %2218 = vmatpush2.msra.mxu0 0.0
      %2219 = vmatprep.subr.mxu0 0.0
      %2220 = vmatpush2.msra.mxu0 0.0
      %2221 = vmatprep.subr.mxu0 0.0
      %2222 = vmatpush2.msra.mxu0 0.0
      %2223 = vmatprep.subr.mxu0 0.0
      %2224 = vmatpush2.msra.mxu0 0.0
      %2225 = vmatprep.subr.mxu0 0.0
      %2226 = vmatpush2.msra.mxu0 0.0
      %2227 = vmatprep.mubr.f32.mxu0 0.0
      %2228 = vmatmul.mubr.f32.gmra.mxu0 %v2002
      %v2229 = vpop.f32.mrf.mxu0
      %v2230 = vadd.f32 0.0, %v2229
      %v2231 = vpop.f32.mrf.mxu0
      %v2232 = vadd.f32 0.0, %v2231
      %2233 = vdwg.mxu0
      %2234 = vmatprep.subr.mxu0 0.0
      %2235 = vmatpush1.msra.mxu0 0.0
      %2236 = vmatprep.subr.mxu0 0.0
      %2237 = vmatpush1.msra.mxu0 0.0
      %2238 = vmatprep.subr.mxu0 0.0
      %2239 = vmatpush1.msra.mxu0 0.0
      %2240 = vmatprep.subr.mxu0 0.0
      %2241 = vmatpush1.msra.mxu0 0.0
      %2242 = vmatprep.subr.mxu0 0.0
      %2243 = vmatpush1.msra.mxu0 0.0
      %2244 = vmatprep.subr.mxu0 0.0
      %2245 = vmatpush1.msra.mxu0 0.0
      %2246 = vmatprep.subr.mxu0 0.0
      %2247 = vmatpush1.msra.mxu0 0.0
      %2248 = vmatprep.subr.mxu0 0.0
      %2249 = vmatpush1.msra.mxu0 0.0
      %2250 = vmatprep.subr.mxu0 0.0
      %2251 = vmatpush1.msra.mxu0 0.0
      %2252 = vmatprep.subr.mxu0 0.0
      %2253 = vmatpush1.msra.mxu0 0.0
      %2254 = vmatprep.subr.mxu0 0.0
      %2255 = vmatpush1.msra.mxu0 0.0
      %2256 = vmatprep.subr.mxu0 0.0
      %2257 = vmatpush1.msra.mxu0 0.0
      %2258 = vmatprep.subr.mxu0 %v2162
      %2259 = vmatpush1.msra.mxu0 %v2161
      %2260 = vmatprep.subr.mxu0 %v2158
      %2261 = vmatpush1.msra.mxu0 %v2157
      %2262 = vmatprep.subr.mxu0 %v2154
      %2263 = vmatpush1.msra.mxu0 %v2153
      %2264 = vmatprep.subr.mxu0 %v2150
      %2265 = vmatpush1.msra.mxu0 %v2149
      %2266 = vmatprep.subr.mxu0 0.0
      %2267 = vmatpush2.msra.mxu0 0.0
      %2268 = vmatprep.subr.mxu0 0.0
      %2269 = vmatpush2.msra.mxu0 0.0
      %2270 = vmatprep.subr.mxu0 0.0
      %2271 = vmatpush2.msra.mxu0 0.0
      %2272 = vmatprep.subr.mxu0 0.0
      %2273 = vmatpush2.msra.mxu0 0.0
      %2274 = vmatprep.subr.mxu0 0.0
      %2275 = vmatpush2.msra.mxu0 0.0
      %2276 = vmatprep.subr.mxu0 0.0
      %2277 = vmatpush2.msra.mxu0 0.0
      %2278 = vmatprep.subr.mxu0 0.0
      %2279 = vmatpush2.msra.mxu0 0.0
      %2280 = vmatprep.subr.mxu0 0.0
      %2281 = vmatpush2.msra.mxu0 0.0
      %2282 = vmatprep.subr.mxu0 0.0
      %2283 = vmatpush2.msra.mxu0 0.0
      %2284 = vmatprep.subr.mxu0 0.0
      %2285 = vmatpush2.msra.mxu0 0.0
      %2286 = vmatprep.subr.mxu0 0.0
      %2287 = vmatpush2.msra.mxu0 0.0
      %2288 = vmatprep.subr.mxu0 0.0
      %2289 = vmatpush2.msra.mxu0 0.0
      %2290 = vmatprep.subr.mxu0 0.0
      %2291 = vmatpush2.msra.mxu0 0.0
      %2292 = vmatprep.subr.mxu0 0.0
      %2293 = vmatpush2.msra.mxu0 0.0
      %2294 = vmatprep.subr.mxu0 0.0
      %2295 = vmatpush2.msra.mxu0 0.0
      %2296 = vmatprep.subr.mxu0 0.0
      %2297 = vmatpush2.msra.mxu0 0.0
      %2298 = vmatprep.mubr.f32.mxu0 0.0
      %2299 = vmatmul.mubr.f32.gmra.mxu0 %v2002
      %v2300 = vpop.f32.mrf.mxu0
      %v2301 = vadd.f32 0.0, %v2300
      %v2302 = vpop.f32.mrf.mxu0
      %v2303 = vadd.f32 0.0, %v2302
      %2304 = vdwg.mxu0
      %s2305 = scalar_lea.vmem %s5, 256
      %v2306 = vld [vmem:[%s2305] sm:$0xff]
      %v2307 = vld [vmem:[%s2305 + $0x8] sm:$0xff]
      %v2308 = vld [vmem:[%s2305 + $0x10] sm:$0xff]
      %v2309 = vld [vmem:[%s2305 + $0x18] sm:$0xff]
      %v2310 = vld [vmem:[%s2305 + $0x20] sm:$0xff]
      %v2311 = vld [vmem:[%s2305 + $0x28] sm:$0xff]
      %v2312 = vld [vmem:[%s2305 + $0x30] sm:$0xff]
      %v2313 = vld [vmem:[%s2305 + $0x38] sm:$0xff]
      %v2314 = vld [vmem:[%s2305 + $0x40] sm:$0xff]
      %v2315 = vld [vmem:[%s2305 + $0x48] sm:$0xff]
      %v2316 = vld [vmem:[%s2305 + $0x50] sm:$0xff]
      %v2317 = vld [vmem:[%s2305 + $0x58] sm:$0xff]
      %v2318 = vld [vmem:[%s2305 + $0x60] sm:$0xff]
      %v2319 = vld [vmem:[%s2305 + $0x68] sm:$0xff]
      %v2320 = vld [vmem:[%s2305 + $0x70] sm:$0xff]
      %v2321 = vld [vmem:[%s2305 + $0x78] sm:$0xff]
      %2322 = vmatprep.subr.mxu0 0.0
      %2323 = vmatpush1.msra.mxu0 0.0
      %2324 = vmatprep.subr.mxu0 0.0
      %2325 = vmatpush1.msra.mxu0 0.0
      %2326 = vmatprep.subr.mxu0 0.0
      %2327 = vmatpush1.msra.mxu0 0.0
      %2328 = vmatprep.subr.mxu0 0.0
      %2329 = vmatpush1.msra.mxu0 0.0
      %2330 = vmatprep.subr.mxu0 0.0
      %2331 = vmatpush1.msra.mxu0 0.0
      %2332 = vmatprep.subr.mxu0 0.0
      %2333 = vmatpush1.msra.mxu0 0.0
      %2334 = vmatprep.subr.mxu0 0.0
      %2335 = vmatpush1.msra.mxu0 0.0
      %2336 = vmatprep.subr.mxu0 0.0
      %2337 = vmatpush1.msra.mxu0 0.0
      %2338 = vmatprep.subr.mxu0 0.0
      %2339 = vmatpush1.msra.mxu0 0.0
      %2340 = vmatprep.subr.mxu0 0.0
      %2341 = vmatpush1.msra.mxu0 0.0
      %2342 = vmatprep.subr.mxu0 0.0
      %2343 = vmatpush1.msra.mxu0 0.0
      %2344 = vmatprep.subr.mxu0 0.0
      %2345 = vmatpush1.msra.mxu0 0.0
      %2346 = vmatprep.subr.mxu0 %v2319
      %2347 = vmatpush1.msra.mxu0 %v2318
      %2348 = vmatprep.subr.mxu0 %v2315
      %2349 = vmatpush1.msra.mxu0 %v2314
      %2350 = vmatprep.subr.mxu0 %v2311
      %2351 = vmatpush1.msra.mxu0 %v2310
      %2352 = vmatprep.subr.mxu0 %v2307
      %2353 = vmatpush1.msra.mxu0 %v2306
      %2354 = vmatprep.subr.mxu0 0.0
      %2355 = vmatpush2.msra.mxu0 0.0
      %2356 = vmatprep.subr.mxu0 0.0
      %2357 = vmatpush2.msra.mxu0 0.0
      %2358 = vmatprep.subr.mxu0 0.0
      %2359 = vmatpush2.msra.mxu0 0.0
      %2360 = vmatprep.subr.mxu0 0.0
      %2361 = vmatpush2.msra.mxu0 0.0
      %2362 = vmatprep.subr.mxu0 0.0
      %2363 = vmatpush2.msra.mxu0 0.0
      %2364 = vmatprep.subr.mxu0 0.0
      %2365 = vmatpush2.msra.mxu0 0.0
      %2366 = vmatprep.subr.mxu0 0.0
      %2367 = vmatpush2.msra.mxu0 0.0
      %2368 = vmatprep.subr.mxu0 0.0
      %2369 = vmatpush2.msra.mxu0 0.0
      %2370 = vmatprep.subr.mxu0 0.0
      %2371 = vmatpush2.msra.mxu0 0.0
      %2372 = vmatprep.subr.mxu0 0.0
      %2373 = vmatpush2.msra.mxu0 0.0
      %2374 = vmatprep.subr.mxu0 0.0
      %2375 = vmatpush2.msra.mxu0 0.0
      %2376 = vmatprep.subr.mxu0 0.0
      %2377 = vmatpush2.msra.mxu0 0.0
      %2378 = vmatprep.subr.mxu0 0.0
      %2379 = vmatpush2.msra.mxu0 0.0
      %2380 = vmatprep.subr.mxu0 0.0
      %2381 = vmatpush2.msra.mxu0 0.0
      %2382 = vmatprep.subr.mxu0 0.0
      %2383 = vmatpush2.msra.mxu0 0.0
      %2384 = vmatprep.subr.mxu0 0.0
      %2385 = vmatpush2.msra.mxu0 0.0
      %2386 = vmatprep.mubr.f32.mxu0 0.0
      %2387 = vmatmul.mubr.f32.gmra.mxu0 %v2002
      %v2388 = vpop.f32.mrf.mxu0
      %v2389 = vadd.f32 0.0, %v2388
      %v2390 = vpop.f32.mrf.mxu0
      %v2391 = vadd.f32 0.0, %v2390
      %2392 = vdwg.mxu0
      %2393 = vmatprep.subr.mxu0 0.0
      %2394 = vmatpush1.msra.mxu0 0.0
      %2395 = vmatprep.subr.mxu0 0.0
      %2396 = vmatpush1.msra.mxu0 0.0
      %2397 = vmatprep.subr.mxu0 0.0
      %2398 = vmatpush1.msra.mxu0 0.0
      %2399 = vmatprep.subr.mxu0 0.0
      %2400 = vmatpush1.msra.mxu0 0.0
      %2401 = vmatprep.subr.mxu0 0.0
      %2402 = vmatpush1.msra.mxu0 0.0
      %2403 = vmatprep.subr.mxu0 0.0
      %2404 = vmatpush1.msra.mxu0 0.0
      %2405 = vmatprep.subr.mxu0 0.0
      %2406 = vmatpush1.msra.mxu0 0.0
      %2407 = vmatprep.subr.mxu0 0.0
      %2408 = vmatpush1.msra.mxu0 0.0
      %2409 = vmatprep.subr.mxu0 0.0
      %2410 = vmatpush1.msra.mxu0 0.0
      %2411 = vmatprep.subr.mxu0 0.0
      %2412 = vmatpush1.msra.mxu0 0.0
      %2413 = vmatprep.subr.mxu0 0.0
      %2414 = vmatpush1.msra.mxu0 0.0
      %2415 = vmatprep.subr.mxu0 0.0
      %2416 = vmatpush1.msra.mxu0 0.0
      %2417 = vmatprep.subr.mxu0 %v2321
      %2418 = vmatpush1.msra.mxu0 %v2320
      %2419 = vmatprep.subr.mxu0 %v2317
      %2420 = vmatpush1.msra.mxu0 %v2316
      %2421 = vmatprep.subr.mxu0 %v2313
      %2422 = vmatpush1.msra.mxu0 %v2312
      %2423 = vmatprep.subr.mxu0 %v2309
      %2424 = vmatpush1.msra.mxu0 %v2308
      %2425 = vmatprep.subr.mxu0 0.0
      %2426 = vmatpush2.msra.mxu0 0.0
      %2427 = vmatprep.subr.mxu0 0.0
      %2428 = vmatpush2.msra.mxu0 0.0
      %2429 = vmatprep.subr.mxu0 0.0
      %2430 = vmatpush2.msra.mxu0 0.0
      %2431 = vmatprep.subr.mxu0 0.0
      %2432 = vmatpush2.msra.mxu0 0.0
      %2433 = vmatprep.subr.mxu0 0.0
      %2434 = vmatpush2.msra.mxu0 0.0
      %2435 = vmatprep.subr.mxu0 0.0
      %2436 = vmatpush2.msra.mxu0 0.0
      %2437 = vmatprep.subr.mxu0 0.0
      %2438 = vmatpush2.msra.mxu0 0.0
      %2439 = vmatprep.subr.mxu0 0.0
      %2440 = vmatpush2.msra.mxu0 0.0
      %2441 = vmatprep.subr.mxu0 0.0
      %2442 = vmatpush2.msra.mxu0 0.0
      %2443 = vmatprep.subr.mxu0 0.0
      %2444 = vmatpush2.msra.mxu0 0.0
      %2445 = vmatprep.subr.mxu0 0.0
      %2446 = vmatpush2.msra.mxu0 0.0
      %2447 = vmatprep.subr.mxu0 0.0
      %2448 = vmatpush2.msra.mxu0 0.0
      %2449 = vmatprep.subr.mxu0 0.0
      %2450 = vmatpush2.msra.mxu0 0.0
      %2451 = vmatprep.subr.mxu0 0.0
      %2452 = vmatpush2.msra.mxu0 0.0
      %2453 = vmatprep.subr.mxu0 0.0
      %2454 = vmatpush2.msra.mxu0 0.0
      %2455 = vmatprep.subr.mxu0 0.0
      %2456 = vmatpush2.msra.mxu0 0.0
      %2457 = vmatprep.mubr.f32.mxu0 0.0
      %2458 = vmatmul.mubr.f32.gmra.mxu0 %v2002
      %v2459 = vpop.f32.mrf.mxu0
      %v2460 = vadd.f32 0.0, %v2459
      %v2461 = vpop.f32.mrf.mxu0
      %v2462 = vadd.f32 0.0, %v2461
      %2463 = vdwg.mxu0
      %v2464 = vld [vmem:[%s6] sm:$0xff]
      %v2465 = vld [vmem:[%s6 + $0x8] sm:$0xff]
      %v2466 = vld [vmem:[%s6 + $0x10] sm:$0xff]
      %v2467 = vld [vmem:[%s6 + $0x18] sm:$0xff]
      %v2468 = vld [vmem:[%s6 + $0x20] sm:$0xff]
      %v2469 = vld [vmem:[%s6 + $0x28] sm:$0xff]
      %v2470 = vld [vmem:[%s6 + $0x30] sm:$0xff]
      %v2471 = vld [vmem:[%s6 + $0x38] sm:$0xff]
      %v2472 = vld [vmem:[%s6 + $0x40] sm:$0xff]
      %v2473 = vld [vmem:[%s6 + $0x48] sm:$0xff]
      %v2474 = vld [vmem:[%s6 + $0x50] sm:$0xff]
      %v2475 = vld [vmem:[%s6 + $0x58] sm:$0xff]
      %v2476 = vld [vmem:[%s6 + $0x60] sm:$0xff]
      %v2477 = vld [vmem:[%s6 + $0x68] sm:$0xff]
      %v2478 = vld [vmem:[%s6 + $0x70] sm:$0xff]
      %v2479 = vld [vmem:[%s6 + $0x78] sm:$0xff]
      %v2480 = vlaneseq
      %v2481 = vshrl.u32 %v2480, 7
      %v2482 = vsub.s32 0, %v2481
      %v2483 = vrot.slane %v2071, %v2482
      %v2484 = vlaneseq
      %v2485 = vshrl.u32 %v2484, 7
      %v2486 = vsub.s32 0, %v2485
      %v2487 = vrot.slane %v2073, %v2486
      %v2488 = vlaneseq
      %v2489 = vshrl.u32 %v2488, 7
      %v2490 = vsub.s32 0, %v2489
      %v2491 = vrot.slane %v2142, %v2490
      %v2492 = vlaneseq
      %v2493 = vshrl.u32 %v2492, 7
      %v2494 = vsub.s32 0, %v2493
      %v2495 = vrot.slane %v2144, %v2494
      %v2496 = vmul.f32 %v2464, %v2483
      %v2497 = vmul.f32 %v2465, %v2487
      %v2498 = vmul.f32 %v2466, %v2491
      %v2499 = vmul.f32 %v2467, %v2495
      %v2500 = vmul.f32 %v2468, %v2483
      %v2501 = vmul.f32 %v2469, %v2487
      %v2502 = vmul.f32 %v2470, %v2491
      %v2503 = vmul.f32 %v2471, %v2495
      %v2504 = vmul.f32 %v2472, %v2483
      %v2505 = vmul.f32 %v2473, %v2487
      %v2506 = vmul.f32 %v2474, %v2491
      %v2507 = vmul.f32 %v2475, %v2495
      %v2508 = vmul.f32 %v2476, %v2483
      %v2509 = vmul.f32 %v2477, %v2487
      %v2510 = vmul.f32 %v2478, %v2491
      %v2511 = vmul.f32 %v2479, %v2495
      %s2512 = scalar_lea.vmem %s6, 128
      %v2513 = vld [vmem:[%s2512] sm:$0xff]
      %v2514 = vld [vmem:[%s2512 + $0x8] sm:$0xff]
      %v2515 = vld [vmem:[%s2512 + $0x10] sm:$0xff]
      %v2516 = vld [vmem:[%s2512 + $0x18] sm:$0xff]
      %v2517 = vld [vmem:[%s2512 + $0x20] sm:$0xff]
      %v2518 = vld [vmem:[%s2512 + $0x28] sm:$0xff]
      %v2519 = vld [vmem:[%s2512 + $0x30] sm:$0xff]
      %v2520 = vld [vmem:[%s2512 + $0x38] sm:$0xff]
      %v2521 = vld [vmem:[%s2512 + $0x40] sm:$0xff]
      %v2522 = vld [vmem:[%s2512 + $0x48] sm:$0xff]
      %v2523 = vld [vmem:[%s2512 + $0x50] sm:$0xff]
      %v2524 = vld [vmem:[%s2512 + $0x58] sm:$0xff]
      %v2525 = vld [vmem:[%s2512 + $0x60] sm:$0xff]
      %v2526 = vld [vmem:[%s2512 + $0x68] sm:$0xff]
      %v2527 = vld [vmem:[%s2512 + $0x70] sm:$0xff]
      %v2528 = vld [vmem:[%s2512 + $0x78] sm:$0xff]
      %v2529 = vlaneseq
      %v2530 = vshrl.u32 %v2529, 7
      %v2531 = vsub.s32 0, %v2530
      %v2532 = vrot.slane %v2230, %v2531
      %v2533 = vlaneseq
      %v2534 = vshrl.u32 %v2533, 7
      %v2535 = vsub.s32 0, %v2534
      %v2536 = vrot.slane %v2232, %v2535
      %v2537 = vlaneseq
      %v2538 = vshrl.u32 %v2537, 7
      %v2539 = vsub.s32 0, %v2538
      %v2540 = vrot.slane %v2301, %v2539
      %v2541 = vlaneseq
      %v2542 = vshrl.u32 %v2541, 7
      %v2543 = vsub.s32 0, %v2542
      %v2544 = vrot.slane %v2303, %v2543
      %v2545 = vmul.f32 %v2513, %v2532
      %v2546 = vmul.f32 %v2514, %v2536
      %v2547 = vmul.f32 %v2515, %v2540
      %v2548 = vmul.f32 %v2516, %v2544
      %v2549 = vmul.f32 %v2517, %v2532
      %v2550 = vmul.f32 %v2518, %v2536
      %v2551 = vmul.f32 %v2519, %v2540
      %v2552 = vmul.f32 %v2520, %v2544
      %v2553 = vmul.f32 %v2521, %v2532
      %v2554 = vmul.f32 %v2522, %v2536
      %v2555 = vmul.f32 %v2523, %v2540
      %v2556 = vmul.f32 %v2524, %v2544
      %v2557 = vmul.f32 %v2525, %v2532
      %v2558 = vmul.f32 %v2526, %v2536
      %v2559 = vmul.f32 %v2527, %v2540
      %v2560 = vmul.f32 %v2528, %v2544
      %v2561 = vadd.f32 %v2496, %v2545
      %v2562 = vadd.f32 %v2497, %v2546
      %v2563 = vadd.f32 %v2498, %v2547
      %v2564 = vadd.f32 %v2499, %v2548
      %v2565 = vadd.f32 %v2500, %v2549
      %v2566 = vadd.f32 %v2501, %v2550
      %v2567 = vadd.f32 %v2502, %v2551
      %v2568 = vadd.f32 %v2503, %v2552
      %v2569 = vadd.f32 %v2504, %v2553
      %v2570 = vadd.f32 %v2505, %v2554
      %v2571 = vadd.f32 %v2506, %v2555
      %v2572 = vadd.f32 %v2507, %v2556
      %v2573 = vadd.f32 %v2508, %v2557
      %v2574 = vadd.f32 %v2509, %v2558
      %v2575 = vadd.f32 %v2510, %v2559
      %v2576 = vadd.f32 %v2511, %v2560
      %s2577 = scalar_lea.vmem %s6, 256
      %v2578 = vld [vmem:[%s2577] sm:$0xff]
      %v2579 = vld [vmem:[%s2577 + $0x8] sm:$0xff]
      %v2580 = vld [vmem:[%s2577 + $0x10] sm:$0xff]
      %v2581 = vld [vmem:[%s2577 + $0x18] sm:$0xff]
      %v2582 = vld [vmem:[%s2577 + $0x20] sm:$0xff]
      %v2583 = vld [vmem:[%s2577 + $0x28] sm:$0xff]
      %v2584 = vld [vmem:[%s2577 + $0x30] sm:$0xff]
      %v2585 = vld [vmem:[%s2577 + $0x38] sm:$0xff]
      %v2586 = vld [vmem:[%s2577 + $0x40] sm:$0xff]
      %v2587 = vld [vmem:[%s2577 + $0x48] sm:$0xff]
      %v2588 = vld [vmem:[%s2577 + $0x50] sm:$0xff]
      %v2589 = vld [vmem:[%s2577 + $0x58] sm:$0xff]
      %v2590 = vld [vmem:[%s2577 + $0x60] sm:$0xff]
      %v2591 = vld [vmem:[%s2577 + $0x68] sm:$0xff]
      %v2592 = vld [vmem:[%s2577 + $0x70] sm:$0xff]
      %v2593 = vld [vmem:[%s2577 + $0x78] sm:$0xff]
      %v2594 = vlaneseq
      %v2595 = vshrl.u32 %v2594, 7
      %v2596 = vsub.s32 0, %v2595
      %v2597 = vrot.slane %v2389, %v2596
      %v2598 = vlaneseq
      %v2599 = vshrl.u32 %v2598, 7
      %v2600 = vsub.s32 0, %v2599
      %v2601 = vrot.slane %v2391, %v2600
      %v2602 = vlaneseq
      %v2603 = vshrl.u32 %v2602, 7
      %v2604 = vsub.s32 0, %v2603
      %v2605 = vrot.slane %v2460, %v2604
      %v2606 = vlaneseq
      %v2607 = vshrl.u32 %v2606, 7
      %v2608 = vsub.s32 0, %v2607
      %v2609 = vrot.slane %v2462, %v2608
      %v2610 = vmul.f32 %v2578, %v2597
      %v2611 = vmul.f32 %v2579, %v2601
      %v2612 = vmul.f32 %v2580, %v2605
      %v2613 = vmul.f32 %v2581, %v2609
      %v2614 = vmul.f32 %v2582, %v2597
      %v2615 = vmul.f32 %v2583, %v2601
      %v2616 = vmul.f32 %v2584, %v2605
      %v2617 = vmul.f32 %v2585, %v2609
      %v2618 = vmul.f32 %v2586, %v2597
      %v2619 = vmul.f32 %v2587, %v2601
      %v2620 = vmul.f32 %v2588, %v2605
      %v2621 = vmul.f32 %v2589, %v2609
      %v2622 = vmul.f32 %v2590, %v2597
      %v2623 = vmul.f32 %v2591, %v2601
      %v2624 = vmul.f32 %v2592, %v2605
      %v2625 = vmul.f32 %v2593, %v2609
      %v2626 = vadd.f32 %v2561, %v2610
      %v2627 = vadd.f32 %v2562, %v2611
      %v2628 = vadd.f32 %v2563, %v2612
      %v2629 = vadd.f32 %v2564, %v2613
      %v2630 = vadd.f32 %v2565, %v2614
      %v2631 = vadd.f32 %v2566, %v2615
      %v2632 = vadd.f32 %v2567, %v2616
      %v2633 = vadd.f32 %v2568, %v2617
      %v2634 = vadd.f32 %v2569, %v2618
      %v2635 = vadd.f32 %v2570, %v2619
      %v2636 = vadd.f32 %v2571, %v2620
      %v2637 = vadd.f32 %v2572, %v2621
      %v2638 = vadd.f32 %v2573, %v2622
      %v2639 = vadd.f32 %v2574, %v2623
      %v2640 = vadd.f32 %v2575, %v2624
      %v2641 = vadd.f32 %v2576, %v2625
      %v2642 = vld [vmem:[%s7] sm:$0xff]
      %v2643 = vld [vmem:[%s7 + $0x8] sm:$0xff]
      %v2644 = vld [vmem:[%s7 + $0x10] sm:$0xff]
      %v2645 = vld [vmem:[%s7 + $0x18] sm:$0xff]
      %2647 = vset.pattern.permute.xlu0 0
      %2648 = vperm.xlu0 %2647, %v2642
      %v2649 = vpop.permute.xlu0 %2648
      %2652 = vset.pattern.permute.xlu0 0
      %2653 = vperm.xlu0 %2652, %v2643
      %v2654 = vpop.permute.xlu0 %2653
      %2657 = vset.pattern.permute.xlu0 0
      %2658 = vperm.xlu0 %2657, %v2644
      %v2659 = vpop.permute.xlu0 %2658
      %2662 = vset.pattern.permute.xlu0 0
      %2663 = vperm.xlu0 %2662, %v2645
      %v2664 = vpop.permute.xlu0 %2663
      %v2666 = vadd.f32 %v2626, %v2649
      %v2667 = vadd.f32 %v2627, %v2649
      %v2668 = vadd.f32 %v2628, %v2649
      %v2669 = vadd.f32 %v2629, %v2649
      %v2670 = vadd.f32 %v2630, %v2654
      %v2671 = vadd.f32 %v2631, %v2654
      %v2672 = vadd.f32 %v2632, %v2654
      %v2673 = vadd.f32 %v2633, %v2654
      %v2674 = vadd.f32 %v2634, %v2659
      %v2675 = vadd.f32 %v2635, %v2659
      %v2676 = vadd.f32 %v2636, %v2659
      %v2677 = vadd.f32 %v2637, %v2659
      %v2678 = vadd.f32 %v2638, %v2664
      %v2679 = vadd.f32 %v2639, %v2664
      %v2680 = vadd.f32 %v2640, %v2664
      %v2681 = vadd.f32 %v2641, %v2664
      %v2682 = vmax.f32 %v2666, 0.0
      %v2683 = vmax.f32 %v2667, 0.0
      %v2684 = vmax.f32 %v2668, 0.0
      %v2685 = vmax.f32 %v2669, 0.0
      %v2686 = vmax.f32 %v2670, 0.0
      %v2687 = vmax.f32 %v2671, 0.0
      %v2688 = vmax.f32 %v2672, 0.0
      %v2689 = vmax.f32 %v2673, 0.0
      %v2690 = vmax.f32 %v2674, 0.0
      %v2691 = vmax.f32 %v2675, 0.0
      %v2692 = vmax.f32 %v2676, 0.0
      %v2693 = vmax.f32 %v2677, 0.0
      %v2694 = vmax.f32 %v2678, 0.0
      %v2695 = vmax.f32 %v2679, 0.0
      %v2696 = vmax.f32 %v2680, 0.0
      %v2697 = vmax.f32 %v2681, 0.0
      %v2698 = vld [vmem:[%s8] sm:$0xff]
      %v2699 = vld [vmem:[%s8 + $0x8] sm:$0xff]
      %v2700 = vld [vmem:[%s8 + $0x10] sm:$0xff]
      %v2701 = vld [vmem:[%s8 + $0x18] sm:$0xff]
      %v2702 = vld [vmem:[%s9] sm:$0xff]
      %v2703 = vld [vmem:[%s9 + $0x8] sm:$0xff]
      %v2704 = vld [vmem:[%s9 + $0x10] sm:$0xff]
      %v2705 = vld [vmem:[%s9 + $0x18] sm:$0xff]
      %2707 = vset.pattern.permute.xlu0 0
      %2708 = vperm.xlu0 %2707, %v2702
      %v2709 = vpop.permute.xlu0 %2708
      %2712 = vset.pattern.permute.xlu0 0
      %2713 = vperm.xlu0 %2712, %v2703
      %v2714 = vpop.permute.xlu0 %2713
      %2717 = vset.pattern.permute.xlu0 0
      %2718 = vperm.xlu0 %2717, %v2704
      %v2719 = vpop.permute.xlu0 %2718
      %2722 = vset.pattern.permute.xlu0 0
      %2723 = vperm.xlu0 %2722, %v2705
      %v2724 = vpop.permute.xlu0 %2723
      %v2727 = vsel %vm399, %v2698, 0
      %v2730 = vsel %vm399, %v2699, 0
      %v2733 = vsel %vm399, %v2700, 0
      %v2736 = vsel %vm399, %v2701, 0
      %2738 = vmatprep.subr.mxu0 0.0
      %2739 = vmatpush1.msra.mxu0 0.0
      %2740 = vmatprep.subr.mxu0 0.0
      %2741 = vmatpush1.msra.mxu0 0.0
      %2742 = vmatprep.subr.mxu0 0.0
      %2743 = vmatpush1.msra.mxu0 0.0
      %2744 = vmatprep.subr.mxu0 0.0
      %2745 = vmatpush1.msra.mxu0 0.0
      %2746 = vmatprep.subr.mxu0 0.0
      %2747 = vmatpush1.msra.mxu0 0.0
      %2748 = vmatprep.subr.mxu0 0.0
      %2749 = vmatpush1.msra.mxu0 0.0
      %2750 = vmatprep.subr.mxu0 0.0
      %2751 = vmatpush1.msra.mxu0 0.0
      %2752 = vmatprep.subr.mxu0 0.0
      %2753 = vmatpush1.msra.mxu0 0.0
      %2754 = vmatprep.subr.mxu0 0.0
      %2755 = vmatpush1.msra.mxu0 0.0
      %2756 = vmatprep.subr.mxu0 0.0
      %2757 = vmatpush1.msra.mxu0 0.0
      %2758 = vmatprep.subr.mxu0 0.0
      %2759 = vmatpush1.msra.mxu0 0.0
      %2760 = vmatprep.subr.mxu0 0.0
      %2761 = vmatpush1.msra.mxu0 0.0
      %2762 = vmatprep.subr.mxu0 %v2695
      %2763 = vmatpush1.msra.mxu0 %v2694
      %2764 = vmatprep.subr.mxu0 %v2691
      %2765 = vmatpush1.msra.mxu0 %v2690
      %2766 = vmatprep.subr.mxu0 %v2687
      %2767 = vmatpush1.msra.mxu0 %v2686
      %2768 = vmatprep.subr.mxu0 %v2683
      %2769 = vmatpush1.msra.mxu0 %v2682
      %2770 = vmatprep.subr.mxu0 0.0
      %2771 = vmatpush2.msra.mxu0 0.0
      %2772 = vmatprep.subr.mxu0 0.0
      %2773 = vmatpush2.msra.mxu0 0.0
      %2774 = vmatprep.subr.mxu0 0.0
      %2775 = vmatpush2.msra.mxu0 0.0
      %2776 = vmatprep.subr.mxu0 0.0
      %2777 = vmatpush2.msra.mxu0 0.0
      %2778 = vmatprep.subr.mxu0 0.0
      %2779 = vmatpush2.msra.mxu0 0.0
      %2780 = vmatprep.subr.mxu0 0.0
      %2781 = vmatpush2.msra.mxu0 0.0
      %2782 = vmatprep.subr.mxu0 0.0
      %2783 = vmatpush2.msra.mxu0 0.0
      %2784 = vmatprep.subr.mxu0 0.0
      %2785 = vmatpush2.msra.mxu0 0.0
      %2786 = vmatprep.subr.mxu0 0.0
      %2787 = vmatpush2.msra.mxu0 0.0
      %2788 = vmatprep.subr.mxu0 0.0
      %2789 = vmatpush2.msra.mxu0 0.0
      %2790 = vmatprep.subr.mxu0 0.0
      %2791 = vmatpush2.msra.mxu0 0.0
      %2792 = vmatprep.subr.mxu0 0.0
      %2793 = vmatpush2.msra.mxu0 0.0
      %2794 = vmatprep.subr.mxu0 0.0
      %2795 = vmatpush2.msra.mxu0 0.0
      %2796 = vmatprep.subr.mxu0 0.0
      %2797 = vmatpush2.msra.mxu0 0.0
      %2798 = vmatprep.subr.mxu0 0.0
      %2799 = vmatpush2.msra.mxu0 0.0
      %2800 = vmatprep.subr.mxu0 0.0
      %2801 = vmatpush2.msra.mxu0 0.0
      %2802 = vmatprep.mubr.f32.mxu0 0.0
      %2803 = vmatmul.mubr.f32.gmra.mxu0 %v2727
      %v2804 = vpop.f32.mrf.mxu0
      %v2805 = vadd.f32 %v2709, %v2804
      %v2806 = vpop.f32.mrf.mxu0
      %v2807 = vadd.f32 %v2709, %v2806
      %2808 = vmatprep.mubr.f32.mxu0 0.0
      %2809 = vmatmul.mubr.f32.gmra.mxu0 %v2730
      %v2810 = vpop.f32.mrf.mxu0
      %v2811 = vadd.f32 %v2714, %v2810
      %v2812 = vpop.f32.mrf.mxu0
      %v2813 = vadd.f32 %v2714, %v2812
      %2814 = vmatprep.mubr.f32.mxu0 0.0
      %2815 = vmatmul.mubr.f32.gmra.mxu0 %v2733
      %v2816 = vpop.f32.mrf.mxu0
      %v2817 = vadd.f32 %v2719, %v2816
      %v2818 = vpop.f32.mrf.mxu0
      %v2819 = vadd.f32 %v2719, %v2818
      %2820 = vmatprep.mubr.f32.mxu0 0.0
      %2821 = vmatmul.mubr.f32.gmra.mxu0 %v2736
      %v2822 = vpop.f32.mrf.mxu0
      %v2823 = vadd.f32 %v2724, %v2822
      %v2824 = vpop.f32.mrf.mxu0
      %v2825 = vadd.f32 %v2724, %v2824
      %2826 = vdwg.mxu0
      %2827 = vmatprep.subr.mxu0 0.0
      %2828 = vmatpush1.msra.mxu0 0.0
      %2829 = vmatprep.subr.mxu0 0.0
      %2830 = vmatpush1.msra.mxu0 0.0
      %2831 = vmatprep.subr.mxu0 0.0
      %2832 = vmatpush1.msra.mxu0 0.0
      %2833 = vmatprep.subr.mxu0 0.0
      %2834 = vmatpush1.msra.mxu0 0.0
      %2835 = vmatprep.subr.mxu0 0.0
      %2836 = vmatpush1.msra.mxu0 0.0
      %2837 = vmatprep.subr.mxu0 0.0
      %2838 = vmatpush1.msra.mxu0 0.0
      %2839 = vmatprep.subr.mxu0 0.0
      %2840 = vmatpush1.msra.mxu0 0.0
      %2841 = vmatprep.subr.mxu0 0.0
      %2842 = vmatpush1.msra.mxu0 0.0
      %2843 = vmatprep.subr.mxu0 0.0
      %2844 = vmatpush1.msra.mxu0 0.0
      %2845 = vmatprep.subr.mxu0 0.0
      %2846 = vmatpush1.msra.mxu0 0.0
      %2847 = vmatprep.subr.mxu0 0.0
      %2848 = vmatpush1.msra.mxu0 0.0
      %2849 = vmatprep.subr.mxu0 0.0
      %2850 = vmatpush1.msra.mxu0 0.0
      %2851 = vmatprep.subr.mxu0 %v2697
      %2852 = vmatpush1.msra.mxu0 %v2696
      %2853 = vmatprep.subr.mxu0 %v2693
      %2854 = vmatpush1.msra.mxu0 %v2692
      %2855 = vmatprep.subr.mxu0 %v2689
      %2856 = vmatpush1.msra.mxu0 %v2688
      %2857 = vmatprep.subr.mxu0 %v2685
      %2858 = vmatpush1.msra.mxu0 %v2684
      %2859 = vmatprep.subr.mxu0 0.0
      %2860 = vmatpush2.msra.mxu0 0.0
      %2861 = vmatprep.subr.mxu0 0.0
      %2862 = vmatpush2.msra.mxu0 0.0
      %2863 = vmatprep.subr.mxu0 0.0
      %2864 = vmatpush2.msra.mxu0 0.0
      %2865 = vmatprep.subr.mxu0 0.0
      %2866 = vmatpush2.msra.mxu0 0.0
      %2867 = vmatprep.subr.mxu0 0.0
      %2868 = vmatpush2.msra.mxu0 0.0
      %2869 = vmatprep.subr.mxu0 0.0
      %2870 = vmatpush2.msra.mxu0 0.0
      %2871 = vmatprep.subr.mxu0 0.0
      %2872 = vmatpush2.msra.mxu0 0.0
      %2873 = vmatprep.subr.mxu0 0.0
      %2874 = vmatpush2.msra.mxu0 0.0
      %2875 = vmatprep.subr.mxu0 0.0
      %2876 = vmatpush2.msra.mxu0 0.0
      %2877 = vmatprep.subr.mxu0 0.0
      %2878 = vmatpush2.msra.mxu0 0.0
      %2879 = vmatprep.subr.mxu0 0.0
      %2880 = vmatpush2.msra.mxu0 0.0
      %2881 = vmatprep.subr.mxu0 0.0
      %2882 = vmatpush2.msra.mxu0 0.0
      %2883 = vmatprep.subr.mxu0 0.0
      %2884 = vmatpush2.msra.mxu0 0.0
      %2885 = vmatprep.subr.mxu0 0.0
      %2886 = vmatpush2.msra.mxu0 0.0
      %2887 = vmatprep.subr.mxu0 0.0
      %2888 = vmatpush2.msra.mxu0 0.0
      %2889 = vmatprep.subr.mxu0 0.0
      %2890 = vmatpush2.msra.mxu0 0.0
      %2891 = vmatprep.mubr.f32.mxu0 0.0
      %2892 = vmatmul.mubr.f32.gmra.mxu0 %v2727
      %v2893 = vpop.f32.mrf.mxu0
      %v2894 = vadd.f32 %v2709, %v2893
      %v2895 = vpop.f32.mrf.mxu0
      %v2896 = vadd.f32 %v2709, %v2895
      %2897 = vmatprep.mubr.f32.mxu0 0.0
      %2898 = vmatmul.mubr.f32.gmra.mxu0 %v2730
      %v2899 = vpop.f32.mrf.mxu0
      %v2900 = vadd.f32 %v2714, %v2899
      %v2901 = vpop.f32.mrf.mxu0
      %v2902 = vadd.f32 %v2714, %v2901
      %2903 = vmatprep.mubr.f32.mxu0 0.0
      %2904 = vmatmul.mubr.f32.gmra.mxu0 %v2733
      %v2905 = vpop.f32.mrf.mxu0
      %v2906 = vadd.f32 %v2719, %v2905
      %v2907 = vpop.f32.mrf.mxu0
      %v2908 = vadd.f32 %v2719, %v2907
      %2909 = vmatprep.mubr.f32.mxu0 0.0
      %2910 = vmatmul.mubr.f32.gmra.mxu0 %v2736
      %v2911 = vpop.f32.mrf.mxu0
      %v2912 = vadd.f32 %v2724, %v2911
      %v2913 = vpop.f32.mrf.mxu0
      %v2914 = vadd.f32 %v2724, %v2913
      %2915 = vdwg.mxu0
      %v2916 = vxor.u32 %v2805, 2147483648
      %v2917 = vxor.u32 %v2807, 2147483648
      %v2918 = vxor.u32 %v2894, 2147483648
      %v2919 = vxor.u32 %v2896, 2147483648
      %v2920 = vxor.u32 %v2811, 2147483648
      %v2921 = vxor.u32 %v2813, 2147483648
      %v2922 = vxor.u32 %v2900, 2147483648
      %v2923 = vxor.u32 %v2902, 2147483648
      %v2924 = vxor.u32 %v2817, 2147483648
      %v2925 = vxor.u32 %v2819, 2147483648
      %v2926 = vxor.u32 %v2906, 2147483648
      %v2927 = vxor.u32 %v2908, 2147483648
      %v2928 = vxor.u32 %v2823, 2147483648
      %v2929 = vxor.u32 %v2825, 2147483648
      %v2930 = vxor.u32 %v2912, 2147483648
      %v2931 = vxor.u32 %v2914, 2147483648
      %v2932 = vmul.f32 %v2916, 1.442695
      %v2933 = vpow.pop %v2932
      %v2934 = vmul.f32 %v2917, 1.442695
      %v2935 = vpow.pop %v2934
      %v2936 = vmul.f32 %v2918, 1.442695
      %v2937 = vpow.pop %v2936
      %v2938 = vmul.f32 %v2919, 1.442695
      %v2939 = vpow.pop %v2938
      %v2940 = vmul.f32 %v2920, 1.442695
      %v2941 = vpow.pop %v2940
      %v2942 = vmul.f32 %v2921, 1.442695
      %v2943 = vpow.pop %v2942
      %v2944 = vmul.f32 %v2922, 1.442695
      %v2945 = vpow.pop %v2944
      %v2946 = vmul.f32 %v2923, 1.442695
      %v2947 = vpow.pop %v2946
      %v2948 = vmul.f32 %v2924, 1.442695
      %v2949 = vpow.pop %v2948
      %v2950 = vmul.f32 %v2925, 1.442695
      %v2951 = vpow.pop %v2950
      %v2952 = vmul.f32 %v2926, 1.442695
      %v2953 = vpow.pop %v2952
      %v2954 = vmul.f32 %v2927, 1.442695
      %v2955 = vpow.pop %v2954
      %v2956 = vmul.f32 %v2928, 1.442695
      %v2957 = vpow.pop %v2956
      %v2958 = vmul.f32 %v2929, 1.442695
      %v2959 = vpow.pop %v2958
      %v2960 = vmul.f32 %v2930, 1.442695
      %v2961 = vpow.pop %v2960
      %v2962 = vmul.f32 %v2931, 1.442695
      %v2963 = vpow.pop %v2962
      %v2964 = vadd.f32 %v2933, 1.0
      %v2965 = vadd.f32 %v2935, 1.0
      %v2966 = vadd.f32 %v2937, 1.0
      %v2967 = vadd.f32 %v2939, 1.0
      %v2968 = vadd.f32 %v2941, 1.0
      %v2969 = vadd.f32 %v2943, 1.0
      %v2970 = vadd.f32 %v2945, 1.0
      %v2971 = vadd.f32 %v2947, 1.0
      %v2972 = vadd.f32 %v2949, 1.0
      %v2973 = vadd.f32 %v2951, 1.0
      %v2974 = vadd.f32 %v2953, 1.0
      %v2975 = vadd.f32 %v2955, 1.0
      %v2976 = vadd.f32 %v2957, 1.0
      %v2977 = vadd.f32 %v2959, 1.0
      %v2978 = vadd.f32 %v2961, 1.0
      %v2979 = vadd.f32 %v2963, 1.0
      %v2980 = vrcp.pop %v2964
      %v2981 = vmul.f32 1.0, %v2980
      %v2982 = vrcp.pop %v2965
      %v2983 = vmul.f32 1.0, %v2982
      %v2984 = vrcp.pop %v2966
      %v2985 = vmul.f32 1.0, %v2984
      %v2986 = vrcp.pop %v2967
      %v2987 = vmul.f32 1.0, %v2986
      %v2988 = vrcp.pop %v2968
      %v2989 = vmul.f32 1.0, %v2988
      %v2990 = vrcp.pop %v2969
      %v2991 = vmul.f32 1.0, %v2990
      %v2992 = vrcp.pop %v2970
      %v2993 = vmul.f32 1.0, %v2992
      %v2994 = vrcp.pop %v2971
      %v2995 = vmul.f32 1.0, %v2994
      %v2996 = vrcp.pop %v2972
      %v2997 = vmul.f32 1.0, %v2996
      %v2998 = vrcp.pop %v2973
      %v2999 = vmul.f32 1.0, %v2998
      %v3000 = vrcp.pop %v2974
      %v3001 = vmul.f32 1.0, %v3000
      %v3002 = vrcp.pop %v2975
      %v3003 = vmul.f32 1.0, %v3002
      %v3004 = vrcp.pop %v2976
      %v3005 = vmul.f32 1.0, %v3004
      %v3006 = vrcp.pop %v2977
      %v3007 = vmul.f32 1.0, %v3006
      %v3008 = vrcp.pop %v2978
      %v3009 = vmul.f32 1.0, %v3008
      %v3010 = vrcp.pop %v2979
      %v3011 = vmul.f32 1.0, %v3010
      %v3012 = vadd.f32 %v2981, 1.0
      %v3013 = vadd.f32 %v2983, 1.0
      %v3014 = vadd.f32 %v2985, 1.0
      %v3015 = vadd.f32 %v2987, 1.0
      %v3016 = vadd.f32 %v2989, 1.0
      %v3017 = vadd.f32 %v2991, 1.0
      %v3018 = vadd.f32 %v2993, 1.0
      %v3019 = vadd.f32 %v2995, 1.0
      %v3020 = vadd.f32 %v2997, 1.0
      %v3021 = vadd.f32 %v2999, 1.0
      %v3022 = vadd.f32 %v3001, 1.0
      %v3023 = vadd.f32 %v3003, 1.0
      %v3024 = vadd.f32 %v3005, 1.0
      %v3025 = vadd.f32 %v3007, 1.0
      %v3026 = vadd.f32 %v3009, 1.0
      %v3027 = vadd.f32 %v3011, 1.0
      %v3028 = vld [vmem:[%s381] sm:$0xff]
      %v3029 = vld [vmem:[%s381 + $0x8] sm:$0xff]
      %v3030 = vld [vmem:[%s381 + $0x10] sm:$0xff]
      %v3031 = vld [vmem:[%s381 + $0x18] sm:$0xff]
      %v3032 = vld [vmem:[%s381 + $0x20] sm:$0xff]
      %v3033 = vld [vmem:[%s381 + $0x28] sm:$0xff]
      %v3034 = vld [vmem:[%s381 + $0x30] sm:$0xff]
      %v3035 = vld [vmem:[%s381 + $0x38] sm:$0xff]
      %v3036 = vld [vmem:[%s381 + $0x40] sm:$0xff]
      %v3037 = vld [vmem:[%s381 + $0x48] sm:$0xff]
      %v3038 = vld [vmem:[%s381 + $0x50] sm:$0xff]
      %v3039 = vld [vmem:[%s381 + $0x58] sm:$0xff]
      %v3040 = vld [vmem:[%s381 + $0x60] sm:$0xff]
      %v3041 = vld [vmem:[%s381 + $0x68] sm:$0xff]
      %v3042 = vld [vmem:[%s381 + $0x70] sm:$0xff]
      %v3043 = vld [vmem:[%s381 + $0x78] sm:$0xff]
      %v3044 = vmul.f32 %v3028, %v3012
      %v3045 = vmul.f32 %v3029, %v3013
      %v3046 = vmul.f32 %v3030, %v3014
      %v3047 = vmul.f32 %v3031, %v3015
      %v3048 = vmul.f32 %v3032, %v3016
      %v3049 = vmul.f32 %v3033, %v3017
      %v3050 = vmul.f32 %v3034, %v3018
      %v3051 = vmul.f32 %v3035, %v3019
      %v3052 = vmul.f32 %v3036, %v3020
      %v3053 = vmul.f32 %v3037, %v3021
      %v3054 = vmul.f32 %v3038, %v3022
      %v3055 = vmul.f32 %v3039, %v3023
      %v3056 = vmul.f32 %v3040, %v3024
      %v3057 = vmul.f32 %v3041, %v3025
      %v3058 = vmul.f32 %v3042, %v3026
      %v3059 = vmul.f32 %v3043, %v3027
      %3060 = vst [vmem:[%s386] sm:$0xff] %v3044
      %3061 = vst [vmem:[%s386 + $0x8] sm:$0xff] %v3045
      %3062 = vst [vmem:[%s386 + $0x10] sm:$0xff] %v3046
      %3063 = vst [vmem:[%s386 + $0x18] sm:$0xff] %v3047
      %3064 = vst [vmem:[%s386 + $0x20] sm:$0xff] %v3048
      %3065 = vst [vmem:[%s386 + $0x28] sm:$0xff] %v3049
      %3066 = vst [vmem:[%s386 + $0x30] sm:$0xff] %v3050
      %3067 = vst [vmem:[%s386 + $0x38] sm:$0xff] %v3051
      %3068 = vst [vmem:[%s386 + $0x40] sm:$0xff] %v3052
      %3069 = vst [vmem:[%s386 + $0x48] sm:$0xff] %v3053
      %3070 = vst [vmem:[%s386 + $0x50] sm:$0xff] %v3054
      %3071 = vst [vmem:[%s386 + $0x58] sm:$0xff] %v3055
      %3072 = vst [vmem:[%s386 + $0x60] sm:$0xff] %v3056
      %3073 = vst [vmem:[%s386 + $0x68] sm:$0xff] %v3057
      %3074 = vst [vmem:[%s386 + $0x70] sm:$0xff] %v3058
      %3075 = vst [vmem:[%s386 + $0x78] sm:$0xff] %v3059
      %p3076 = scmp.lt.s32.totalorder %s22, 1
      %s3077 = scalar_select %p3076, %s22, 1
      %s3078 = smul.addr %s3077, 16
      %s3079 = smul.addr %s3078, 8
      %s3080 = scalar_lea.vmem %s11, %s3079
      // Predicated region
      $region65: #{_rein_forward_core.1} parent=63 // pred_check
        %p3081 = pneg %p276
      $region66: #{_rein_forward_core.1} parent=63 // pred_check_branch
        %3083 = sbr.rel (%p3081) target = $region68
      $region67: #{_rein_forward_core.1} parent=63 // pred_region
        _
      $region68: #{_rein_forward_core.1} parent=63 // pred_fallthru
        _
    $region64: #{_rein_forward_core.1} parent=5 // pred_fallthru
      _
    %p3084 = scmp.le.s32.totalorder 2, %s17
    // Predicated region
    $region69: #{_rein_forward_core.1} parent=5 // pred_check
      %p3085 = pneg %p3084
    $region70: #{_rein_forward_core.1} parent=5 // pred_check_branch
      %3087 = sbr.rel (%p3085) target = $region72
    $region71: #{_rein_forward_core.1} parent=5 // pred_region
      %s3088 = ssub.s32 %s17, 2
      // Predicated region
      $region73: #{_rein_forward_core.1} parent=71 // pred_check
        %p3089 = pneg %p282
      $region74: #{_rein_forward_core.1} parent=71 // pred_check_branch
        %3091 = sbr.rel (%p3089) target = $region76
      $region75: #{_rein_forward_core.1} parent=71 // pred_region
        %p3092 = scmp.lt.s32.totalorder %s23, 1
        %s3093 = scalar_select %p3092, %s23, 1
        %s3094 = smul.addr %s3093, 16
        %s3095 = smul.addr %s3094, 8
        %s3096 = scalar_lea.vmem %s11, %s3095
      $region76: #{_rein_forward_core.1} parent=71 // pred_fallthru
        _
    $region72: #{_rein_forward_core.1} parent=5 // pred_fallthru
      _
  $region6: #{_rein_forward_core.1} parent=0 // loop_footer
    %s21 = sadd.s32 1, %s17
  $region7: #{_rein_forward_core.1} parent=0 // loop_footer_branch
    %16 = sbr.rel target = $region3
  $region8: #{_rein_forward_core.1} parent=0 // loop_exit
    _

</llo_original>
